<compile_context>
chip_gen: v7x
topology: tpu7x:2x2x1
jax: 0.10.0
libtpu: 0.0.40
codegen_flags: <defaults>
</compile_context>

<pallas_src>
import functools

import jax
import jax.numpy as jnp
from jax.experimental import pallas as pl
from jax.experimental.pallas import tpu as pltpu

LRELU_SLOPE = 0.1
BN_EPS = 1e-5
MXU_DTYPE = jnp.float32   # set to jnp.bfloat16 on v5e/v6e/v7x at larger ngf/batch


# ----------------------------------------------------------------------------
# Pallas kernels
# ----------------------------------------------------------------------------
def _lrelu(y, slope=LRELU_SLOPE):
    return jnp.where(y >= 0, y, slope * y)


def fused_linears_kernel(x_ref, w1_ref, b1_ref, w2_ref, b2_ref, o_ref):
    # y = lrelu(lrelu(x @ W1 + b1) @ W2 + b2)
    h = jnp.dot(x_ref[...].astype(MXU_DTYPE), w1_ref[...].astype(MXU_DTYPE),
                preferred_element_type=jnp.float32) + b1_ref[...]
    h = _lrelu(h)
    h = jnp.dot(h.astype(MXU_DTYPE), w2_ref[...].astype(MXU_DTYPE),
                preferred_element_type=jnp.float32) + b2_ref[...]
    o_ref[...] = _lrelu(h)


def tconv_bn_act_kernel(w_ref, p_ref, g_ref, b_ref, o_ref, *, inv_m, n_act):
    # (C_out, K) @ (K, M_pad): lane-dense output, M (=B*Ho*Wo padded) on lanes.
    y = jnp.dot(w_ref[...].astype(MXU_DTYPE), p_ref[...].astype(MXU_DTYPE),
                preferred_element_type=jnp.float32)
    # Single-pass BN batch stats over the lane axis; padded patch columns are
    # all-zero (no conv bias) so s1/s2 are exact with the real-count divisor.
    s1 = jnp.sum(y, axis=1, keepdims=True)
    s2 = jnp.sum(y * y, axis=1, keepdims=True)
    mu = s1 * inv_m
    var = jnp.maximum(s2 * inv_m - mu * mu, 0.0)
    y = (y - mu) * jax.lax.rsqrt(var + BN_EPS)
    y = y * g_ref[...] + b_ref[...]
    # n_act chained leaky_relus == one leaky_relu with slope**n_act
    o_ref[...] = jnp.where(y >= 0, y, (LRELU_SLOPE ** n_act) * y)


def tconv_kernel(w_ref, p_ref, o_ref):
    o_ref[...] = jnp.dot(w_ref[...].astype(MXU_DTYPE), p_ref[...].astype(MXU_DTYPE),
                         preferred_element_type=jnp.float32)


# ----------------------------------------------------------------------------
# pallas_call wrappers (full-array blocks; whole net is < 4 MiB fp32, fits VMEM
# on every generation including v7x's 64 MiB)
# ----------------------------------------------------------------------------
def _cparams():
    return pltpu.CompilerParams(dimension_semantics=("arbitrary",),
                                vmem_limit_bytes=32 * 1024 * 1024)


def pallas_fused_linears(x, w1, b1, w2, b2):
    m, k1 = x.shape
    n1 = w1.shape[1]
    n2 = w2.shape[1]
    flops = 2 * m * (k1 * n1 + n1 * n2)
    nbytes = 4 * (x.size + w1.size + b1.size + w2.size + b2.size + m * n2)
    return pl.pallas_call(
        fused_linears_kernel,
        out_shape=jax.ShapeDtypeStruct((m, n2), jnp.float32),
        grid=(1,),
        in_specs=[
            pl.BlockSpec((m, k1), lambda i: (0, 0)),
            pl.BlockSpec((k1, n1), lambda i: (0, 0)),
            pl.BlockSpec((1, n1), lambda i: (0, 0)),
            pl.BlockSpec((n1, n2), lambda i: (0, 0)),
            pl.BlockSpec((1, n2), lambda i: (0, 0)),
        ],
        out_specs=pl.BlockSpec((m, n2), lambda i: (0, 0)),
        compiler_params=_cparams(),
        cost_estimate=pl.CostEstimate(flops=flops, transcendentals=0,
                                      bytes_accessed=nbytes),
    )(x, w1, b1, w2, b2)


def pallas_tconv_bn_act(wmat, patches, gamma, beta, m_real, n_act):
    cout, k = wmat.shape
    m_pad = patches.shape[1]
    kern = functools.partial(tconv_bn_act_kernel, inv_m=1.0 / m_real, n_act=n_act)
    flops = 2 * cout * k * m_pad + 8 * cout * m_pad
    nbytes = 4 * (wmat.size + patches.size + gamma.size + beta.size + cout * m_pad)
    return pl.pallas_call(
        kern,
        out_shape=jax.ShapeDtypeStruct((cout, m_pad), jnp.float32),
        grid=(1,),
        in_specs=[
            pl.BlockSpec((cout, k), lambda i: (0, 0)),
            pl.BlockSpec((k, m_pad), lambda i: (0, 0)),
            pl.BlockSpec((cout, 1), lambda i: (0, 0)),
            pl.BlockSpec((cout, 1), lambda i: (0, 0)),
        ],
        out_specs=pl.BlockSpec((cout, m_pad), lambda i: (0, 0)),
        compiler_params=_cparams(),
        cost_estimate=pl.CostEstimate(flops=flops, transcendentals=cout,
                                      bytes_accessed=nbytes),
    )(wmat, patches, gamma, beta)


def pallas_tconv(wmat, patches):
    cout, k = wmat.shape
    m_pad = patches.shape[1]
    flops = 2 * cout * k * m_pad
    nbytes = 4 * (wmat.size + patches.size + cout * m_pad)
    return pl.pallas_call(
        tconv_kernel,
        out_shape=jax.ShapeDtypeStruct((cout, m_pad), jnp.float32),
        grid=(1,),
        in_specs=[
            pl.BlockSpec((cout, k), lambda i: (0, 0)),
            pl.BlockSpec((k, m_pad), lambda i: (0, 0)),
        ],
        out_specs=pl.BlockSpec((cout, m_pad), lambda i: (0, 0)),
        compiler_params=_cparams(),
        cost_estimate=pl.CostEstimate(flops=flops, transcendentals=0,
                                      bytes_accessed=nbytes),
    )(wmat, patches)


# ----------------------------------------------------------------------------
# Glue (inside the same jit): channel-major im2col for ConvTranspose2d(s=2,p=0)
# ----------------------------------------------------------------------------
def _round_up(n, m):
    return (n + m - 1) // m * m


def tconv_patches_cm(x_cbhw, kk, stride=2):
    """(C, B, H, W) channel-major -> patches (C*kk*kk, M_pad), M_real, Hout.

    Already in (K, M) channel-major layout with M = B*Hout*Wout on lanes,
    zero-padded to a multiple of 128 for unmasked stores downstream.  The
    zero-insertion (stride) and (kk-1) halo are one lax.pad with interior
    padding; no NCHW<->NHWC transposes are needed.
    """
    c, b, h, w = x_cbhw.shape
    hout = (h - 1) * stride + kk
    wout = (w - 1) * stride + kk
    zero = jnp.array(0.0, x_cbhw.dtype)
    xp = jax.lax.pad(x_cbhw, zero,
                     ((0, 0, 0), (0, 0, 0),
                      (kk - 1, kk - 1, stride - 1),
                      (kk - 1, kk - 1, stride - 1)))
    cols = [xp[:, :, kh:kh + hout, kw:kw + wout]
            for kh in range(kk) for kw in range(kk)]
    p = jnp.stack(cols, axis=1)                       # (C, kk*kk, B, Ho, Wo)
    m_real = b * hout * wout
    p = p.reshape(c * kk * kk, m_real)
    m_pad = _round_up(m_real, 128)
    p = jnp.pad(p, ((0, 0), (0, m_pad - m_real)))
    return p, m_real, hout


def tconv_weight_cm(w, cout_pad=None):
    """PyTorch ConvTranspose2d weight (Cin, Cout, K, K) -> (Cout[_pad], Cin*K*K)
    matching the channel-major patch ordering (kernel spatially flipped)."""
    cin, cout, kk, _ = w.shape
    wm = jnp.flip(w, axis=(2, 3)).transpose(1, 0, 2, 3).reshape(cout, cin * kk * kk)
    if cout_pad is not None and cout_pad > cout:
        wm = jnp.pad(wm, ((0, cout_pad - cout), (0, 0)))
    return wm


# ----------------------------------------------------------------------------
# Full forward (jit this; activations stay channel-major between stages)
# ----------------------------------------------------------------------------
def conv45_decoder_forward(x, p):
    b = x.shape[0]
    ngf = p["wt2"].shape[0]
    nc = p["wt5"].shape[1]

    # linear1 + lrelu + linear2 + lrelu (one fused Pallas kernel)
    h = pallas_fused_linears(x, p["w1"], p["b1"], p["w2"], p["b2"])   # (B, ngf*16)
    h = h.reshape(b, ngf, 4, 4).transpose(1, 0, 2, 3)                 # (C, B, 4, 4)

    # tconv2 (k=3, s=2): 4x4 -> 9x9, + batchnorm2 + leaky_relu
    patches, m_real, ho = tconv_patches_cm(h, 3)
    y = pallas_tconv_bn_act(tconv_weight_cm(p["wt2"]), patches,
                            p["bn2_g"], p["bn2_b"], m_real, n_act=1)
    h = y[:, :m_real].reshape(ngf, b, ho, ho)

    # tconv3 (k=5, s=2): 9x9 -> 21x21, + batchnorm3 + leaky_relu x2
    patches, m_real, ho = tconv_patches_cm(h, 5)
    y = pallas_tconv_bn_act(tconv_weight_cm(p["wt3"]), patches,
                            p["bn3_g"], p["bn3_b"], m_real, n_act=2)
    h = y[:, :m_real].reshape(ngf, b, ho, ho)

    # tconv5 (k=5, s=2): 21x21 -> 45x45, no BN / activation
    patches, m_real, ho = tconv_patches_cm(h, 5)
    y = pallas_tconv(tconv_weight_cm(p["wt5"], cout_pad=_round_up(nc, 8)), patches)
    out = y[:nc, :m_real].reshape(nc, b, ho, ho).transpose(1, 0, 2, 3)
    return out                                                        # (B, nc, 45, 45)


# ----------------------------------------------------------------------------
# Pure-JAX reference (direct scatter form of ConvTranspose2d) for validation
# ----------------------------------------------------------------------------
def _ref_tconv(x, w, stride=2):
    n, ci, h, _ = x.shape
    _, co, kk, _ = w.shape
    ho = (h - 1) * stride + kk
    out = jnp.zeros((n, co, ho, ho), jnp.float32)
    for kh in range(kk):
        for kw in range(kk):
            contrib = jnp.einsum("nchw,cd->ndhw", x, w[:, :, kh, kw])
            out = out.at[:, :, kh:kh + (h - 1) * stride + 1:stride,
                         kw:kw + (h - 1) * stride + 1:stride].add(contrib)
    return out


def _ref_bn(x):
    mu = jnp.mean(x, axis=(0, 2, 3), keepdims=True)
    var = jnp.mean(jnp.square(x - mu), axis=(0, 2, 3), keepdims=True)
    return (x - mu) * jax.lax.rsqrt(var + BN_EPS)


def ref_forward(x, p, ngf):
    h = _lrelu(x @ p["w1"] + p["b1"])
    h = _lrelu(h @ p["w2"] + p["b2"])
    h = h.reshape(-1, ngf, 4, 4)
    h = _lrelu(_ref_bn(_ref_tconv(h, p["wt2"])))
    h = _lrelu(_lrelu(_ref_bn(_ref_tconv(h, p["wt3"]))))
    return _ref_tconv(h, p["wt5"])


# ----------------------------------------------------------------------------
if __name__ == "__main__":
    B, NZ, NF, NC = 2, 32, 8, 3          # batch, nz, nf(=ngf), nc
    key = jax.random.PRNGKey(0)
    ks = jax.random.split(key, 8)

    params = {
        "w1": 0.05 * jax.random.normal(ks[0], (NZ, 1024), jnp.float32),
        "b1": 0.05 * jax.random.normal(ks[1], (1, 1024), jnp.float32),
        "w2": 0.05 * jax.random.normal(ks[2], (1024, NF * 4 * 4), jnp.float32),
        "b2": 0.05 * jax.random.normal(ks[3], (1, NF * 4 * 4), jnp.float32),
        # ConvTranspose2d weights: (Cin, Cout, K, K), bias=False
        "wt2": 0.1 * jax.random.normal(ks[4], (NF, NF, 3, 3), jnp.float32),
        "wt3": 0.1 * jax.random.normal(ks[5], (NF, NF, 5, 5), jnp.float32),
        "wt5": 0.1 * jax.random.normal(ks[6], (NF, NC, 5, 5), jnp.float32),
        # BatchNorm2d default init: gamma=1, beta=0 (batchnorm1 is unused),
        # stored channel-major (C, 1) to broadcast over lanes in-kernel.
        "bn2_g": jnp.ones((NF, 1), jnp.float32),
        "bn2_b": jnp.zeros((NF, 1), jnp.float32),
        "bn3_g": jnp.ones((NF, 1), jnp.float32),
        "bn3_b": jnp.zeros((NF, 1), jnp.float32),
    }

    x = jax.random.normal(ks[7], (B, NZ), jnp.float32)

    fwd = jax.jit(conv45_decoder_forward)
    out = jax.block_until_ready(fwd(x, params))

    assert out.shape == (B, NC, 45, 45), out.shape
    assert bool(jnp.all(jnp.isfinite(out)))

    ref = jax.block_until_ready(ref_forward(x, params, NF))
    assert bool(jnp.allclose(out, ref, atol=5e-3, rtol=5e-3)), \
        float(jnp.max(jnp.abs(out - ref)))

    print("KERNEL_OK")
</pallas_src>

<mosaic_0001>
module attributes {stable_mosaic.version = 11 : i64} {
  func.func @fused_linears_kernel(%arg0: i32, %arg1: memref<2x32xf32, #tpu.memory_space<vmem>>, %arg2: memref<32x1024xf32, #tpu.memory_space<vmem>>, %arg3: memref<1x1024xf32, #tpu.memory_space<vmem>>, %arg4: memref<1024x128xf32, #tpu.memory_space<vmem>>, %arg5: memref<1x128xf32, #tpu.memory_space<vmem>>, %arg6: memref<2x128xf32, #tpu.memory_space<vmem>>) attributes {dimension_semantics = [#tpu.dimension_semantics<arbitrary>], iteration_bounds = array<i64: 1>, scalar_prefetch = 0 : i64, scratch_operands = 0 : i64, tpu.core_type = #tpu.core_type<tc>, window_params = [{pipeline_mode = #tpu.pipeline_mode<synchronous>, transform_indices = @transform_0, window_bounds = array<i64: 2, 32>}, {pipeline_mode = #tpu.pipeline_mode<synchronous>, transform_indices = @transform_1, window_bounds = array<i64: 32, 1024>}, {pipeline_mode = #tpu.pipeline_mode<synchronous>, transform_indices = @transform_2, window_bounds = array<i64: 1, 1024>}, {pipeline_mode = #tpu.pipeline_mode<synchronous>, transform_indices = @transform_3, window_bounds = array<i64: 1024, 128>}, {pipeline_mode = #tpu.pipeline_mode<synchronous>, transform_indices = @transform_4, window_bounds = array<i64: 1, 128>}, {pipeline_mode = #tpu.pipeline_mode<synchronous>, transform_indices = @transform_5, window_bounds = array<i64: 2, 128>}]} {
    %c0 = arith.constant 0 : index
    %c0_0 = arith.constant 0 : index
    %0 = vector.load %arg1[%c0, %c0_0] : memref<2x32xf32, #tpu.memory_space<vmem>>, vector<2x32xf32>
    %c0_1 = arith.constant 0 : index
    %c0_2 = arith.constant 0 : index
    %1 = vector.load %arg2[%c0_1, %c0_2] : memref<32x1024xf32, #tpu.memory_space<vmem>>, vector<32x1024xf32>
    %cst = arith.constant dense<0.000000e+00> : vector<2x1024xf32>
    %2 = tpu.matmul %0, %1, %cst {dimension_numbers = #tpu.dot_dimension_numbers<[1], [0], [0], [1], [0, 0, 1, 1], [], []>} : vector<2x32xf32>, vector<32x1024xf32>, vector<2x1024xf32> -> vector<2x1024xf32>
    %c0_3 = arith.constant 0 : index
    %c0_4 = arith.constant 0 : index
    %3 = vector.load %arg3[%c0_3, %c0_4] : memref<1x1024xf32, #tpu.memory_space<vmem>>, vector<1x1024xf32>
    %4 = vector.broadcast %3 : vector<1x1024xf32> to vector<2x1024xf32>
    %5 = arith.addf %2, %4 : vector<2x1024xf32>
    %cst_5 = arith.constant 0.000000e+00 : f32
    %6 = vector.broadcast %cst_5 : f32 to vector<2x1024xf32>
    %7 = arith.cmpf oge, %5, %6 : vector<2x1024xf32>
    %cst_6 = arith.constant 1.000000e-01 : f32
    %8 = vector.broadcast %cst_6 : f32 to vector<2x1024xf32>
    %9 = arith.mulf %8, %5 : vector<2x1024xf32>
    %10 = arith.select %7, %5, %9 : vector<2x1024xi1>, vector<2x1024xf32>
    %c0_7 = arith.constant 0 : index
    %c0_8 = arith.constant 0 : index
    %11 = vector.load %arg4[%c0_7, %c0_8] : memref<1024x128xf32, #tpu.memory_space<vmem>>, vector<1024x128xf32>
    %cst_9 = arith.constant dense<0.000000e+00> : vector<2x128xf32>
    %12 = tpu.matmul %10, %11, %cst_9 {dimension_numbers = #tpu.dot_dimension_numbers<[1], [0], [0], [1], [0, 0, 1, 1], [], []>} : vector<2x1024xf32>, vector<1024x128xf32>, vector<2x128xf32> -> vector<2x128xf32>
    %c0_10 = arith.constant 0 : index
    %c0_11 = arith.constant 0 : index
    %13 = vector.load %arg5[%c0_10, %c0_11] : memref<1x128xf32, #tpu.memory_space<vmem>>, vector<1x128xf32>
    %14 = vector.broadcast %13 : vector<1x128xf32> to vector<2x128xf32>
    %15 = arith.addf %12, %14 : vector<2x128xf32>
    %cst_12 = arith.constant 0.000000e+00 : f32
    %16 = vector.broadcast %cst_12 : f32 to vector<2x128xf32>
    %17 = arith.cmpf oge, %15, %16 : vector<2x128xf32>
    %cst_13 = arith.constant 1.000000e-01 : f32
    %18 = vector.broadcast %cst_13 : f32 to vector<2x128xf32>
    %19 = arith.mulf %18, %15 : vector<2x128xf32>
    %20 = arith.select %17, %15, %19 : vector<2x128xi1>, vector<2x128xf32>
    %c0_14 = arith.constant 0 : index
    %c0_15 = arith.constant 0 : index
    %21 = vector.load %arg6[%c0_14, %c0_15] : memref<2x128xf32, #tpu.memory_space<vmem>>, vector<2x128xf32>
    tpu.vector_store %arg6[%c0_14, %c0_15], %20 {strides = array<i32>} : memref<2x128xf32, #tpu.memory_space<vmem>>, vector<2x128xf32>,
    return
  }
  func.func @transform_0(%arg0: i32) -> (i32, i32) {
    %c0_i32 = arith.constant 0 : i32
    %c0_i32_0 = arith.constant 0 : i32
    %c0_i32_1 = arith.constant 0 : i32
    return %c0_i32, %c0_i32_0 : i32, i32
  }
  func.func @transform_1(%arg0: i32) -> (i32, i32) {
    %c0_i32 = arith.constant 0 : i32
    %c0_i32_0 = arith.constant 0 : i32
    %c0_i32_1 = arith.constant 0 : i32
    return %c0_i32, %c0_i32_0 : i32, i32
  }
  func.func @transform_2(%arg0: i32) -> (i32, i32) {
    %c0_i32 = arith.constant 0 : i32
    %c0_i32_0 = arith.constant 0 : i32
    %c0_i32_1 = arith.constant 0 : i32
    return %c0_i32, %c0_i32_0 : i32, i32
  }
  func.func @transform_3(%arg0: i32) -> (i32, i32) {
    %c0_i32 = arith.constant 0 : i32
    %c0_i32_0 = arith.constant 0 : i32
    %c0_i32_1 = arith.constant 0 : i32
    return %c0_i32, %c0_i32_0 : i32, i32
  }
  func.func @transform_4(%arg0: i32) -> (i32, i32) {
    %c0_i32 = arith.constant 0 : i32
    %c0_i32_0 = arith.constant 0 : i32
    %c0_i32_1 = arith.constant 0 : i32
    return %c0_i32, %c0_i32_0 : i32, i32
  }
  func.func @transform_5(%arg0: i32) -> (i32, i32) {
    %c0_i32 = arith.constant 0 : i32
    %c0_i32_0 = arith.constant 0 : i32
    %c0_i32_1 = arith.constant 0 : i32
    return %c0_i32, %c0_i32_0 : i32, i32
  }
}

module attributes {stable_mosaic.version = 11 : i64} {
  func.func @tconv_bn_act_kernel(%arg0: i32, %arg1: memref<8x72xf32, #tpu.memory_space<vmem>>, %arg2: memref<72x256xf32, #tpu.memory_space<vmem>>, %arg3: memref<8x1xf32, #tpu.memory_space<vmem>>, %arg4: memref<8x1xf32, #tpu.memory_space<vmem>>, %arg5: memref<8x256xf32, #tpu.memory_space<vmem>>) attributes {dimension_semantics = [#tpu.dimension_semantics<arbitrary>], iteration_bounds = array<i64: 1>, scalar_prefetch = 0 : i64, scratch_operands = 0 : i64, tpu.core_type = #tpu.core_type<tc>, window_params = [{pipeline_mode = #tpu.pipeline_mode<synchronous>, transform_indices = @transform_0, window_bounds = array<i64: 8, 72>}, {pipeline_mode = #tpu.pipeline_mode<synchronous>, transform_indices = @transform_1, window_bounds = array<i64: 72, 256>}, {pipeline_mode = #tpu.pipeline_mode<synchronous>, transform_indices = @transform_2, window_bounds = array<i64: 8, 1>}, {pipeline_mode = #tpu.pipeline_mode<synchronous>, transform_indices = @transform_3, window_bounds = array<i64: 8, 1>}, {pipeline_mode = #tpu.pipeline_mode<synchronous>, transform_indices = @transform_4, window_bounds = array<i64: 8, 256>}]} {
    %c0 = arith.constant 0 : index
    %c0_0 = arith.constant 0 : index
    %0 = vector.load %arg1[%c0, %c0_0] : memref<8x72xf32, #tpu.memory_space<vmem>>, vector<8x72xf32>
    %c0_1 = arith.constant 0 : index
    %c0_2 = arith.constant 0 : index
    %1 = vector.load %arg2[%c0_1, %c0_2] : memref<72x256xf32, #tpu.memory_space<vmem>>, vector<72x256xf32>
    %cst = arith.constant dense<0.000000e+00> : vector<8x256xf32>
    %2 = tpu.matmul %0, %1, %cst {dimension_numbers = #tpu.dot_dimension_numbers<[1], [0], [0], [1], [0, 0, 1, 1], [], []>} : vector<8x72xf32>, vector<72x256xf32>, vector<8x256xf32> -> vector<8x256xf32>
    %cst_3 = arith.constant dense<0.000000e+00> : vector<8xf32>
    %3 = vector.multi_reduction <add>, %2, %cst_3 [1] : vector<8x256xf32> to vector<8xf32>
    %4 = vector.shape_cast %3 : vector<8xf32> to vector<8x1xf32>
    %5 = arith.mulf %2, %2 : vector<8x256xf32>
    %cst_4 = arith.constant dense<0.000000e+00> : vector<8xf32>
    %6 = vector.multi_reduction <add>, %5, %cst_4 [1] : vector<8x256xf32> to vector<8xf32>
    %7 = vector.shape_cast %6 : vector<8xf32> to vector<8x1xf32>
    %cst_5 = arith.constant 0.00617283955 : f32
    %8 = vector.broadcast %cst_5 : f32 to vector<8x1xf32>
    %9 = arith.mulf %4, %8 : vector<8x1xf32>
    %cst_6 = arith.constant 0.00617283955 : f32
    %10 = vector.broadcast %cst_6 : f32 to vector<8x1xf32>
    %11 = arith.mulf %7, %10 : vector<8x1xf32>
    %12 = arith.mulf %9, %9 : vector<8x1xf32>
    %13 = arith.subf %11, %12 : vector<8x1xf32>
    %cst_7 = arith.constant 0.000000e+00 : f32
    %14 = vector.broadcast %cst_7 : f32 to vector<8x1xf32>
    %15 = arith.maximumf %13, %14 : vector<8x1xf32>
    %16 = vector.broadcast %9 : vector<8x1xf32> to vector<8x256xf32>
    %17 = arith.subf %2, %16 : vector<8x256xf32>
    %cst_8 = arith.constant 9.99999974E-6 : f32
    %18 = vector.broadcast %cst_8 : f32 to vector<8x1xf32>
    %19 = arith.addf %15, %18 : vector<8x1xf32>
    %20 = math.rsqrt %19 : vector<8x1xf32>
    %21 = vector.broadcast %20 : vector<8x1xf32> to vector<8x256xf32>
    %22 = arith.mulf %17, %21 : vector<8x256xf32>
    %c0_9 = arith.constant 0 : index
    %c0_10 = arith.constant 0 : index
    %23 = vector.load %arg3[%c0_9, %c0_10] : memref<8x1xf32, #tpu.memory_space<vmem>>, vector<8x1xf32>
    %24 = vector.broadcast %23 : vector<8x1xf32> to vector<8x256xf32>
    %25 = arith.mulf %22, %24 : vector<8x256xf32>
    %c0_11 = arith.constant 0 : index
    %c0_12 = arith.constant 0 : index
    %26 = vector.load %arg4[%c0_11, %c0_12] : memref<8x1xf32, #tpu.memory_space<vmem>>, vector<8x1xf32>
    %27 = vector.broadcast %26 : vector<8x1xf32> to vector<8x256xf32>
    %28 = arith.addf %25, %27 : vector<8x256xf32>
    %cst_13 = arith.constant 0.000000e+00 : f32
    %29 = vector.broadcast %cst_13 : f32 to vector<8x256xf32>
    %30 = arith.cmpf oge, %28, %29 : vector<8x256xf32>
    %cst_14 = arith.constant 1.000000e-01 : f32
    %31 = vector.broadcast %cst_14 : f32 to vector<8x256xf32>
    %32 = arith.mulf %31, %28 : vector<8x256xf32>
    %33 = arith.select %30, %28, %32 : vector<8x256xi1>, vector<8x256xf32>
    %c0_15 = arith.constant 0 : index
    %c0_16 = arith.constant 0 : index
    %34 = vector.load %arg5[%c0_15, %c0_16] : memref<8x256xf32, #tpu.memory_space<vmem>>, vector<8x256xf32>
    tpu.vector_store %arg5[%c0_15, %c0_16], %33 {strides = array<i32>} : memref<8x256xf32, #tpu.memory_space<vmem>>, vector<8x256xf32>,
    return
  }
  func.func @transform_0(%arg0: i32) -> (i32, i32) {
    %c0_i32 = arith.constant 0 : i32
    %c0_i32_0 = arith.constant 0 : i32
    %c0_i32_1 = arith.constant 0 : i32
    return %c0_i32, %c0_i32_0 : i32, i32
  }
  func.func @transform_1(%arg0: i32) -> (i32, i32) {
    %c0_i32 = arith.constant 0 : i32
    %c0_i32_0 = arith.constant 0 : i32
    %c0_i32_1 = arith.constant 0 : i32
    return %c0_i32, %c0_i32_0 : i32, i32
  }
  func.func @transform_2(%arg0: i32) -> (i32, i32) {
    %c0_i32 = arith.constant 0 : i32
    %c0_i32_0 = arith.constant 0 : i32
    %c0_i32_1 = arith.constant 0 : i32
    return %c0_i32, %c0_i32_0 : i32, i32
  }
  func.func @transform_3(%arg0: i32) -> (i32, i32) {
    %c0_i32 = arith.constant 0 : i32
    %c0_i32_0 = arith.constant 0 : i32
    %c0_i32_1 = arith.constant 0 : i32
    return %c0_i32, %c0_i32_0 : i32, i32
  }
  func.func @transform_4(%arg0: i32) -> (i32, i32) {
    %c0_i32 = arith.constant 0 : i32
    %c0_i32_0 = arith.constant 0 : i32
    %c0_i32_1 = arith.constant 0 : i32
    return %c0_i32, %c0_i32_0 : i32, i32
  }
}

module attributes {stable_mosaic.version = 11 : i64} {
  func.func @tconv_bn_act_kernel(%arg0: i32, %arg1: memref<8x200xf32, #tpu.memory_space<vmem>>, %arg2: memref<200x896xf32, #tpu.memory_space<vmem>>, %arg3: memref<8x1xf32, #tpu.memory_space<vmem>>, %arg4: memref<8x1xf32, #tpu.memory_space<vmem>>, %arg5: memref<8x896xf32, #tpu.memory_space<vmem>>) attributes {dimension_semantics = [#tpu.dimension_semantics<arbitrary>], iteration_bounds = array<i64: 1>, scalar_prefetch = 0 : i64, scratch_operands = 0 : i64, tpu.core_type = #tpu.core_type<tc>, window_params = [{pipeline_mode = #tpu.pipeline_mode<synchronous>, transform_indices = @transform_0, window_bounds = array<i64: 8, 200>}, {pipeline_mode = #tpu.pipeline_mode<synchronous>, transform_indices = @transform_1, window_bounds = array<i64: 200, 896>}, {pipeline_mode = #tpu.pipeline_mode<synchronous>, transform_indices = @transform_2, window_bounds = array<i64: 8, 1>}, {pipeline_mode = #tpu.pipeline_mode<synchronous>, transform_indices = @transform_3, window_bounds = array<i64: 8, 1>}, {pipeline_mode = #tpu.pipeline_mode<synchronous>, transform_indices = @transform_4, window_bounds = array<i64: 8, 896>}]} {
    %c0 = arith.constant 0 : index
    %c0_0 = arith.constant 0 : index
    %0 = vector.load %arg1[%c0, %c0_0] : memref<8x200xf32, #tpu.memory_space<vmem>>, vector<8x200xf32>
    %c0_1 = arith.constant 0 : index
    %c0_2 = arith.constant 0 : index
    %1 = vector.load %arg2[%c0_1, %c0_2] : memref<200x896xf32, #tpu.memory_space<vmem>>, vector<200x896xf32>
    %cst = arith.constant dense<0.000000e+00> : vector<8x896xf32>
    %2 = tpu.matmul %0, %1, %cst {dimension_numbers = #tpu.dot_dimension_numbers<[1], [0], [0], [1], [0, 0, 1, 1], [], []>} : vector<8x200xf32>, vector<200x896xf32>, vector<8x896xf32> -> vector<8x896xf32>
    %cst_3 = arith.constant dense<0.000000e+00> : vector<8xf32>
    %3 = vector.multi_reduction <add>, %2, %cst_3 [1] : vector<8x896xf32> to vector<8xf32>
    %4 = vector.shape_cast %3 : vector<8xf32> to vector<8x1xf32>
    %5 = arith.mulf %2, %2 : vector<8x896xf32>
    %cst_4 = arith.constant dense<0.000000e+00> : vector<8xf32>
    %6 = vector.multi_reduction <add>, %5, %cst_4 [1] : vector<8x896xf32> to vector<8xf32>
    %7 = vector.shape_cast %6 : vector<8xf32> to vector<8x1xf32>
    %cst_5 = arith.constant 0.00113378686 : f32
    %8 = vector.broadcast %cst_5 : f32 to vector<8x1xf32>
    %9 = arith.mulf %4, %8 : vector<8x1xf32>
    %cst_6 = arith.constant 0.00113378686 : f32
    %10 = vector.broadcast %cst_6 : f32 to vector<8x1xf32>
    %11 = arith.mulf %7, %10 : vector<8x1xf32>
    %12 = arith.mulf %9, %9 : vector<8x1xf32>
    %13 = arith.subf %11, %12 : vector<8x1xf32>
    %cst_7 = arith.constant 0.000000e+00 : f32
    %14 = vector.broadcast %cst_7 : f32 to vector<8x1xf32>
    %15 = arith.maximumf %13, %14 : vector<8x1xf32>
    %16 = vector.broadcast %9 : vector<8x1xf32> to vector<8x896xf32>
    %17 = arith.subf %2, %16 : vector<8x896xf32>
    %cst_8 = arith.constant 9.99999974E-6 : f32
    %18 = vector.broadcast %cst_8 : f32 to vector<8x1xf32>
    %19 = arith.addf %15, %18 : vector<8x1xf32>
    %20 = math.rsqrt %19 : vector<8x1xf32>
    %21 = vector.broadcast %20 : vector<8x1xf32> to vector<8x896xf32>
    %22 = arith.mulf %17, %21 : vector<8x896xf32>
    %c0_9 = arith.constant 0 : index
    %c0_10 = arith.constant 0 : index
    %23 = vector.load %arg3[%c0_9, %c0_10] : memref<8x1xf32, #tpu.memory_space<vmem>>, vector<8x1xf32>
    %24 = vector.broadcast %23 : vector<8x1xf32> to vector<8x896xf32>
    %25 = arith.mulf %22, %24 : vector<8x896xf32>
    %c0_11 = arith.constant 0 : index
    %c0_12 = arith.constant 0 : index
    %26 = vector.load %arg4[%c0_11, %c0_12] : memref<8x1xf32, #tpu.memory_space<vmem>>, vector<8x1xf32>
    %27 = vector.broadcast %26 : vector<8x1xf32> to vector<8x896xf32>
    %28 = arith.addf %25, %27 : vector<8x896xf32>
    %cst_13 = arith.constant 0.000000e+00 : f32
    %29 = vector.broadcast %cst_13 : f32 to vector<8x896xf32>
    %30 = arith.cmpf oge, %28, %29 : vector<8x896xf32>
    %cst_14 = arith.constant 0.00999999977 : f32
    %31 = vector.broadcast %cst_14 : f32 to vector<8x896xf32>
    %32 = arith.mulf %31, %28 : vector<8x896xf32>
    %33 = arith.select %30, %28, %32 : vector<8x896xi1>, vector<8x896xf32>
    %c0_15 = arith.constant 0 : index
    %c0_16 = arith.constant 0 : index
    %34 = vector.load %arg5[%c0_15, %c0_16] : memref<8x896xf32, #tpu.memory_space<vmem>>, vector<8x896xf32>
    tpu.vector_store %arg5[%c0_15, %c0_16], %33 {strides = array<i32>} : memref<8x896xf32, #tpu.memory_space<vmem>>, vector<8x896xf32>,
    return
  }
  func.func @transform_0(%arg0: i32) -> (i32, i32) {
    %c0_i32 = arith.constant 0 : i32
    %c0_i32_0 = arith.constant 0 : i32
    %c0_i32_1 = arith.constant 0 : i32
    return %c0_i32, %c0_i32_0 : i32, i32
  }
  func.func @transform_1(%arg0: i32) -> (i32, i32) {
    %c0_i32 = arith.constant 0 : i32
    %c0_i32_0 = arith.constant 0 : i32
    %c0_i32_1 = arith.constant 0 : i32
    return %c0_i32, %c0_i32_0 : i32, i32
  }
  func.func @transform_2(%arg0: i32) -> (i32, i32) {
    %c0_i32 = arith.constant 0 : i32
    %c0_i32_0 = arith.constant 0 : i32
    %c0_i32_1 = arith.constant 0 : i32
    return %c0_i32, %c0_i32_0 : i32, i32
  }
  func.func @transform_3(%arg0: i32) -> (i32, i32) {
    %c0_i32 = arith.constant 0 : i32
    %c0_i32_0 = arith.constant 0 : i32
    %c0_i32_1 = arith.constant 0 : i32
    return %c0_i32, %c0_i32_0 : i32, i32
  }
  func.func @transform_4(%arg0: i32) -> (i32, i32) {
    %c0_i32 = arith.constant 0 : i32
    %c0_i32_0 = arith.constant 0 : i32
    %c0_i32_1 = arith.constant 0 : i32
    return %c0_i32, %c0_i32_0 : i32, i32
  }
}

module attributes {stable_mosaic.version = 11 : i64} {
  func.func @tconv_kernel(%arg0: i32, %arg1: memref<8x200xf32, #tpu.memory_space<vmem>>, %arg2: memref<200x4096xf32, #tpu.memory_space<vmem>>, %arg3: memref<8x4096xf32, #tpu.memory_space<vmem>>) attributes {dimension_semantics = [#tpu.dimension_semantics<arbitrary>], iteration_bounds = array<i64: 1>, scalar_prefetch = 0 : i64, scratch_operands = 0 : i64, tpu.core_type = #tpu.core_type<tc>, window_params = [{pipeline_mode = #tpu.pipeline_mode<synchronous>, transform_indices = @transform_0, window_bounds = array<i64: 8, 200>}, {pipeline_mode = #tpu.pipeline_mode<synchronous>, transform_indices = @transform_1, window_bounds = array<i64: 200, 4096>}, {pipeline_mode = #tpu.pipeline_mode<synchronous>, transform_indices = @transform_2, window_bounds = array<i64: 8, 4096>}]} {
    %c0 = arith.constant 0 : index
    %c0_0 = arith.constant 0 : index
    %0 = vector.load %arg1[%c0, %c0_0] : memref<8x200xf32, #tpu.memory_space<vmem>>, vector<8x200xf32>
    %c0_1 = arith.constant 0 : index
    %c0_2 = arith.constant 0 : index
    %1 = vector.load %arg2[%c0_1, %c0_2] : memref<200x4096xf32, #tpu.memory_space<vmem>>, vector<200x4096xf32>
    %cst = arith.constant dense<0.000000e+00> : vector<8x4096xf32>
    %2 = tpu.matmul %0, %1, %cst {dimension_numbers = #tpu.dot_dimension_numbers<[1], [0], [0], [1], [0, 0, 1, 1], [], []>} : vector<8x200xf32>, vector<200x4096xf32>, vector<8x4096xf32> -> vector<8x4096xf32>
    %c0_3 = arith.constant 0 : index
    %c0_4 = arith.constant 0 : index
    %3 = vector.load %arg3[%c0_3, %c0_4] : memref<8x4096xf32, #tpu.memory_space<vmem>>, vector<8x4096xf32>
    tpu.vector_store %arg3[%c0_3, %c0_4], %2 {strides = array<i32>} : memref<8x4096xf32, #tpu.memory_space<vmem>>, vector<8x4096xf32>,
    return
  }
  func.func @transform_0(%arg0: i32) -> (i32, i32) {
    %c0_i32 = arith.constant 0 : i32
    %c0_i32_0 = arith.constant 0 : i32
    %c0_i32_1 = arith.constant 0 : i32
    return %c0_i32, %c0_i32_0 : i32, i32
  }
  func.func @transform_1(%arg0: i32) -> (i32, i32) {
    %c0_i32 = arith.constant 0 : i32
    %c0_i32_0 = arith.constant 0 : i32
    %c0_i32_1 = arith.constant 0 : i32
    return %c0_i32, %c0_i32_0 : i32, i32
  }
  func.func @transform_2(%arg0: i32) -> (i32, i32) {
    %c0_i32 = arith.constant 0 : i32
    %c0_i32_0 = arith.constant 0 : i32
    %c0_i32_1 = arith.constant 0 : i32
    return %c0_i32, %c0_i32_0 : i32, i32
  }
}

</mosaic_0001>

<llo_original>
// kernel: conv45_decoder_forward.4
$region0: #{conv45_decoder_forward.4}
  #allocation0 [shape = 'u32[]', space=smem, size = 0x4, offset = 0x4, fixed_abs, tag = 'smem constant byte address 0x4 - core index']
  #allocation1 [shape = 'u32[144,128]{1,0:T(1,128)}', space=vmem, size = 0x12000, scoped, tag = 'internal scratch']
  %s0 = inlined_call_operand.hbm [shape: f32[2,32], index: 0, kind: input, shape index: {}]
  %s1 = inlined_call_operand.hbm [shape: f32[32,1024], index: 1, kind: input, shape index: {}]
  %s2 = inlined_call_operand.hbm [shape: f32[1,1024], index: 2, kind: input, shape index: {}]
  %s3 = inlined_call_operand.hbm [shape: f32[1024,128], index: 3, kind: input, shape index: {}]
  %s4 = inlined_call_operand.hbm [shape: f32[1,128], index: 4, kind: input, shape index: {}]
  %s5 = inlined_call_operand.vmem [shape: f32[2,128], index: 5, kind: output, shape index: {}]
  %s6 = sld [smem:[#allocation0]]
  $region50: #{conv45_decoder_forward.4} parent=0
    _
  %s8 = ssub.s32 1, %s6
  %s9 = scalar_select 0, %s8, %s6
  $region1: #{conv45_decoder_forward.4} parent=0
    #allocation2 [shape = 'u8[1024]{0}', space=vmem, size = 0x400, scoped, tag = 'input window, operand 0, single buffered']
    #allocation3 [shape = 's32[1]{0}', space=sflag, size = 0x4, scoped, tag = 'scoped memory for conv45_decoder_forward.4']
    #allocation4 [shape = 'u8[131072]{0}', space=vmem, size = 0x20000, scoped, tag = 'input window, operand 1, single buffered']
    #allocation5 [shape = 's32[1]{0}', space=sflag, size = 0x4, scoped, tag = 'scoped memory for conv45_decoder_forward.4']
    #allocation6 [shape = 'u8[4096]{0}', space=vmem, size = 0x1000, scoped, tag = 'input window, operand 2, single buffered']
    #allocation7 [shape = 'u8[524288]{0}', space=vmem, size = 0x80000, scoped, tag = 'input window, operand 3, single buffered']
    #allocation8 [shape = 's32[1]{0}', space=sflag, size = 0x4, scoped, tag = 'scoped memory for conv45_decoder_forward.4']
    #allocation9 [shape = 'u8[512]{0}', space=vmem, size = 0x400, scoped, tag = 'input window, operand 4, single buffered']
    %10 = vsyncpa [#allocation3], 0
    %11 = vsyncpa [#allocation5], 0
    %12 = vsyncpa [#allocation8], 0
    // Predicated region
    $region2: #{conv45_decoder_forward.4} parent=1 // pred_check
      _
    $region3: #{conv45_decoder_forward.4} parent=1 // pred_check_branch
      %14 = sbr.rel (0) target = $region5
    $region4: #{conv45_decoder_forward.4} parent=1 // pred_region
      %s16 = ssub.s32 32, 32
      %17 = vsyncadd [#allocation3], %s16
      %s19 = sshll.u32 [#allocation2], 4
      %s20 = int_to_ptr.vmem [resolvable:$true] %s19
      %22 = dma.hbm_to_vmem [thread:$0]  %s0, 32, %s20, [#allocation3]
    $region5: #{conv45_decoder_forward.4} parent=1 // pred_fallthru
      _
    // Predicated region
    $region6: #{conv45_decoder_forward.4} parent=1 // pred_check
      _
    $region7: #{conv45_decoder_forward.4} parent=1 // pred_check_branch
      %24 = sbr.rel (0) target = $region9
    $region8: #{conv45_decoder_forward.4} parent=1 // pred_region
      %s26 = ssub.s32 4096, 4096
      %27 = vsyncadd [#allocation5], %s26
      %s28 = sshll.u32 [#allocation4], 4
      %s29 = int_to_ptr.vmem [resolvable:$true] %s28
      %34 = dma.hbm_to_vmem [thread:$0]  %s1, 4096, %s29, [#allocation5], 1024, 1024, 64
    $region9: #{conv45_decoder_forward.4} parent=1 // pred_fallthru
      _
    // Predicated region
    $region10: #{conv45_decoder_forward.4} parent=1 // pred_check
      _
    $region11: #{conv45_decoder_forward.4} parent=1 // pred_check_branch
      %36 = sbr.rel (0) target = $region13
    $region12: #{conv45_decoder_forward.4} parent=1 // pred_region
      %s38 = ssub.s32 128, 128
      %39 = vsyncadd [#allocation5], %s38
      %s41 = sshll.u32 [#allocation6], 4
      %s42 = int_to_ptr.vmem [resolvable:$true] %s41
      %44 = dma.hbm_to_vmem [thread:$0]  %s2, 128, %s42, [#allocation5]
    $region13: #{conv45_decoder_forward.4} parent=1 // pred_fallthru
      _
    // Predicated region
    $region14: #{conv45_decoder_forward.4} parent=1 // pred_check
      _
    $region15: #{conv45_decoder_forward.4} parent=1 // pred_check_branch
      %46 = sbr.rel (0) target = $region17
    $region16: #{conv45_decoder_forward.4} parent=1 // pred_region
      %s48 = ssub.s32 16384, 16384
      %49 = vsyncadd [#allocation8], %s48
      %s50 = sshll.u32 [#allocation7], 4
      %s51 = int_to_ptr.vmem [resolvable:$true] %s50
      %56 = dma.hbm_to_vmem [thread:$0]  %s3, 16384, %s51, [#allocation8], 128, 128, 8
    $region17: #{conv45_decoder_forward.4} parent=1 // pred_fallthru
      _
    // Predicated region
    $region18: #{conv45_decoder_forward.4} parent=1 // pred_check
      _
    $region19: #{conv45_decoder_forward.4} parent=1 // pred_check_branch
      %58 = sbr.rel (0) target = $region21
    $region20: #{conv45_decoder_forward.4} parent=1 // pred_region
      %s60 = ssub.s32 16, 16
      %61 = vsyncadd [#allocation8], %s60
      %s63 = sshll.u32 [#allocation9], 4
      %s64 = int_to_ptr.vmem [resolvable:$true] %s63
      %66 = dma.hbm_to_vmem [thread:$0]  %s4, 16, %s64, [#allocation8]
    $region21: #{conv45_decoder_forward.4} parent=1 // pred_fallthru
      _
    // Predicated region
    $region22: #{conv45_decoder_forward.4} parent=1 // pred_check
      _
    $region23: #{conv45_decoder_forward.4} parent=1 // pred_check_branch
      %68 = sbr.rel (0) target = $region25
    $region24: #{conv45_decoder_forward.4} parent=1 // pred_region
      %69 = dma.done [#allocation3], 32
    $region25: #{conv45_decoder_forward.4} parent=1 // pred_fallthru
      _
    // Predicated region
    $region26: #{conv45_decoder_forward.4} parent=1 // pred_check
      _
    $region27: #{conv45_decoder_forward.4} parent=1 // pred_check_branch
      %71 = sbr.rel (0) target = $region29
    $region28: #{conv45_decoder_forward.4} parent=1 // pred_region
      %72 = dma.done [#allocation5], 4096
    $region29: #{conv45_decoder_forward.4} parent=1 // pred_fallthru
      _
    // Predicated region
    $region30: #{conv45_decoder_forward.4} parent=1 // pred_check
      _
    $region31: #{conv45_decoder_forward.4} parent=1 // pred_check_branch
      %74 = sbr.rel (0) target = $region33
    $region32: #{conv45_decoder_forward.4} parent=1 // pred_region
      %75 = dma.done [#allocation5], 128
    $region33: #{conv45_decoder_forward.4} parent=1 // pred_fallthru
      _
    // Predicated region
    $region34: #{conv45_decoder_forward.4} parent=1 // pred_check
      _
    $region35: #{conv45_decoder_forward.4} parent=1 // pred_check_branch
      %77 = sbr.rel (0) target = $region37
    $region36: #{conv45_decoder_forward.4} parent=1 // pred_region
      %78 = dma.done [#allocation8], 16384
    $region37: #{conv45_decoder_forward.4} parent=1 // pred_fallthru
      _
    // Predicated region
    $region38: #{conv45_decoder_forward.4} parent=1 // pred_check
      _
    $region39: #{conv45_decoder_forward.4} parent=1 // pred_check_branch
      %80 = sbr.rel (0) target = $region41
    $region40: #{conv45_decoder_forward.4} parent=1 // pred_region
      %81 = dma.done [#allocation8], 16
    $region41: #{conv45_decoder_forward.4} parent=1 // pred_fallthru
      _
    %v82 = vld [vmem:[#allocation2] sm:$0x3]
    %v83 = vld [vmem:[#allocation4] sm:$0xff]
    %v84 = vld [vmem:[#allocation4 + $0x8] sm:$0xff]
    %v85 = vld [vmem:[#allocation4 + $0x10] sm:$0xff]
    %v86 = vld [vmem:[#allocation4 + $0x18] sm:$0xff]
    %v87 = vld [vmem:[#allocation4 + $0x20] sm:$0xff]
    %v88 = vld [vmem:[#allocation4 + $0x28] sm:$0xff]
    %v89 = vld [vmem:[#allocation4 + $0x30] sm:$0xff]
    %v90 = vld [vmem:[#allocation4 + $0x38] sm:$0xff]
    %v91 = vld [vmem:[#allocation4 + $0x40] sm:$0xff]
    %v92 = vld [vmem:[#allocation4 + $0x48] sm:$0xff]
    %v93 = vld [vmem:[#allocation4 + $0x50] sm:$0xff]
    %v94 = vld [vmem:[#allocation4 + $0x58] sm:$0xff]
    %v95 = vld [vmem:[#allocation4 + $0x60] sm:$0xff]
    %v96 = vld [vmem:[#allocation4 + $0x68] sm:$0xff]
    %v97 = vld [vmem:[#allocation4 + $0x70] sm:$0xff]
    %v98 = vld [vmem:[#allocation4 + $0x78] sm:$0xff]
    %v99 = vld [vmem:[#allocation4 + $0x80] sm:$0xff]
    %v100 = vld [vmem:[#allocation4 + $0x88] sm:$0xff]
    %v101 = vld [vmem:[#allocation4 + $0x90] sm:$0xff]
    %v102 = vld [vmem:[#allocation4 + $0x98] sm:$0xff]
    %v103 = vld [vmem:[#allocation4 + $0xa0] sm:$0xff]
    %v104 = vld [vmem:[#allocation4 + $0xa8] sm:$0xff]
    %v105 = vld [vmem:[#allocation4 + $0xb0] sm:$0xff]
    %v106 = vld [vmem:[#allocation4 + $0xb8] sm:$0xff]
    %v107 = vld [vmem:[#allocation4 + $0xc0] sm:$0xff]
    %v108 = vld [vmem:[#allocation4 + $0xc8] sm:$0xff]
    %v109 = vld [vmem:[#allocation4 + $0xd0] sm:$0xff]
    %v110 = vld [vmem:[#allocation4 + $0xd8] sm:$0xff]
    %v111 = vld [vmem:[#allocation4 + $0xe0] sm:$0xff]
    %v112 = vld [vmem:[#allocation4 + $0xe8] sm:$0xff]
    %v113 = vld [vmem:[#allocation4 + $0xf0] sm:$0xff]
    %v114 = vld [vmem:[#allocation4 + $0xf8] sm:$0xff]
    %v115 = vld [vmem:[#allocation6] sm:$0xff]
    %v117 = vlaneseq
    %v118 = vshrl.u32 %v117, 7
    %v119 = vsub.s32 0, %v118
    %v120 = vrot.slane %v115, %v119
    %v121 = vlaneseq
    %v122 = vshrl.u32 %v121, 7
    %v123 = vsub.s32 1, %v122
    %v124 = vrot.slane %v115, %v123
    %v125 = vlaneseq
    %v126 = vshrl.u32 %v125, 7
    %v127 = vsub.s32 2, %v126
    %v128 = vrot.slane %v115, %v127
    %v129 = vlaneseq
    %v130 = vshrl.u32 %v129, 7
    %v131 = vsub.s32 3, %v130
    %v132 = vrot.slane %v115, %v131
    %v133 = vlaneseq
    %v134 = vshrl.u32 %v133, 7
    %v135 = vsub.s32 4, %v134
    %v136 = vrot.slane %v115, %v135
    %v137 = vlaneseq
    %v138 = vshrl.u32 %v137, 7
    %v139 = vsub.s32 5, %v138
    %v140 = vrot.slane %v115, %v139
    %v141 = vlaneseq
    %v142 = vshrl.u32 %v141, 7
    %v143 = vsub.s32 6, %v142
    %v144 = vrot.slane %v115, %v143
    %v145 = vlaneseq
    %v146 = vshrl.u32 %v145, 7
    %v147 = vsub.s32 7, %v146
    %v148 = vrot.slane %v115, %v147
    %vm157 = vcmask 261120
    %v159 = vsel %vm157, %v82, 0
    %161 = vmatprep.subr.mxu0 %v84
    %162 = vmatpush1.msra.mxu0 %v83
    %163 = vmatprep.subr.mxu0 %v92
    %164 = vmatpush1.msra.mxu0 %v91
    %165 = vmatprep.subr.mxu0 %v100
    %166 = vmatpush1.msra.mxu0 %v99
    %167 = vmatprep.subr.mxu0 %v108
    %168 = vmatpush1.msra.mxu0 %v107
    %169 = vmatprep.subr.mxu0 0.0
    %170 = vmatpush1.msra.mxu0 0.0
    %171 = vmatprep.subr.mxu0 0.0
    %172 = vmatpush1.msra.mxu0 0.0
    %173 = vmatprep.subr.mxu0 0.0
    %174 = vmatpush1.msra.mxu0 0.0
    %175 = vmatprep.subr.mxu0 0.0
    %176 = vmatpush1.msra.mxu0 0.0
    %177 = vmatprep.subr.mxu0 0.0
    %178 = vmatpush1.msra.mxu0 0.0
    %179 = vmatprep.subr.mxu0 0.0
    %180 = vmatpush1.msra.mxu0 0.0
    %181 = vmatprep.subr.mxu0 0.0
    %182 = vmatpush1.msra.mxu0 0.0
    %183 = vmatprep.subr.mxu0 0.0
    %184 = vmatpush1.msra.mxu0 0.0
    %185 = vmatprep.subr.mxu0 0.0
    %186 = vmatpush1.msra.mxu0 0.0
    %187 = vmatprep.subr.mxu0 0.0
    %188 = vmatpush1.msra.mxu0 0.0
    %189 = vmatprep.subr.mxu0 0.0
    %190 = vmatpush1.msra.mxu0 0.0
    %191 = vmatprep.subr.mxu0 0.0
    %192 = vmatpush1.msra.mxu0 0.0
    %193 = vmatprep.subr.mxu0 0.0
    %194 = vmatpush1.msra.mxu0 0.0
    %195 = vmatprep.subr.mxu0 0.0
    %196 = vmatpush1.msra.mxu0 0.0
    %197 = vmatprep.subr.mxu0 0.0
    %198 = vmatpush1.msra.mxu0 0.0
    %199 = vmatprep.subr.mxu0 0.0
    %200 = vmatpush1.msra.mxu0 0.0
    %201 = vmatprep.subr.mxu0 0.0
    %202 = vmatpush1.msra.mxu0 0.0
    %203 = vmatprep.subr.mxu0 0.0
    %204 = vmatpush1.msra.mxu0 0.0
    %205 = vmatprep.subr.mxu0 0.0
    %206 = vmatpush1.msra.mxu0 0.0
    %207 = vmatprep.subr.mxu0 0.0
    %208 = vmatpush1.msra.mxu0 0.0
    %209 = vmatprep.subr.mxu0 0.0
    %210 = vmatpush1.msra.mxu0 0.0
    %211 = vmatprep.subr.mxu0 0.0
    %212 = vmatpush1.msra.mxu0 0.0
    %213 = vmatprep.subr.mxu0 0.0
    %214 = vmatpush1.msra.mxu0 0.0
    %215 = vmatprep.subr.mxu0 0.0
    %216 = vmatpush1.msra.mxu0 0.0
    %217 = vmatprep.subr.mxu0 0.0
    %218 = vmatpush1.msra.mxu0 0.0
    %219 = vmatprep.subr.mxu0 0.0
    %220 = vmatpush1.msra.mxu0 0.0
    %221 = vmatprep.subr.mxu0 0.0
    %222 = vmatpush1.msra.mxu0 0.0
    %223 = vmatprep.subr.mxu0 0.0
    %224 = vmatpush1.msra.mxu0 0.0
    %225 = vmatprep.mubr.f32.mxu0 0.0
    %226 = vmatmul.mubr.f32.gmra.mrb[0].mxu0 %v159
    %v227 = vpop.f32.mrb[0].mxu0
    %v228 = vadd.f32 %v120, %v227
    %v229 = vpop.f32.mrb[0].mxu0
    %v230 = vadd.f32 %v124, %v229
    %231 = vdwg.mxu0
    %232 = vmatprep.subr.mxu0 %v86
    %233 = vmatpush1.msra.mxu0 %v85
    %234 = vmatprep.subr.mxu0 %v94
    %235 = vmatpush1.msra.mxu0 %v93
    %236 = vmatprep.subr.mxu0 %v102
    %237 = vmatpush1.msra.mxu0 %v101
    %238 = vmatprep.subr.mxu0 %v110
    %239 = vmatpush1.msra.mxu0 %v109
    %240 = vmatprep.subr.mxu0 0.0
    %241 = vmatpush1.msra.mxu0 0.0
    %242 = vmatprep.subr.mxu0 0.0
    %243 = vmatpush1.msra.mxu0 0.0
    %244 = vmatprep.subr.mxu0 0.0
    %245 = vmatpush1.msra.mxu0 0.0
    %246 = vmatprep.subr.mxu0 0.0
    %247 = vmatpush1.msra.mxu0 0.0
    %248 = vmatprep.subr.mxu0 0.0
    %249 = vmatpush1.msra.mxu0 0.0
    %250 = vmatprep.subr.mxu0 0.0
    %251 = vmatpush1.msra.mxu0 0.0
    %252 = vmatprep.subr.mxu0 0.0
    %253 = vmatpush1.msra.mxu0 0.0
    %254 = vmatprep.subr.mxu0 0.0
    %255 = vmatpush1.msra.mxu0 0.0
    %256 = vmatprep.subr.mxu0 0.0
    %257 = vmatpush1.msra.mxu0 0.0
    %258 = vmatprep.subr.mxu0 0.0
    %259 = vmatpush1.msra.mxu0 0.0
    %260 = vmatprep.subr.mxu0 0.0
    %261 = vmatpush1.msra.mxu0 0.0
    %262 = vmatprep.subr.mxu0 0.0
    %263 = vmatpush1.msra.mxu0 0.0
    %264 = vmatprep.subr.mxu0 0.0
    %265 = vmatpush1.msra.mxu0 0.0
    %266 = vmatprep.subr.mxu0 0.0
    %267 = vmatpush1.msra.mxu0 0.0
    %268 = vmatprep.subr.mxu0 0.0
    %269 = vmatpush1.msra.mxu0 0.0
    %270 = vmatprep.subr.mxu0 0.0
    %271 = vmatpush1.msra.mxu0 0.0
    %272 = vmatprep.subr.mxu0 0.0
    %273 = vmatpush1.msra.mxu0 0.0
    %274 = vmatprep.subr.mxu0 0.0
    %275 = vmatpush1.msra.mxu0 0.0
    %276 = vmatprep.subr.mxu0 0.0
    %277 = vmatpush1.msra.mxu0 0.0
    %278 = vmatprep.subr.mxu0 0.0
    %279 = vmatpush1.msra.mxu0 0.0
    %280 = vmatprep.subr.mxu0 0.0
    %281 = vmatpush1.msra.mxu0 0.0
    %282 = vmatprep.subr.mxu0 0.0
    %283 = vmatpush1.msra.mxu0 0.0
    %284 = vmatprep.subr.mxu0 0.0
    %285 = vmatpush1.msra.mxu0 0.0
    %286 = vmatprep.subr.mxu0 0.0
    %287 = vmatpush1.msra.mxu0 0.0
    %288 = vmatprep.subr.mxu0 0.0
    %289 = vmatpush1.msra.mxu0 0.0
    %290 = vmatprep.subr.mxu0 0.0
    %291 = vmatpush1.msra.mxu0 0.0
    %292 = vmatprep.subr.mxu0 0.0
    %293 = vmatpush1.msra.mxu0 0.0
    %294 = vmatprep.subr.mxu0 0.0
    %295 = vmatpush1.msra.mxu0 0.0
    %296 = vmatprep.mubr.f32.mxu0 0.0
    %297 = vmatmul.mubr.f32.gmra.mrb[0].mxu0 %v159
    %v298 = vpop.f32.mrb[0].mxu0
    %v299 = vadd.f32 %v128, %v298
    %v300 = vpop.f32.mrb[0].mxu0
    %v301 = vadd.f32 %v132, %v300
    %302 = vdwg.mxu0
    %303 = vmatprep.subr.mxu0 %v88
    %304 = vmatpush1.msra.mxu0 %v87
    %305 = vmatprep.subr.mxu0 %v96
    %306 = vmatpush1.msra.mxu0 %v95
    %307 = vmatprep.subr.mxu0 %v104
    %308 = vmatpush1.msra.mxu0 %v103
    %309 = vmatprep.subr.mxu0 %v112
    %310 = vmatpush1.msra.mxu0 %v111
    %311 = vmatprep.subr.mxu0 0.0
    %312 = vmatpush1.msra.mxu0 0.0
    %313 = vmatprep.subr.mxu0 0.0
    %314 = vmatpush1.msra.mxu0 0.0
    %315 = vmatprep.subr.mxu0 0.0
    %316 = vmatpush1.msra.mxu0 0.0
    %317 = vmatprep.subr.mxu0 0.0
    %318 = vmatpush1.msra.mxu0 0.0
    %319 = vmatprep.subr.mxu0 0.0
    %320 = vmatpush1.msra.mxu0 0.0
    %321 = vmatprep.subr.mxu0 0.0
    %322 = vmatpush1.msra.mxu0 0.0
    %323 = vmatprep.subr.mxu0 0.0
    %324 = vmatpush1.msra.mxu0 0.0
    %325 = vmatprep.subr.mxu0 0.0
    %326 = vmatpush1.msra.mxu0 0.0
    %327 = vmatprep.subr.mxu0 0.0
    %328 = vmatpush1.msra.mxu0 0.0
    %329 = vmatprep.subr.mxu0 0.0
    %330 = vmatpush1.msra.mxu0 0.0
    %331 = vmatprep.subr.mxu0 0.0
    %332 = vmatpush1.msra.mxu0 0.0
    %333 = vmatprep.subr.mxu0 0.0
    %334 = vmatpush1.msra.mxu0 0.0
    %335 = vmatprep.subr.mxu0 0.0
    %336 = vmatpush1.msra.mxu0 0.0
    %337 = vmatprep.subr.mxu0 0.0
    %338 = vmatpush1.msra.mxu0 0.0
    %339 = vmatprep.subr.mxu0 0.0
    %340 = vmatpush1.msra.mxu0 0.0
    %341 = vmatprep.subr.mxu0 0.0
    %342 = vmatpush1.msra.mxu0 0.0
    %343 = vmatprep.subr.mxu0 0.0
    %344 = vmatpush1.msra.mxu0 0.0
    %345 = vmatprep.subr.mxu0 0.0
    %346 = vmatpush1.msra.mxu0 0.0
    %347 = vmatprep.subr.mxu0 0.0
    %348 = vmatpush1.msra.mxu0 0.0
    %349 = vmatprep.subr.mxu0 0.0
    %350 = vmatpush1.msra.mxu0 0.0
    %351 = vmatprep.subr.mxu0 0.0
    %352 = vmatpush1.msra.mxu0 0.0
    %353 = vmatprep.subr.mxu0 0.0
    %354 = vmatpush1.msra.mxu0 0.0
    %355 = vmatprep.subr.mxu0 0.0
    %356 = vmatpush1.msra.mxu0 0.0
    %357 = vmatprep.subr.mxu0 0.0
    %358 = vmatpush1.msra.mxu0 0.0
    %359 = vmatprep.subr.mxu0 0.0
    %360 = vmatpush1.msra.mxu0 0.0
    %361 = vmatprep.subr.mxu0 0.0
    %362 = vmatpush1.msra.mxu0 0.0
    %363 = vmatprep.subr.mxu0 0.0
    %364 = vmatpush1.msra.mxu0 0.0
    %365 = vmatprep.subr.mxu0 0.0
    %366 = vmatpush1.msra.mxu0 0.0
    %367 = vmatprep.mubr.f32.mxu0 0.0
    %368 = vmatmul.mubr.f32.gmra.mrb[0].mxu0 %v159
    %v369 = vpop.f32.mrb[0].mxu0
    %v370 = vadd.f32 %v136, %v369
    %v371 = vpop.f32.mrb[0].mxu0
    %v372 = vadd.f32 %v140, %v371
    %373 = vdwg.mxu0
    %374 = vmatprep.subr.mxu0 %v90
    %375 = vmatpush1.msra.mxu0 %v89
    %376 = vmatprep.subr.mxu0 %v98
    %377 = vmatpush1.msra.mxu0 %v97
    %378 = vmatprep.subr.mxu0 %v106
    %379 = vmatpush1.msra.mxu0 %v105
    %380 = vmatprep.subr.mxu0 %v114
    %381 = vmatpush1.msra.mxu0 %v113
    %382 = vmatprep.subr.mxu0 0.0
    %383 = vmatpush1.msra.mxu0 0.0
    %384 = vmatprep.subr.mxu0 0.0
    %385 = vmatpush1.msra.mxu0 0.0
    %386 = vmatprep.subr.mxu0 0.0
    %387 = vmatpush1.msra.mxu0 0.0
    %388 = vmatprep.subr.mxu0 0.0
    %389 = vmatpush1.msra.mxu0 0.0
    %390 = vmatprep.subr.mxu0 0.0
    %391 = vmatpush1.msra.mxu0 0.0
    %392 = vmatprep.subr.mxu0 0.0
    %393 = vmatpush1.msra.mxu0 0.0
    %394 = vmatprep.subr.mxu0 0.0
    %395 = vmatpush1.msra.mxu0 0.0
    %396 = vmatprep.subr.mxu0 0.0
    %397 = vmatpush1.msra.mxu0 0.0
    %398 = vmatprep.subr.mxu0 0.0
    %399 = vmatpush1.msra.mxu0 0.0
    %400 = vmatprep.subr.mxu0 0.0
    %401 = vmatpush1.msra.mxu0 0.0
    %402 = vmatprep.subr.mxu0 0.0
    %403 = vmatpush1.msra.mxu0 0.0
    %404 = vmatprep.subr.mxu0 0.0
    %405 = vmatpush1.msra.mxu0 0.0
    %406 = vmatprep.subr.mxu0 0.0
    %407 = vmatpush1.msra.mxu0 0.0
    %408 = vmatprep.subr.mxu0 0.0
    %409 = vmatpush1.msra.mxu0 0.0
    %410 = vmatprep.subr.mxu0 0.0
    %411 = vmatpush1.msra.mxu0 0.0
    %412 = vmatprep.subr.mxu0 0.0
    %413 = vmatpush1.msra.mxu0 0.0
    %414 = vmatprep.subr.mxu0 0.0
    %415 = vmatpush1.msra.mxu0 0.0
    %416 = vmatprep.subr.mxu0 0.0
    %417 = vmatpush1.msra.mxu0 0.0
    %418 = vmatprep.subr.mxu0 0.0
    %419 = vmatpush1.msra.mxu0 0.0
    %420 = vmatprep.subr.mxu0 0.0
    %421 = vmatpush1.msra.mxu0 0.0
    %422 = vmatprep.subr.mxu0 0.0
    %423 = vmatpush1.msra.mxu0 0.0
    %424 = vmatprep.subr.mxu0 0.0
    %425 = vmatpush1.msra.mxu0 0.0
    %426 = vmatprep.subr.mxu0 0.0
    %427 = vmatpush1.msra.mxu0 0.0
    %428 = vmatprep.subr.mxu0 0.0
    %429 = vmatpush1.msra.mxu0 0.0
    %430 = vmatprep.subr.mxu0 0.0
    %431 = vmatpush1.msra.mxu0 0.0
    %432 = vmatprep.subr.mxu0 0.0
    %433 = vmatpush1.msra.mxu0 0.0
    %434 = vmatprep.subr.mxu0 0.0
    %435 = vmatpush1.msra.mxu0 0.0
    %436 = vmatprep.subr.mxu0 0.0
    %437 = vmatpush1.msra.mxu0 0.0
    %438 = vmatprep.mubr.f32.mxu0 0.0
    %439 = vmatmul.mubr.f32.gmra.mrb[0].mxu0 %v159
    %v440 = vpop.f32.mrb[0].mxu0
    %v441 = vadd.f32 %v144, %v440
    %v442 = vpop.f32.mrb[0].mxu0
    %v443 = vadd.f32 %v148, %v442
    %444 = vdwg.mxu0
    %vm445 = vcmp.ge.f32.partialorder %v228, 0.0
    %vm446 = vcmp.ge.f32.partialorder %v230, 0.0
    %vm447 = vcmp.ge.f32.partialorder %v299, 0.0
    %vm448 = vcmp.ge.f32.partialorder %v301, 0.0
    %vm449 = vcmp.ge.f32.partialorder %v370, 0.0
    %vm450 = vcmp.ge.f32.partialorder %v372, 0.0
    %vm451 = vcmp.ge.f32.partialorder %v441, 0.0
    %vm452 = vcmp.ge.f32.partialorder %v443, 0.0
    %v453 = vmul.f32 %v228, 0.1
    %v454 = vmul.f32 %v230, 0.1
    %v455 = vmul.f32 %v299, 0.1
    %v456 = vmul.f32 %v301, 0.1
    %v457 = vmul.f32 %v370, 0.1
    %v458 = vmul.f32 %v372, 0.1
    %v459 = vmul.f32 %v441, 0.1
    %v460 = vmul.f32 %v443, 0.1
    %v461 = vsel %vm445, %v228, %v453
    %v462 = vsel %vm446, %v230, %v454
    %v463 = vsel %vm447, %v299, %v455
    %v464 = vsel %vm448, %v301, %v456
    %v465 = vsel %vm449, %v370, %v457
    %v466 = vsel %vm450, %v372, %v458
    %v467 = vsel %vm451, %v441, %v459
    %v468 = vsel %vm452, %v443, %v460
    %v469 = vld [vmem:[#allocation7] sm:$0xff]
    %v470 = vld [vmem:[#allocation7 + $0x8] sm:$0xff]
    %v471 = vld [vmem:[#allocation7 + $0x10] sm:$0xff]
    %v472 = vld [vmem:[#allocation7 + $0x18] sm:$0xff]
    %v473 = vld [vmem:[#allocation7 + $0x20] sm:$0xff]
    %v474 = vld [vmem:[#allocation7 + $0x28] sm:$0xff]
    %v475 = vld [vmem:[#allocation7 + $0x30] sm:$0xff]
    %v476 = vld [vmem:[#allocation7 + $0x38] sm:$0xff]
    %v477 = vld [vmem:[#allocation7 + $0x40] sm:$0xff]
    %v478 = vld [vmem:[#allocation7 + $0x48] sm:$0xff]
    %v479 = vld [vmem:[#allocation7 + $0x50] sm:$0xff]
    %v480 = vld [vmem:[#allocation7 + $0x58] sm:$0xff]
    %v481 = vld [vmem:[#allocation7 + $0x60] sm:$0xff]
    %v482 = vld [vmem:[#allocation7 + $0x68] sm:$0xff]
    %v483 = vld [vmem:[#allocation7 + $0x70] sm:$0xff]
    %v484 = vld [vmem:[#allocation7 + $0x78] sm:$0xff]
    %v485 = vld [vmem:[#allocation7 + $0x80] sm:$0xff]
    %v486 = vld [vmem:[#allocation7 + $0x88] sm:$0xff]
    %v487 = vld [vmem:[#allocation7 + $0x90] sm:$0xff]
    %v488 = vld [vmem:[#allocation7 + $0x98] sm:$0xff]
    %v489 = vld [vmem:[#allocation7 + $0xa0] sm:$0xff]
    %v490 = vld [vmem:[#allocation7 + $0xa8] sm:$0xff]
    %v491 = vld [vmem:[#allocation7 + $0xb0] sm:$0xff]
    %v492 = vld [vmem:[#allocation7 + $0xb8] sm:$0xff]
    %v493 = vld [vmem:[#allocation7 + $0xc0] sm:$0xff]
    %v494 = vld [vmem:[#allocation7 + $0xc8] sm:$0xff]
    %v495 = vld [vmem:[#allocation7 + $0xd0] sm:$0xff]
    %v496 = vld [vmem:[#allocation7 + $0xd8] sm:$0xff]
    %v497 = vld [vmem:[#allocation7 + $0xe0] sm:$0xff]
    %v498 = vld [vmem:[#allocation7 + $0xe8] sm:$0xff]
    %v499 = vld [vmem:[#allocation7 + $0xf0] sm:$0xff]
    %v500 = vld [vmem:[#allocation7 + $0xf8] sm:$0xff]
    %v501 = vld [vmem:[#allocation7 + $0x100] sm:$0xff]
    %v502 = vld [vmem:[#allocation7 + $0x108] sm:$0xff]
    %v503 = vld [vmem:[#allocation7 + $0x110] sm:$0xff]
    %v504 = vld [vmem:[#allocation7 + $0x118] sm:$0xff]
    %v505 = vld [vmem:[#allocation7 + $0x120] sm:$0xff]
    %v506 = vld [vmem:[#allocation7 + $0x128] sm:$0xff]
    %v507 = vld [vmem:[#allocation7 + $0x130] sm:$0xff]
    %v508 = vld [vmem:[#allocation7 + $0x138] sm:$0xff]
    %v509 = vld [vmem:[#allocation7 + $0x140] sm:$0xff]
    %v510 = vld [vmem:[#allocation7 + $0x148] sm:$0xff]
    %v511 = vld [vmem:[#allocation7 + $0x150] sm:$0xff]
    %v512 = vld [vmem:[#allocation7 + $0x158] sm:$0xff]
    %v513 = vld [vmem:[#allocation7 + $0x160] sm:$0xff]
    %v514 = vld [vmem:[#allocation7 + $0x168] sm:$0xff]
    %v515 = vld [vmem:[#allocation7 + $0x170] sm:$0xff]
    %v516 = vld [vmem:[#allocation7 + $0x178] sm:$0xff]
    %v517 = vld [vmem:[#allocation7 + $0x180] sm:$0xff]
    %v518 = vld [vmem:[#allocation7 + $0x188] sm:$0xff]
    %v519 = vld [vmem:[#allocation7 + $0x190] sm:$0xff]
    %v520 = vld [vmem:[#allocation7 + $0x198] sm:$0xff]
    %v521 = vld [vmem:[#allocation7 + $0x1a0] sm:$0xff]
    %v522 = vld [vmem:[#allocation7 + $0x1a8] sm:$0xff]
    %v523 = vld [vmem:[#allocation7 + $0x1b0] sm:$0xff]
    %v524 = vld [vmem:[#allocation7 + $0x1b8] sm:$0xff]
    %v525 = vld [vmem:[#allocation7 + $0x1c0] sm:$0xff]
    %v526 = vld [vmem:[#allocation7 + $0x1c8] sm:$0xff]
    %v527 = vld [vmem:[#allocation7 + $0x1d0] sm:$0xff]
    %v528 = vld [vmem:[#allocation7 + $0x1d8] sm:$0xff]
    %v529 = vld [vmem:[#allocation7 + $0x1e0] sm:$0xff]
    %v530 = vld [vmem:[#allocation7 + $0x1e8] sm:$0xff]
    %v531 = vld [vmem:[#allocation7 + $0x1f0] sm:$0xff]
    %v532 = vld [vmem:[#allocation7 + $0x1f8] sm:$0xff]
    %v533 = vld [vmem:[#allocation7 + $0x200] sm:$0xff]
    %v534 = vld [vmem:[#allocation7 + $0x208] sm:$0xff]
    %v535 = vld [vmem:[#allocation7 + $0x210] sm:$0xff]
    %v536 = vld [vmem:[#allocation7 + $0x218] sm:$0xff]
    %v537 = vld [vmem:[#allocation7 + $0x220] sm:$0xff]
    %v538 = vld [vmem:[#allocation7 + $0x228] sm:$0xff]
    %v539 = vld [vmem:[#allocation7 + $0x230] sm:$0xff]
    %v540 = vld [vmem:[#allocation7 + $0x238] sm:$0xff]
    %v541 = vld [vmem:[#allocation7 + $0x240] sm:$0xff]
    %v542 = vld [vmem:[#allocation7 + $0x248] sm:$0xff]
    %v543 = vld [vmem:[#allocation7 + $0x250] sm:$0xff]
    %v544 = vld [vmem:[#allocation7 + $0x258] sm:$0xff]
    %v545 = vld [vmem:[#allocation7 + $0x260] sm:$0xff]
    %v546 = vld [vmem:[#allocation7 + $0x268] sm:$0xff]
    %v547 = vld [vmem:[#allocation7 + $0x270] sm:$0xff]
    %v548 = vld [vmem:[#allocation7 + $0x278] sm:$0xff]
    %v549 = vld [vmem:[#allocation7 + $0x280] sm:$0xff]
    %v550 = vld [vmem:[#allocation7 + $0x288] sm:$0xff]
    %v551 = vld [vmem:[#allocation7 + $0x290] sm:$0xff]
    %v552 = vld [vmem:[#allocation7 + $0x298] sm:$0xff]
    %v553 = vld [vmem:[#allocation7 + $0x2a0] sm:$0xff]
    %v554 = vld [vmem:[#allocation7 + $0x2a8] sm:$0xff]
    %v555 = vld [vmem:[#allocation7 + $0x2b0] sm:$0xff]
    %v556 = vld [vmem:[#allocation7 + $0x2b8] sm:$0xff]
    %v557 = vld [vmem:[#allocation7 + $0x2c0] sm:$0xff]
    %v558 = vld [vmem:[#allocation7 + $0x2c8] sm:$0xff]
    %v559 = vld [vmem:[#allocation7 + $0x2d0] sm:$0xff]
    %v560 = vld [vmem:[#allocation7 + $0x2d8] sm:$0xff]
    %v561 = vld [vmem:[#allocation7 + $0x2e0] sm:$0xff]
    %v562 = vld [vmem:[#allocation7 + $0x2e8] sm:$0xff]
    %v563 = vld [vmem:[#allocation7 + $0x2f0] sm:$0xff]
    %v564 = vld [vmem:[#allocation7 + $0x2f8] sm:$0xff]
    %v565 = vld [vmem:[#allocation7 + $0x300] sm:$0xff]
    %v566 = vld [vmem:[#allocation7 + $0x308] sm:$0xff]
    %v567 = vld [vmem:[#allocation7 + $0x310] sm:$0xff]
    %v568 = vld [vmem:[#allocation7 + $0x318] sm:$0xff]
    %v569 = vld [vmem:[#allocation7 + $0x320] sm:$0xff]
    %v570 = vld [vmem:[#allocation7 + $0x328] sm:$0xff]
    %v571 = vld [vmem:[#allocation7 + $0x330] sm:$0xff]
    %v572 = vld [vmem:[#allocation7 + $0x338] sm:$0xff]
    %v573 = vld [vmem:[#allocation7 + $0x340] sm:$0xff]
    %v574 = vld [vmem:[#allocation7 + $0x348] sm:$0xff]
    %v575 = vld [vmem:[#allocation7 + $0x350] sm:$0xff]
    %v576 = vld [vmem:[#allocation7 + $0x358] sm:$0xff]
    %v577 = vld [vmem:[#allocation7 + $0x360] sm:$0xff]
    %v578 = vld [vmem:[#allocation7 + $0x368] sm:$0xff]
    %v579 = vld [vmem:[#allocation7 + $0x370] sm:$0xff]
    %v580 = vld [vmem:[#allocation7 + $0x378] sm:$0xff]
    %v581 = vld [vmem:[#allocation7 + $0x380] sm:$0xff]
    %v582 = vld [vmem:[#allocation7 + $0x388] sm:$0xff]
    %v583 = vld [vmem:[#allocation7 + $0x390] sm:$0xff]
    %v584 = vld [vmem:[#allocation7 + $0x398] sm:$0xff]
    %v585 = vld [vmem:[#allocation7 + $0x3a0] sm:$0xff]
    %v586 = vld [vmem:[#allocation7 + $0x3a8] sm:$0xff]
    %v587 = vld [vmem:[#allocation7 + $0x3b0] sm:$0xff]
    %v588 = vld [vmem:[#allocation7 + $0x3b8] sm:$0xff]
    %v589 = vld [vmem:[#allocation7 + $0x3c0] sm:$0xff]
    %v590 = vld [vmem:[#allocation7 + $0x3c8] sm:$0xff]
    %v591 = vld [vmem:[#allocation7 + $0x3d0] sm:$0xff]
    %v592 = vld [vmem:[#allocation7 + $0x3d8] sm:$0xff]
    %v593 = vld [vmem:[#allocation7 + $0x3e0] sm:$0xff]
    %v594 = vld [vmem:[#allocation7 + $0x3e8] sm:$0xff]
    %v595 = vld [vmem:[#allocation7 + $0x3f0] sm:$0xff]
    %v596 = vld [vmem:[#allocation7 + $0x3f8] sm:$0xff]
    %v597 = vld [vmem:[#allocation9] sm:$0x1]
    %v599 = vlaneseq
    %v600 = vshrl.u32 %v599, 7
    %v601 = vsub.s32 0, %v600
    %v602 = vrot.slane %v597, %v601
    %604 = vmatprep.subr.mxu0 0.0
    %605 = vmatpush1.msra.mxu0 %v469
    %606 = vmatprep.subr.mxu0 0.0
    %607 = vmatpush1.msra.mxu0 %v470
    %608 = vmatprep.subr.mxu0 0.0
    %609 = vmatpush1.msra.mxu0 %v471
    %610 = vmatprep.subr.mxu0 0.0
    %611 = vmatpush1.msra.mxu0 %v472
    %612 = vmatprep.subr.mxu0 0.0
    %613 = vmatpush1.msra.mxu0 %v473
    %614 = vmatprep.subr.mxu0 0.0
    %615 = vmatpush1.msra.mxu0 %v474
    %616 = vmatprep.subr.mxu0 0.0
    %617 = vmatpush1.msra.mxu0 %v475
    %618 = vmatprep.subr.mxu0 0.0
    %619 = vmatpush1.msra.mxu0 %v476
    %620 = vmatprep.subr.mxu0 0.0
    %621 = vmatpush1.msra.mxu0 %v477
    %622 = vmatprep.subr.mxu0 0.0
    %623 = vmatpush1.msra.mxu0 %v478
    %624 = vmatprep.subr.mxu0 0.0
    %625 = vmatpush1.msra.mxu0 %v479
    %626 = vmatprep.subr.mxu0 0.0
    %627 = vmatpush1.msra.mxu0 %v480
    %628 = vmatprep.subr.mxu0 0.0
    %629 = vmatpush1.msra.mxu0 %v481
    %630 = vmatprep.subr.mxu0 0.0
    %631 = vmatpush1.msra.mxu0 %v482
    %632 = vmatprep.subr.mxu0 0.0
    %633 = vmatpush1.msra.mxu0 %v483
    %634 = vmatprep.subr.mxu0 0.0
    %635 = vmatpush1.msra.mxu0 %v484
    %636 = vmatprep.subr.mxu0 0.0
    %637 = vmatpush1.msra.mxu0 %v485
    %638 = vmatprep.subr.mxu0 0.0
    %639 = vmatpush1.msra.mxu0 %v486
    %640 = vmatprep.subr.mxu0 0.0
    %641 = vmatpush1.msra.mxu0 %v487
    %642 = vmatprep.subr.mxu0 0.0
    %643 = vmatpush1.msra.mxu0 %v488
    %644 = vmatprep.subr.mxu0 0.0
    %645 = vmatpush1.msra.mxu0 %v489
    %646 = vmatprep.subr.mxu0 0.0
    %647 = vmatpush1.msra.mxu0 %v490
    %648 = vmatprep.subr.mxu0 0.0
    %649 = vmatpush1.msra.mxu0 %v491
    %650 = vmatprep.subr.mxu0 0.0
    %651 = vmatpush1.msra.mxu0 %v492
    %652 = vmatprep.subr.mxu0 0.0
    %653 = vmatpush1.msra.mxu0 %v493
    %654 = vmatprep.subr.mxu0 0.0
    %655 = vmatpush1.msra.mxu0 %v494
    %656 = vmatprep.subr.mxu0 0.0
    %657 = vmatpush1.msra.mxu0 %v495
    %658 = vmatprep.subr.mxu0 0.0
    %659 = vmatpush1.msra.mxu0 %v496
    %660 = vmatprep.subr.mxu0 0.0
    %661 = vmatpush1.msra.mxu0 %v497
    %662 = vmatprep.subr.mxu0 0.0
    %663 = vmatpush1.msra.mxu0 %v498
    %664 = vmatprep.subr.mxu0 0.0
    %665 = vmatpush1.msra.mxu0 %v499
    %666 = vmatprep.subr.mxu0 0.0
    %667 = vmatpush1.msra.mxu0 %v500
    %668 = vmatprep.mubr.f32.mxu0 %v462
    %669 = vmatmul.mubr.f32.gmra.mrb[0].mxu0 %v461
    %v670 = vpop.f32.mrb[0].mxu0
    %v671 = vadd.f32 %v602, %v670
    %v672 = vpop.f32.mrb[0].mxu0
    %673 = vdwg.mxu0
    %674 = vmatprep.subr.mxu0 0.0
    %675 = vmatpush1.msra.mxu0 %v501
    %676 = vmatprep.subr.mxu0 0.0
    %677 = vmatpush1.msra.mxu0 %v502
    %678 = vmatprep.subr.mxu0 0.0
    %679 = vmatpush1.msra.mxu0 %v503
    %680 = vmatprep.subr.mxu0 0.0
    %681 = vmatpush1.msra.mxu0 %v504
    %682 = vmatprep.subr.mxu0 0.0
    %683 = vmatpush1.msra.mxu0 %v505
    %684 = vmatprep.subr.mxu0 0.0
    %685 = vmatpush1.msra.mxu0 %v506
    %686 = vmatprep.subr.mxu0 0.0
    %687 = vmatpush1.msra.mxu0 %v507
    %688 = vmatprep.subr.mxu0 0.0
    %689 = vmatpush1.msra.mxu0 %v508
    %690 = vmatprep.subr.mxu0 0.0
    %691 = vmatpush1.msra.mxu0 %v509
    %692 = vmatprep.subr.mxu0 0.0
    %693 = vmatpush1.msra.mxu0 %v510
    %694 = vmatprep.subr.mxu0 0.0
    %695 = vmatpush1.msra.mxu0 %v511
    %696 = vmatprep.subr.mxu0 0.0
    %697 = vmatpush1.msra.mxu0 %v512
    %698 = vmatprep.subr.mxu0 0.0
    %699 = vmatpush1.msra.mxu0 %v513
    %700 = vmatprep.subr.mxu0 0.0
    %701 = vmatpush1.msra.mxu0 %v514
    %702 = vmatprep.subr.mxu0 0.0
    %703 = vmatpush1.msra.mxu0 %v515
    %704 = vmatprep.subr.mxu0 0.0
    %705 = vmatpush1.msra.mxu0 %v516
    %706 = vmatprep.subr.mxu0 0.0
    %707 = vmatpush1.msra.mxu0 %v517
    %708 = vmatprep.subr.mxu0 0.0
    %709 = vmatpush1.msra.mxu0 %v518
    %710 = vmatprep.subr.mxu0 0.0
    %711 = vmatpush1.msra.mxu0 %v519
    %712 = vmatprep.subr.mxu0 0.0
    %713 = vmatpush1.msra.mxu0 %v520
    %714 = vmatprep.subr.mxu0 0.0
    %715 = vmatpush1.msra.mxu0 %v521
    %716 = vmatprep.subr.mxu0 0.0
    %717 = vmatpush1.msra.mxu0 %v522
    %718 = vmatprep.subr.mxu0 0.0
    %719 = vmatpush1.msra.mxu0 %v523
    %720 = vmatprep.subr.mxu0 0.0
    %721 = vmatpush1.msra.mxu0 %v524
    %722 = vmatprep.subr.mxu0 0.0
    %723 = vmatpush1.msra.mxu0 %v525
    %724 = vmatprep.subr.mxu0 0.0
    %725 = vmatpush1.msra.mxu0 %v526
    %726 = vmatprep.subr.mxu0 0.0
    %727 = vmatpush1.msra.mxu0 %v527
    %728 = vmatprep.subr.mxu0 0.0
    %729 = vmatpush1.msra.mxu0 %v528
    %730 = vmatprep.subr.mxu0 0.0
    %731 = vmatpush1.msra.mxu0 %v529
    %732 = vmatprep.subr.mxu0 0.0
    %733 = vmatpush1.msra.mxu0 %v530
    %734 = vmatprep.subr.mxu0 0.0
    %735 = vmatpush1.msra.mxu0 %v531
    %736 = vmatprep.subr.mxu0 0.0
    %737 = vmatpush1.msra.mxu0 %v532
    %738 = vmatprep.mubr.f32.mxu0 %v464
    %739 = vmatmul.mubr.f32.gmra.mrb[0].mxu0 %v463
    %v740 = vpop.f32.mrb[0].mxu0
    %v741 = vadd.f32 %v671, %v740
    %v742 = vpop.f32.mrb[0].mxu0
    %743 = vdwg.mxu0
    %744 = vmatprep.subr.mxu0 0.0
    %745 = vmatpush1.msra.mxu0 %v533
    %746 = vmatprep.subr.mxu0 0.0
    %747 = vmatpush1.msra.mxu0 %v534
    %748 = vmatprep.subr.mxu0 0.0
    %749 = vmatpush1.msra.mxu0 %v535
    %750 = vmatprep.subr.mxu0 0.0
    %751 = vmatpush1.msra.mxu0 %v536
    %752 = vmatprep.subr.mxu0 0.0
    %753 = vmatpush1.msra.mxu0 %v537
    %754 = vmatprep.subr.mxu0 0.0
    %755 = vmatpush1.msra.mxu0 %v538
    %756 = vmatprep.subr.mxu0 0.0
    %757 = vmatpush1.msra.mxu0 %v539
    %758 = vmatprep.subr.mxu0 0.0
    %759 = vmatpush1.msra.mxu0 %v540
    %760 = vmatprep.subr.mxu0 0.0
    %761 = vmatpush1.msra.mxu0 %v541
    %762 = vmatprep.subr.mxu0 0.0
    %763 = vmatpush1.msra.mxu0 %v542
    %764 = vmatprep.subr.mxu0 0.0
    %765 = vmatpush1.msra.mxu0 %v543
    %766 = vmatprep.subr.mxu0 0.0
    %767 = vmatpush1.msra.mxu0 %v544
    %768 = vmatprep.subr.mxu0 0.0
    %769 = vmatpush1.msra.mxu0 %v545
    %770 = vmatprep.subr.mxu0 0.0
    %771 = vmatpush1.msra.mxu0 %v546
    %772 = vmatprep.subr.mxu0 0.0
    %773 = vmatpush1.msra.mxu0 %v547
    %774 = vmatprep.subr.mxu0 0.0
    %775 = vmatpush1.msra.mxu0 %v548
    %776 = vmatprep.subr.mxu0 0.0
    %777 = vmatpush1.msra.mxu0 %v549
    %778 = vmatprep.subr.mxu0 0.0
    %779 = vmatpush1.msra.mxu0 %v550
    %780 = vmatprep.subr.mxu0 0.0
    %781 = vmatpush1.msra.mxu0 %v551
    %782 = vmatprep.subr.mxu0 0.0
    %783 = vmatpush1.msra.mxu0 %v552
    %784 = vmatprep.subr.mxu0 0.0
    %785 = vmatpush1.msra.mxu0 %v553
    %786 = vmatprep.subr.mxu0 0.0
    %787 = vmatpush1.msra.mxu0 %v554
    %788 = vmatprep.subr.mxu0 0.0
    %789 = vmatpush1.msra.mxu0 %v555
    %790 = vmatprep.subr.mxu0 0.0
    %791 = vmatpush1.msra.mxu0 %v556
    %792 = vmatprep.subr.mxu0 0.0
    %793 = vmatpush1.msra.mxu0 %v557
    %794 = vmatprep.subr.mxu0 0.0
    %795 = vmatpush1.msra.mxu0 %v558
    %796 = vmatprep.subr.mxu0 0.0
    %797 = vmatpush1.msra.mxu0 %v559
    %798 = vmatprep.subr.mxu0 0.0
    %799 = vmatpush1.msra.mxu0 %v560
    %800 = vmatprep.subr.mxu0 0.0
    %801 = vmatpush1.msra.mxu0 %v561
    %802 = vmatprep.subr.mxu0 0.0
    %803 = vmatpush1.msra.mxu0 %v562
    %804 = vmatprep.subr.mxu0 0.0
    %805 = vmatpush1.msra.mxu0 %v563
    %806 = vmatprep.subr.mxu0 0.0
    %807 = vmatpush1.msra.mxu0 %v564
    %808 = vmatprep.mubr.f32.mxu0 %v466
    %809 = vmatmul.mubr.f32.gmra.mrb[0].mxu0 %v465
    %v810 = vpop.f32.mrb[0].mxu0
    %v811 = vadd.f32 %v741, %v810
    %v812 = vpop.f32.mrb[0].mxu0
    %813 = vdwg.mxu0
    %814 = vmatprep.subr.mxu0 0.0
    %815 = vmatpush1.msra.mxu0 %v565
    %816 = vmatprep.subr.mxu0 0.0
    %817 = vmatpush1.msra.mxu0 %v566
    %818 = vmatprep.subr.mxu0 0.0
    %819 = vmatpush1.msra.mxu0 %v567
    %820 = vmatprep.subr.mxu0 0.0
    %821 = vmatpush1.msra.mxu0 %v568
    %822 = vmatprep.subr.mxu0 0.0
    %823 = vmatpush1.msra.mxu0 %v569
    %824 = vmatprep.subr.mxu0 0.0
    %825 = vmatpush1.msra.mxu0 %v570
    %826 = vmatprep.subr.mxu0 0.0
    %827 = vmatpush1.msra.mxu0 %v571
    %828 = vmatprep.subr.mxu0 0.0
    %829 = vmatpush1.msra.mxu0 %v572
    %830 = vmatprep.subr.mxu0 0.0
    %831 = vmatpush1.msra.mxu0 %v573
    %832 = vmatprep.subr.mxu0 0.0
    %833 = vmatpush1.msra.mxu0 %v574
    %834 = vmatprep.subr.mxu0 0.0
    %835 = vmatpush1.msra.mxu0 %v575
    %836 = vmatprep.subr.mxu0 0.0
    %837 = vmatpush1.msra.mxu0 %v576
    %838 = vmatprep.subr.mxu0 0.0
    %839 = vmatpush1.msra.mxu0 %v577
    %840 = vmatprep.subr.mxu0 0.0
    %841 = vmatpush1.msra.mxu0 %v578
    %842 = vmatprep.subr.mxu0 0.0
    %843 = vmatpush1.msra.mxu0 %v579
    %844 = vmatprep.subr.mxu0 0.0
    %845 = vmatpush1.msra.mxu0 %v580
    %846 = vmatprep.subr.mxu0 0.0
    %847 = vmatpush1.msra.mxu0 %v581
    %848 = vmatprep.subr.mxu0 0.0
    %849 = vmatpush1.msra.mxu0 %v582
    %850 = vmatprep.subr.mxu0 0.0
    %851 = vmatpush1.msra.mxu0 %v583
    %852 = vmatprep.subr.mxu0 0.0
    %853 = vmatpush1.msra.mxu0 %v584
    %854 = vmatprep.subr.mxu0 0.0
    %855 = vmatpush1.msra.mxu0 %v585
    %856 = vmatprep.subr.mxu0 0.0
    %857 = vmatpush1.msra.mxu0 %v586
    %858 = vmatprep.subr.mxu0 0.0
    %859 = vmatpush1.msra.mxu0 %v587
    %860 = vmatprep.subr.mxu0 0.0
    %861 = vmatpush1.msra.mxu0 %v588
    %862 = vmatprep.subr.mxu0 0.0
    %863 = vmatpush1.msra.mxu0 %v589
    %864 = vmatprep.subr.mxu0 0.0
    %865 = vmatpush1.msra.mxu0 %v590
    %866 = vmatprep.subr.mxu0 0.0
    %867 = vmatpush1.msra.mxu0 %v591
    %868 = vmatprep.subr.mxu0 0.0
    %869 = vmatpush1.msra.mxu0 %v592
    %870 = vmatprep.subr.mxu0 0.0
    %871 = vmatpush1.msra.mxu0 %v593
    %872 = vmatprep.subr.mxu0 0.0
    %873 = vmatpush1.msra.mxu0 %v594
    %874 = vmatprep.subr.mxu0 0.0
    %875 = vmatpush1.msra.mxu0 %v595
    %876 = vmatprep.subr.mxu0 0.0
    %877 = vmatpush1.msra.mxu0 %v596
    %878 = vmatprep.mubr.f32.mxu0 %v468
    %879 = vmatmul.mubr.f32.gmra.mrb[0].mxu0 %v467
    %v880 = vpop.f32.mrb[0].mxu0
    %v881 = vadd.f32 %v811, %v880
    %v882 = vpop.f32.mrb[0].mxu0
    %883 = vdwg.mxu0
    %vm884 = vcmp.ge.f32.partialorder %v881, 0.0
    %v885 = vmul.f32 %v881, 0.1
    %v886 = vsel %vm884, %v881, %v885
    %887 = vst [vmem:[%s5] sm:$0x3] %v886
    // Predicated region
    $region42: #{conv45_decoder_forward.4} parent=1 // pred_check
      _
    $region43: #{conv45_decoder_forward.4} parent=1 // pred_check_branch
      %889 = sbr.rel (0) target = $region45
    $region44: #{conv45_decoder_forward.4} parent=1 // pred_region
      _
    $region45: #{conv45_decoder_forward.4} parent=1 // pred_fallthru
      _
    // Predicated region
    $region46: #{conv45_decoder_forward.4} parent=1 // pred_check
      _
    $region47: #{conv45_decoder_forward.4} parent=1 // pred_check_branch
      %891 = sbr.rel (0) target = $region49
    $region48: #{conv45_decoder_forward.4} parent=1 // pred_region
      _
    $region49: #{conv45_decoder_forward.4} parent=1 // pred_fallthru
      _
    %892 = vsyncpa [#allocation3], 1
    %893 = vsyncpa [#allocation5], 1
    %894 = vsyncpa [#allocation8], 1

// kernel: conv45_decoder_forward.5
$region0: #{conv45_decoder_forward.5}
  #allocation0 [shape = 'u32[]', space=smem, size = 0x4, offset = 0x4, fixed_abs, tag = 'smem constant byte address 0x4 - core index']
  #allocation1 [shape = 'u32[144,128]{1,0:T(1,128)}', space=vmem, size = 0x12000, scoped, tag = 'internal scratch']
  %s0 = inlined_call_operand.vmem [shape: f32[8,72], index: 0, kind: input, shape index: {}]
  %s1 = inlined_call_operand.vmem [shape: f32[72,256], index: 1, kind: input, shape index: {}]
  %s2 = inlined_call_operand.vmem [shape: f32[8,1], index: 2, kind: input, shape index: {}]
  %s3 = inlined_call_operand.vmem [shape: f32[8,1], index: 3, kind: input, shape index: {}]
  %s4 = inlined_call_operand.vmem [shape: f32[8,256], index: 4, kind: output, shape index: {}]
  %s5 = sld [smem:[#allocation0]]
  $region26: #{conv45_decoder_forward.5} parent=0
    _
  %s7 = ssub.s32 1, %s5
  %s8 = scalar_select 0, %s7, %s5
  // Predicated region
  $region2: #{conv45_decoder_forward.5} parent=0 // pred_check
    _
  $region3: #{conv45_decoder_forward.5} parent=0 // pred_check_branch
    %10 = sbr.rel (0) target = $region5
  $region4: #{conv45_decoder_forward.5} parent=0 // pred_region
    _
  $region5: #{conv45_decoder_forward.5} parent=0 // pred_fallthru
    _
  // Predicated region
  $region6: #{conv45_decoder_forward.5} parent=0 // pred_check
    _
  $region7: #{conv45_decoder_forward.5} parent=0 // pred_check_branch
    %12 = sbr.rel (0) target = $region9
  $region8: #{conv45_decoder_forward.5} parent=0 // pred_region
    _
  $region9: #{conv45_decoder_forward.5} parent=0 // pred_fallthru
    _
  // Predicated region
  $region10: #{conv45_decoder_forward.5} parent=0 // pred_check
    _
  $region11: #{conv45_decoder_forward.5} parent=0 // pred_check_branch
    %14 = sbr.rel (0) target = $region13
  $region12: #{conv45_decoder_forward.5} parent=0 // pred_region
    _
  $region13: #{conv45_decoder_forward.5} parent=0 // pred_fallthru
    _
  // Predicated region
  $region14: #{conv45_decoder_forward.5} parent=0 // pred_check
    _
  $region15: #{conv45_decoder_forward.5} parent=0 // pred_check_branch
    %16 = sbr.rel (0) target = $region17
  $region16: #{conv45_decoder_forward.5} parent=0 // pred_region
    _
  $region17: #{conv45_decoder_forward.5} parent=0 // pred_fallthru
    _
  %v17 = vld [vmem:[%s0] sm:$0xff]
  %v18 = vld [vmem:[%s1] sm:$0xff]
  %v19 = vld [vmem:[%s1 + $0x8] sm:$0xff]
  %v20 = vld [vmem:[%s1 + $0x10] sm:$0xff]
  %v21 = vld [vmem:[%s1 + $0x18] sm:$0xff]
  %v22 = vld [vmem:[%s1 + $0x20] sm:$0xff]
  %v23 = vld [vmem:[%s1 + $0x28] sm:$0xff]
  %v24 = vld [vmem:[%s1 + $0x30] sm:$0xff]
  %v25 = vld [vmem:[%s1 + $0x38] sm:$0xff]
  %v26 = vld [vmem:[%s1 + $0x40] sm:$0xff]
  %v27 = vld [vmem:[%s1 + $0x48] sm:$0xff]
  %v28 = vld [vmem:[%s1 + $0x50] sm:$0xff]
  %v29 = vld [vmem:[%s1 + $0x58] sm:$0xff]
  %v30 = vld [vmem:[%s1 + $0x60] sm:$0xff]
  %v31 = vld [vmem:[%s1 + $0x68] sm:$0xff]
  %v32 = vld [vmem:[%s1 + $0x70] sm:$0xff]
  %v33 = vld [vmem:[%s1 + $0x78] sm:$0xff]
  %v34 = vld [vmem:[%s1 + $0x80] sm:$0xff]
  %v35 = vld [vmem:[%s1 + $0x88] sm:$0xff]
  %vm36 = vcmask 588800
  %v38 = vsel %vm36, %v17, 0
  %40 = vmatprep.subr.mxu0 %v19
  %41 = vmatpush1.msra.mxu0 %v18
  %42 = vmatprep.subr.mxu0 %v21
  %43 = vmatpush1.msra.mxu0 %v20
  %44 = vmatprep.subr.mxu0 %v23
  %45 = vmatpush1.msra.mxu0 %v22
  %46 = vmatprep.subr.mxu0 %v25
  %47 = vmatpush1.msra.mxu0 %v24
  %48 = vmatprep.subr.mxu0 %v27
  %49 = vmatpush1.msra.mxu0 %v26
  %50 = vmatprep.subr.mxu0 %v29
  %51 = vmatpush1.msra.mxu0 %v28
  %52 = vmatprep.subr.mxu0 %v31
  %53 = vmatpush1.msra.mxu0 %v30
  %54 = vmatprep.subr.mxu0 %v33
  %55 = vmatpush1.msra.mxu0 %v32
  %56 = vmatprep.subr.mxu0 %v35
  %57 = vmatpush1.msra.mxu0 %v34
  %58 = vmatprep.subr.mxu0 0.0
  %59 = vmatpush1.msra.mxu0 0.0
  %60 = vmatprep.subr.mxu0 0.0
  %61 = vmatpush1.msra.mxu0 0.0
  %62 = vmatprep.subr.mxu0 0.0
  %63 = vmatpush1.msra.mxu0 0.0
  %64 = vmatprep.subr.mxu0 0.0
  %65 = vmatpush1.msra.mxu0 0.0
  %66 = vmatprep.subr.mxu0 0.0
  %67 = vmatpush1.msra.mxu0 0.0
  %68 = vmatprep.subr.mxu0 0.0
  %69 = vmatpush1.msra.mxu0 0.0
  %70 = vmatprep.subr.mxu0 0.0
  %71 = vmatpush1.msra.mxu0 0.0
  %72 = vmatprep.subr.mxu0 0.0
  %73 = vmatpush1.msra.mxu0 0.0
  %74 = vmatprep.subr.mxu0 0.0
  %75 = vmatpush1.msra.mxu0 0.0
  %76 = vmatprep.subr.mxu0 0.0
  %77 = vmatpush1.msra.mxu0 0.0
  %78 = vmatprep.subr.mxu0 0.0
  %79 = vmatpush1.msra.mxu0 0.0
  %80 = vmatprep.subr.mxu0 0.0
  %81 = vmatpush1.msra.mxu0 0.0
  %82 = vmatprep.subr.mxu0 0.0
  %83 = vmatpush1.msra.mxu0 0.0
  %84 = vmatprep.subr.mxu0 0.0
  %85 = vmatpush1.msra.mxu0 0.0
  %86 = vmatprep.subr.mxu0 0.0
  %87 = vmatpush1.msra.mxu0 0.0
  %88 = vmatprep.subr.mxu0 0.0
  %89 = vmatpush1.msra.mxu0 0.0
  %90 = vmatprep.subr.mxu0 0.0
  %91 = vmatpush1.msra.mxu0 0.0
  %92 = vmatprep.subr.mxu0 0.0
  %93 = vmatpush1.msra.mxu0 0.0
  %94 = vmatprep.subr.mxu0 0.0
  %95 = vmatpush1.msra.mxu0 0.0
  %96 = vmatprep.subr.mxu0 0.0
  %97 = vmatpush1.msra.mxu0 0.0
  %98 = vmatprep.subr.mxu0 0.0
  %99 = vmatpush1.msra.mxu0 0.0
  %100 = vmatprep.subr.mxu0 0.0
  %101 = vmatpush1.msra.mxu0 0.0
  %102 = vmatprep.subr.mxu0 0.0
  %103 = vmatpush1.msra.mxu0 0.0
  %104 = vmatprep.mubr.f32.mxu0 0.0
  %105 = vmatmul.mubr.f32.gmra.mrb[0].mxu0 %v38
  %v106 = vpop.f32.mrb[0].mxu0
  %v107 = vadd.f32 0.0, %v106
  %v108 = vpop.f32.mrb[0].mxu0
  %v109 = vadd.f32 0.0, %v108
  %110 = vdwg.mxu0
  %v111 = vadd.f32 %v107, %v109
  %112 = vadd.xlane.f32.xlu0 %v111
  %v113 = vpop.xlane.xlu0 %112
  %v114 = vmul.f32 %v107, %v107
  %v115 = vmul.f32 %v109, %v109
  %v116 = vadd.f32 %v114, %v115
  %117 = vadd.xlane.f32.xlu0 %v116
  %v118 = vpop.xlane.xlu0 %117
  %v119 = vmul.f32 %v113, 0.0061728396
  %v120 = vmul.f32 %v118, 0.0061728396
  %v121 = vmul.f32 %v119, %v119
  %v122 = vsub.f32 %v120, %v121
  %v123 = vmax.f32 %v122, 0.0
  %v124 = vsub.f32 %v107, %v119
  %v125 = vsub.f32 %v109, %v119
  %v126 = vadd.f32 %v123, 1e-05
  %v127 = vrsqrt.pop %v126
  %v128 = vmul.f32 %v124, %v127
  %v129 = vmul.f32 %v125, %v127
  %v130 = vld [vmem:[%s2] sm:$0xff]
  %132 = vset.pattern.permute.xlu0 0
  %133 = vperm.xlu0 %132, %v130
  %v134 = vpop.permute.xlu0 %133
  %v136 = vmul.f32 %v128, %v134
  %v137 = vmul.f32 %v129, %v134
  %v138 = vld [vmem:[%s3] sm:$0xff]
  %140 = vset.pattern.permute.xlu0 0
  %141 = vperm.xlu0 %140, %v138
  %v142 = vpop.permute.xlu0 %141
  %v144 = vadd.f32 %v136, %v142
  %v145 = vadd.f32 %v137, %v142
  %vm146 = vcmp.ge.f32.partialorder %v144, 0.0
  %vm147 = vcmp.ge.f32.partialorder %v145, 0.0
  %v148 = vmul.f32 %v144, 0.1
  %v149 = vmul.f32 %v145, 0.1
  %v150 = vsel %vm146, %v144, %v148
  %v151 = vsel %vm147, %v145, %v149
  %152 = vst [vmem:[%s4] sm:$0xff] %v150
  %153 = vst [vmem:[%s4 + $0x8] sm:$0xff] %v151
  // Predicated region
  $region18: #{conv45_decoder_forward.5} parent=0 // pred_check
    _
  $region19: #{conv45_decoder_forward.5} parent=0 // pred_check_branch
    %155 = sbr.rel (0) target = $region21
  $region20: #{conv45_decoder_forward.5} parent=0 // pred_region
    _
  $region21: #{conv45_decoder_forward.5} parent=0 // pred_fallthru
    _
  // Predicated region
  $region22: #{conv45_decoder_forward.5} parent=0 // pred_check
    _
  $region23: #{conv45_decoder_forward.5} parent=0 // pred_check_branch
    %157 = sbr.rel (0) target = $region25
  $region24: #{conv45_decoder_forward.5} parent=0 // pred_region
    _
  $region25: #{conv45_decoder_forward.5} parent=0 // pred_fallthru
    _

// kernel: conv45_decoder_forward.6
$region0: #{conv45_decoder_forward.6}
  #allocation0 [shape = 'u32[]', space=smem, size = 0x4, offset = 0x4, fixed_abs, tag = 'smem constant byte address 0x4 - core index']
  #allocation1 [shape = 'u32[144,128]{1,0:T(1,128)}', space=vmem, size = 0x12000, scoped, tag = 'internal scratch']
  %s0 = inlined_call_operand.vmem [shape: f32[8,200], index: 0, kind: input, shape index: {}]
  %s1 = inlined_call_operand.vmem [shape: f32[200,896], index: 1, kind: input, shape index: {}]
  %s2 = inlined_call_operand.vmem [shape: f32[8,1], index: 2, kind: input, shape index: {}]
  %s3 = inlined_call_operand.vmem [shape: f32[8,1], index: 3, kind: input, shape index: {}]
  %s4 = inlined_call_operand.vmem [shape: f32[8,896], index: 4, kind: output, shape index: {}]
  %s5 = sld [smem:[#allocation0]]
  $region26: #{conv45_decoder_forward.6} parent=0
    _
  %s7 = ssub.s32 1, %s5
  %s8 = scalar_select 0, %s7, %s5
  // Predicated region
  $region2: #{conv45_decoder_forward.6} parent=0 // pred_check
    _
  $region3: #{conv45_decoder_forward.6} parent=0 // pred_check_branch
    %10 = sbr.rel (0) target = $region5
  $region4: #{conv45_decoder_forward.6} parent=0 // pred_region
    _
  $region5: #{conv45_decoder_forward.6} parent=0 // pred_fallthru
    _
  // Predicated region
  $region6: #{conv45_decoder_forward.6} parent=0 // pred_check
    _
  $region7: #{conv45_decoder_forward.6} parent=0 // pred_check_branch
    %12 = sbr.rel (0) target = $region9
  $region8: #{conv45_decoder_forward.6} parent=0 // pred_region
    _
  $region9: #{conv45_decoder_forward.6} parent=0 // pred_fallthru
    _
  // Predicated region
  $region10: #{conv45_decoder_forward.6} parent=0 // pred_check
    _
  $region11: #{conv45_decoder_forward.6} parent=0 // pred_check_branch
    %14 = sbr.rel (0) target = $region13
  $region12: #{conv45_decoder_forward.6} parent=0 // pred_region
    _
  $region13: #{conv45_decoder_forward.6} parent=0 // pred_fallthru
    _
  // Predicated region
  $region14: #{conv45_decoder_forward.6} parent=0 // pred_check
    _
  $region15: #{conv45_decoder_forward.6} parent=0 // pred_check_branch
    %16 = sbr.rel (0) target = $region17
  $region16: #{conv45_decoder_forward.6} parent=0 // pred_region
    _
  $region17: #{conv45_decoder_forward.6} parent=0 // pred_fallthru
    _
  %v17 = vld [vmem:[%s0] sm:$0xff]
  %v18 = vld [vmem:[%s0 + $0x8] sm:$0xff]
  %v19 = vld [vmem:[%s1] sm:$0xff]
  %v20 = vld [vmem:[%s1 + $0x8] sm:$0xff]
  %v21 = vld [vmem:[%s1 + $0x10] sm:$0xff]
  %v22 = vld [vmem:[%s1 + $0x18] sm:$0xff]
  %v23 = vld [vmem:[%s1 + $0x20] sm:$0xff]
  %v24 = vld [vmem:[%s1 + $0x28] sm:$0xff]
  %v25 = vld [vmem:[%s1 + $0x30] sm:$0xff]
  %v26 = vld [vmem:[%s1 + $0x38] sm:$0xff]
  %v27 = vld [vmem:[%s1 + $0x40] sm:$0xff]
  %v28 = vld [vmem:[%s1 + $0x48] sm:$0xff]
  %v29 = vld [vmem:[%s1 + $0x50] sm:$0xff]
  %v30 = vld [vmem:[%s1 + $0x58] sm:$0xff]
  %v31 = vld [vmem:[%s1 + $0x60] sm:$0xff]
  %v32 = vld [vmem:[%s1 + $0x68] sm:$0xff]
  %v33 = vld [vmem:[%s1 + $0x70] sm:$0xff]
  %v34 = vld [vmem:[%s1 + $0x78] sm:$0xff]
  %v35 = vld [vmem:[%s1 + $0x80] sm:$0xff]
  %v36 = vld [vmem:[%s1 + $0x88] sm:$0xff]
  %v37 = vld [vmem:[%s1 + $0x90] sm:$0xff]
  %v38 = vld [vmem:[%s1 + $0x98] sm:$0xff]
  %v39 = vld [vmem:[%s1 + $0xa0] sm:$0xff]
  %v40 = vld [vmem:[%s1 + $0xa8] sm:$0xff]
  %v41 = vld [vmem:[%s1 + $0xb0] sm:$0xff]
  %v42 = vld [vmem:[%s1 + $0xb8] sm:$0xff]
  %v43 = vld [vmem:[%s1 + $0xc0] sm:$0xff]
  %v44 = vld [vmem:[%s1 + $0xc8] sm:$0xff]
  %v45 = vld [vmem:[%s1 + $0xd0] sm:$0xff]
  %v46 = vld [vmem:[%s1 + $0xd8] sm:$0xff]
  %v47 = vld [vmem:[%s1 + $0xe0] sm:$0xff]
  %v48 = vld [vmem:[%s1 + $0xe8] sm:$0xff]
  %v49 = vld [vmem:[%s1 + $0xf0] sm:$0xff]
  %v50 = vld [vmem:[%s1 + $0xf8] sm:$0xff]
  %v51 = vld [vmem:[%s1 + $0x100] sm:$0xff]
  %v52 = vld [vmem:[%s1 + $0x108] sm:$0xff]
  %v53 = vld [vmem:[%s1 + $0x110] sm:$0xff]
  %v54 = vld [vmem:[%s1 + $0x118] sm:$0xff]
  %v55 = vld [vmem:[%s1 + $0x120] sm:$0xff]
  %v56 = vld [vmem:[%s1 + $0x128] sm:$0xff]
  %v57 = vld [vmem:[%s1 + $0x130] sm:$0xff]
  %v58 = vld [vmem:[%s1 + $0x138] sm:$0xff]
  %v59 = vld [vmem:[%s1 + $0x140] sm:$0xff]
  %v60 = vld [vmem:[%s1 + $0x148] sm:$0xff]
  %v61 = vld [vmem:[%s1 + $0x150] sm:$0xff]
  %v62 = vld [vmem:[%s1 + $0x158] sm:$0xff]
  %v63 = vld [vmem:[%s1 + $0x160] sm:$0xff]
  %v64 = vld [vmem:[%s1 + $0x168] sm:$0xff]
  %v65 = vld [vmem:[%s1 + $0x170] sm:$0xff]
  %v66 = vld [vmem:[%s1 + $0x178] sm:$0xff]
  %v67 = vld [vmem:[%s1 + $0x180] sm:$0xff]
  %v68 = vld [vmem:[%s1 + $0x188] sm:$0xff]
  %v69 = vld [vmem:[%s1 + $0x190] sm:$0xff]
  %v70 = vld [vmem:[%s1 + $0x198] sm:$0xff]
  %v71 = vld [vmem:[%s1 + $0x1a0] sm:$0xff]
  %v72 = vld [vmem:[%s1 + $0x1a8] sm:$0xff]
  %v73 = vld [vmem:[%s1 + $0x1b0] sm:$0xff]
  %v74 = vld [vmem:[%s1 + $0x1b8] sm:$0xff]
  %v75 = vld [vmem:[%s1 + $0x1c0] sm:$0xff]
  %v76 = vld [vmem:[%s1 + $0x1c8] sm:$0xff]
  %v77 = vld [vmem:[%s1 + $0x1d0] sm:$0xff]
  %v78 = vld [vmem:[%s1 + $0x1d8] sm:$0xff]
  %v79 = vld [vmem:[%s1 + $0x1e0] sm:$0xff]
  %v80 = vld [vmem:[%s1 + $0x1e8] sm:$0xff]
  %v81 = vld [vmem:[%s1 + $0x1f0] sm:$0xff]
  %v82 = vld [vmem:[%s1 + $0x1f8] sm:$0xff]
  %v83 = vld [vmem:[%s1 + $0x200] sm:$0xff]
  %v84 = vld [vmem:[%s1 + $0x208] sm:$0xff]
  %v85 = vld [vmem:[%s1 + $0x210] sm:$0xff]
  %v86 = vld [vmem:[%s1 + $0x218] sm:$0xff]
  %v87 = vld [vmem:[%s1 + $0x220] sm:$0xff]
  %v88 = vld [vmem:[%s1 + $0x228] sm:$0xff]
  %v89 = vld [vmem:[%s1 + $0x230] sm:$0xff]
  %v90 = vld [vmem:[%s1 + $0x238] sm:$0xff]
  %v91 = vld [vmem:[%s1 + $0x240] sm:$0xff]
  %v92 = vld [vmem:[%s1 + $0x248] sm:$0xff]
  %v93 = vld [vmem:[%s1 + $0x250] sm:$0xff]
  %v94 = vld [vmem:[%s1 + $0x258] sm:$0xff]
  %v95 = vld [vmem:[%s1 + $0x260] sm:$0xff]
  %v96 = vld [vmem:[%s1 + $0x268] sm:$0xff]
  %v97 = vld [vmem:[%s1 + $0x270] sm:$0xff]
  %v98 = vld [vmem:[%s1 + $0x278] sm:$0xff]
  %v99 = vld [vmem:[%s1 + $0x280] sm:$0xff]
  %v100 = vld [vmem:[%s1 + $0x288] sm:$0xff]
  %v101 = vld [vmem:[%s1 + $0x290] sm:$0xff]
  %v102 = vld [vmem:[%s1 + $0x298] sm:$0xff]
  %v103 = vld [vmem:[%s1 + $0x2a0] sm:$0xff]
  %v104 = vld [vmem:[%s1 + $0x2a8] sm:$0xff]
  %v105 = vld [vmem:[%s1 + $0x2b0] sm:$0xff]
  %v106 = vld [vmem:[%s1 + $0x2b8] sm:$0xff]
  %v107 = vld [vmem:[%s1 + $0x2c0] sm:$0xff]
  %v108 = vld [vmem:[%s1 + $0x2c8] sm:$0xff]
  %v109 = vld [vmem:[%s1 + $0x2d0] sm:$0xff]
  %v110 = vld [vmem:[%s1 + $0x2d8] sm:$0xff]
  %v111 = vld [vmem:[%s1 + $0x2e0] sm:$0xff]
  %v112 = vld [vmem:[%s1 + $0x2e8] sm:$0xff]
  %v113 = vld [vmem:[%s1 + $0x2f0] sm:$0xff]
  %v114 = vld [vmem:[%s1 + $0x2f8] sm:$0xff]
  %v115 = vld [vmem:[%s1 + $0x300] sm:$0xff]
  %v116 = vld [vmem:[%s1 + $0x308] sm:$0xff]
  %v117 = vld [vmem:[%s1 + $0x310] sm:$0xff]
  %v118 = vld [vmem:[%s1 + $0x318] sm:$0xff]
  %v119 = vld [vmem:[%s1 + $0x320] sm:$0xff]
  %v120 = vld [vmem:[%s1 + $0x328] sm:$0xff]
  %v121 = vld [vmem:[%s1 + $0x330] sm:$0xff]
  %v122 = vld [vmem:[%s1 + $0x338] sm:$0xff]
  %v123 = vld [vmem:[%s1 + $0x340] sm:$0xff]
  %v124 = vld [vmem:[%s1 + $0x348] sm:$0xff]
  %v125 = vld [vmem:[%s1 + $0x350] sm:$0xff]
  %v126 = vld [vmem:[%s1 + $0x358] sm:$0xff]
  %v127 = vld [vmem:[%s1 + $0x360] sm:$0xff]
  %v128 = vld [vmem:[%s1 + $0x368] sm:$0xff]
  %v129 = vld [vmem:[%s1 + $0x370] sm:$0xff]
  %v130 = vld [vmem:[%s1 + $0x378] sm:$0xff]
  %v131 = vld [vmem:[%s1 + $0x380] sm:$0xff]
  %v132 = vld [vmem:[%s1 + $0x388] sm:$0xff]
  %v133 = vld [vmem:[%s1 + $0x390] sm:$0xff]
  %v134 = vld [vmem:[%s1 + $0x398] sm:$0xff]
  %v135 = vld [vmem:[%s1 + $0x3a0] sm:$0xff]
  %v136 = vld [vmem:[%s1 + $0x3a8] sm:$0xff]
  %v137 = vld [vmem:[%s1 + $0x3b0] sm:$0xff]
  %v138 = vld [vmem:[%s1 + $0x3b8] sm:$0xff]
  %v139 = vld [vmem:[%s1 + $0x3c0] sm:$0xff]
  %v140 = vld [vmem:[%s1 + $0x3c8] sm:$0xff]
  %v141 = vld [vmem:[%s1 + $0x3d0] sm:$0xff]
  %v142 = vld [vmem:[%s1 + $0x3d8] sm:$0xff]
  %v143 = vld [vmem:[%s1 + $0x3e0] sm:$0xff]
  %v144 = vld [vmem:[%s1 + $0x3e8] sm:$0xff]
  %v145 = vld [vmem:[%s1 + $0x3f0] sm:$0xff]
  %v146 = vld [vmem:[%s1 + $0x3f8] sm:$0xff]
  %v147 = vld [vmem:[%s1 + $0x400] sm:$0xff]
  %v148 = vld [vmem:[%s1 + $0x408] sm:$0xff]
  %v149 = vld [vmem:[%s1 + $0x410] sm:$0xff]
  %v150 = vld [vmem:[%s1 + $0x418] sm:$0xff]
  %v151 = vld [vmem:[%s1 + $0x420] sm:$0xff]
  %v152 = vld [vmem:[%s1 + $0x428] sm:$0xff]
  %v153 = vld [vmem:[%s1 + $0x430] sm:$0xff]
  %v154 = vld [vmem:[%s1 + $0x438] sm:$0xff]
  %v155 = vld [vmem:[%s1 + $0x440] sm:$0xff]
  %v156 = vld [vmem:[%s1 + $0x448] sm:$0xff]
  %v157 = vld [vmem:[%s1 + $0x450] sm:$0xff]
  %v158 = vld [vmem:[%s1 + $0x458] sm:$0xff]
  %v159 = vld [vmem:[%s1 + $0x460] sm:$0xff]
  %v160 = vld [vmem:[%s1 + $0x468] sm:$0xff]
  %v161 = vld [vmem:[%s1 + $0x470] sm:$0xff]
  %v162 = vld [vmem:[%s1 + $0x478] sm:$0xff]
  %v163 = vld [vmem:[%s1 + $0x480] sm:$0xff]
  %v164 = vld [vmem:[%s1 + $0x488] sm:$0xff]
  %v165 = vld [vmem:[%s1 + $0x490] sm:$0xff]
  %v166 = vld [vmem:[%s1 + $0x498] sm:$0xff]
  %v167 = vld [vmem:[%s1 + $0x4a0] sm:$0xff]
  %v168 = vld [vmem:[%s1 + $0x4a8] sm:$0xff]
  %v169 = vld [vmem:[%s1 + $0x4b0] sm:$0xff]
  %v170 = vld [vmem:[%s1 + $0x4b8] sm:$0xff]
  %v171 = vld [vmem:[%s1 + $0x4c0] sm:$0xff]
  %v172 = vld [vmem:[%s1 + $0x4c8] sm:$0xff]
  %v173 = vld [vmem:[%s1 + $0x4d0] sm:$0xff]
  %v174 = vld [vmem:[%s1 + $0x4d8] sm:$0xff]
  %v175 = vld [vmem:[%s1 + $0x4e0] sm:$0xff]
  %v176 = vld [vmem:[%s1 + $0x4e8] sm:$0xff]
  %v177 = vld [vmem:[%s1 + $0x4f0] sm:$0xff]
  %v178 = vld [vmem:[%s1 + $0x4f8] sm:$0xff]
  %v179 = vld [vmem:[%s1 + $0x500] sm:$0xff]
  %v180 = vld [vmem:[%s1 + $0x508] sm:$0xff]
  %v181 = vld [vmem:[%s1 + $0x510] sm:$0xff]
  %v182 = vld [vmem:[%s1 + $0x518] sm:$0xff]
  %v183 = vld [vmem:[%s1 + $0x520] sm:$0xff]
  %v184 = vld [vmem:[%s1 + $0x528] sm:$0xff]
  %v185 = vld [vmem:[%s1 + $0x530] sm:$0xff]
  %v186 = vld [vmem:[%s1 + $0x538] sm:$0xff]
  %v187 = vld [vmem:[%s1 + $0x540] sm:$0xff]
  %v188 = vld [vmem:[%s1 + $0x548] sm:$0xff]
  %v189 = vld [vmem:[%s1 + $0x550] sm:$0xff]
  %v190 = vld [vmem:[%s1 + $0x558] sm:$0xff]
  %v191 = vld [vmem:[%s1 + $0x560] sm:$0xff]
  %v192 = vld [vmem:[%s1 + $0x568] sm:$0xff]
  %v193 = vld [vmem:[%s1 + $0x570] sm:$0xff]
  %vm194 = vcmask 588800
  %v196 = vsel %vm194, %v18, 0
  %198 = vmatprep.subr.mxu0 %v20
  %199 = vmatpush1.msra.mxu0 %v19
  %200 = vmatprep.subr.mxu0 %v27
  %201 = vmatpush1.msra.mxu0 %v26
  %202 = vmatprep.subr.mxu0 %v34
  %203 = vmatpush1.msra.mxu0 %v33
  %204 = vmatprep.subr.mxu0 %v41
  %205 = vmatpush1.msra.mxu0 %v40
  %206 = vmatprep.subr.mxu0 %v48
  %207 = vmatpush1.msra.mxu0 %v47
  %208 = vmatprep.subr.mxu0 %v55
  %209 = vmatpush1.msra.mxu0 %v54
  %210 = vmatprep.subr.mxu0 %v62
  %211 = vmatpush1.msra.mxu0 %v61
  %212 = vmatprep.subr.mxu0 %v69
  %213 = vmatpush1.msra.mxu0 %v68
  %214 = vmatprep.subr.mxu0 %v76
  %215 = vmatpush1.msra.mxu0 %v75
  %216 = vmatprep.subr.mxu0 %v83
  %217 = vmatpush1.msra.mxu0 %v82
  %218 = vmatprep.subr.mxu0 %v90
  %219 = vmatpush1.msra.mxu0 %v89
  %220 = vmatprep.subr.mxu0 %v97
  %221 = vmatpush1.msra.mxu0 %v96
  %222 = vmatprep.subr.mxu0 %v104
  %223 = vmatpush1.msra.mxu0 %v103
  %224 = vmatprep.subr.mxu0 %v111
  %225 = vmatpush1.msra.mxu0 %v110
  %226 = vmatprep.subr.mxu0 %v118
  %227 = vmatpush1.msra.mxu0 %v117
  %228 = vmatprep.subr.mxu0 %v125
  %229 = vmatpush1.msra.mxu0 %v124
  %230 = vmatprep.subr.mxu0 %v132
  %231 = vmatpush1.msra.mxu0 %v131
  %232 = vmatprep.subr.mxu0 %v139
  %233 = vmatpush1.msra.mxu0 %v138
  %234 = vmatprep.subr.mxu0 %v146
  %235 = vmatpush1.msra.mxu0 %v145
  %236 = vmatprep.subr.mxu0 %v153
  %237 = vmatpush1.msra.mxu0 %v152
  %238 = vmatprep.subr.mxu0 %v160
  %239 = vmatpush1.msra.mxu0 %v159
  %240 = vmatprep.subr.mxu0 %v167
  %241 = vmatpush1.msra.mxu0 %v166
  %242 = vmatprep.subr.mxu0 %v174
  %243 = vmatpush1.msra.mxu0 %v173
  %244 = vmatprep.subr.mxu0 %v181
  %245 = vmatpush1.msra.mxu0 %v180
  %246 = vmatprep.subr.mxu0 %v188
  %247 = vmatpush1.msra.mxu0 %v187
  %248 = vmatprep.subr.mxu0 0.0
  %249 = vmatpush1.msra.mxu0 0.0
  %250 = vmatprep.subr.mxu0 0.0
  %251 = vmatpush1.msra.mxu0 0.0
  %252 = vmatprep.subr.mxu0 0.0
  %253 = vmatpush1.msra.mxu0 0.0
  %254 = vmatprep.subr.mxu0 0.0
  %255 = vmatpush1.msra.mxu0 0.0
  %256 = vmatprep.subr.mxu0 0.0
  %257 = vmatpush1.msra.mxu0 0.0
  %258 = vmatprep.subr.mxu0 0.0
  %259 = vmatpush1.msra.mxu0 0.0
  %260 = vmatprep.subr.mxu0 0.0
  %261 = vmatpush1.msra.mxu0 0.0
  %262 = vmatprep.mubr.f32.mxu0 %v196
  %263 = vmatmul.mubr.f32.gmra.mrb[0].mxu0 %v17
  %v264 = vpop.f32.mrb[0].mxu0
  %v265 = vadd.f32 0.0, %v264
  %v266 = vpop.f32.mrb[0].mxu0
  %v267 = vadd.f32 0.0, %v266
  %268 = vdwg.mxu0
  %269 = vmatprep.subr.mxu0 %v22
  %270 = vmatpush1.msra.mxu0 %v21
  %271 = vmatprep.subr.mxu0 %v29
  %272 = vmatpush1.msra.mxu0 %v28
  %273 = vmatprep.subr.mxu0 %v36
  %274 = vmatpush1.msra.mxu0 %v35
  %275 = vmatprep.subr.mxu0 %v43
  %276 = vmatpush1.msra.mxu0 %v42
  %277 = vmatprep.subr.mxu0 %v50
  %278 = vmatpush1.msra.mxu0 %v49
  %279 = vmatprep.subr.mxu0 %v57
  %280 = vmatpush1.msra.mxu0 %v56
  %281 = vmatprep.subr.mxu0 %v64
  %282 = vmatpush1.msra.mxu0 %v63
  %283 = vmatprep.subr.mxu0 %v71
  %284 = vmatpush1.msra.mxu0 %v70
  %285 = vmatprep.subr.mxu0 %v78
  %286 = vmatpush1.msra.mxu0 %v77
  %287 = vmatprep.subr.mxu0 %v85
  %288 = vmatpush1.msra.mxu0 %v84
  %289 = vmatprep.subr.mxu0 %v92
  %290 = vmatpush1.msra.mxu0 %v91
  %291 = vmatprep.subr.mxu0 %v99
  %292 = vmatpush1.msra.mxu0 %v98
  %293 = vmatprep.subr.mxu0 %v106
  %294 = vmatpush1.msra.mxu0 %v105
  %295 = vmatprep.subr.mxu0 %v113
  %296 = vmatpush1.msra.mxu0 %v112
  %297 = vmatprep.subr.mxu0 %v120
  %298 = vmatpush1.msra.mxu0 %v119
  %299 = vmatprep.subr.mxu0 %v127
  %300 = vmatpush1.msra.mxu0 %v126
  %301 = vmatprep.subr.mxu0 %v134
  %302 = vmatpush1.msra.mxu0 %v133
  %303 = vmatprep.subr.mxu0 %v141
  %304 = vmatpush1.msra.mxu0 %v140
  %305 = vmatprep.subr.mxu0 %v148
  %306 = vmatpush1.msra.mxu0 %v147
  %307 = vmatprep.subr.mxu0 %v155
  %308 = vmatpush1.msra.mxu0 %v154
  %309 = vmatprep.subr.mxu0 %v162
  %310 = vmatpush1.msra.mxu0 %v161
  %311 = vmatprep.subr.mxu0 %v169
  %312 = vmatpush1.msra.mxu0 %v168
  %313 = vmatprep.subr.mxu0 %v176
  %314 = vmatpush1.msra.mxu0 %v175
  %315 = vmatprep.subr.mxu0 %v183
  %316 = vmatpush1.msra.mxu0 %v182
  %317 = vmatprep.subr.mxu0 %v190
  %318 = vmatpush1.msra.mxu0 %v189
  %319 = vmatprep.subr.mxu0 0.0
  %320 = vmatpush1.msra.mxu0 0.0
  %321 = vmatprep.subr.mxu0 0.0
  %322 = vmatpush1.msra.mxu0 0.0
  %323 = vmatprep.subr.mxu0 0.0
  %324 = vmatpush1.msra.mxu0 0.0
  %325 = vmatprep.subr.mxu0 0.0
  %326 = vmatpush1.msra.mxu0 0.0
  %327 = vmatprep.subr.mxu0 0.0
  %328 = vmatpush1.msra.mxu0 0.0
  %329 = vmatprep.subr.mxu0 0.0
  %330 = vmatpush1.msra.mxu0 0.0
  %331 = vmatprep.subr.mxu0 0.0
  %332 = vmatpush1.msra.mxu0 0.0
  %333 = vmatprep.mubr.f32.mxu0 %v196
  %334 = vmatmul.mubr.f32.gmra.mrb[0].mxu0 %v17
  %v335 = vpop.f32.mrb[0].mxu0
  %v336 = vadd.f32 0.0, %v335
  %v337 = vpop.f32.mrb[0].mxu0
  %v338 = vadd.f32 0.0, %v337
  %339 = vdwg.mxu0
  %340 = vmatprep.subr.mxu0 %v24
  %341 = vmatpush1.msra.mxu0 %v23
  %342 = vmatprep.subr.mxu0 %v31
  %343 = vmatpush1.msra.mxu0 %v30
  %344 = vmatprep.subr.mxu0 %v38
  %345 = vmatpush1.msra.mxu0 %v37
  %346 = vmatprep.subr.mxu0 %v45
  %347 = vmatpush1.msra.mxu0 %v44
  %348 = vmatprep.subr.mxu0 %v52
  %349 = vmatpush1.msra.mxu0 %v51
  %350 = vmatprep.subr.mxu0 %v59
  %351 = vmatpush1.msra.mxu0 %v58
  %352 = vmatprep.subr.mxu0 %v66
  %353 = vmatpush1.msra.mxu0 %v65
  %354 = vmatprep.subr.mxu0 %v73
  %355 = vmatpush1.msra.mxu0 %v72
  %356 = vmatprep.subr.mxu0 %v80
  %357 = vmatpush1.msra.mxu0 %v79
  %358 = vmatprep.subr.mxu0 %v87
  %359 = vmatpush1.msra.mxu0 %v86
  %360 = vmatprep.subr.mxu0 %v94
  %361 = vmatpush1.msra.mxu0 %v93
  %362 = vmatprep.subr.mxu0 %v101
  %363 = vmatpush1.msra.mxu0 %v100
  %364 = vmatprep.subr.mxu0 %v108
  %365 = vmatpush1.msra.mxu0 %v107
  %366 = vmatprep.subr.mxu0 %v115
  %367 = vmatpush1.msra.mxu0 %v114
  %368 = vmatprep.subr.mxu0 %v122
  %369 = vmatpush1.msra.mxu0 %v121
  %370 = vmatprep.subr.mxu0 %v129
  %371 = vmatpush1.msra.mxu0 %v128
  %372 = vmatprep.subr.mxu0 %v136
  %373 = vmatpush1.msra.mxu0 %v135
  %374 = vmatprep.subr.mxu0 %v143
  %375 = vmatpush1.msra.mxu0 %v142
  %376 = vmatprep.subr.mxu0 %v150
  %377 = vmatpush1.msra.mxu0 %v149
  %378 = vmatprep.subr.mxu0 %v157
  %379 = vmatpush1.msra.mxu0 %v156
  %380 = vmatprep.subr.mxu0 %v164
  %381 = vmatpush1.msra.mxu0 %v163
  %382 = vmatprep.subr.mxu0 %v171
  %383 = vmatpush1.msra.mxu0 %v170
  %384 = vmatprep.subr.mxu0 %v178
  %385 = vmatpush1.msra.mxu0 %v177
  %386 = vmatprep.subr.mxu0 %v185
  %387 = vmatpush1.msra.mxu0 %v184
  %388 = vmatprep.subr.mxu0 %v192
  %389 = vmatpush1.msra.mxu0 %v191
  %390 = vmatprep.subr.mxu0 0.0
  %391 = vmatpush1.msra.mxu0 0.0
  %392 = vmatprep.subr.mxu0 0.0
  %393 = vmatpush1.msra.mxu0 0.0
  %394 = vmatprep.subr.mxu0 0.0
  %395 = vmatpush1.msra.mxu0 0.0
  %396 = vmatprep.subr.mxu0 0.0
  %397 = vmatpush1.msra.mxu0 0.0
  %398 = vmatprep.subr.mxu0 0.0
  %399 = vmatpush1.msra.mxu0 0.0
  %400 = vmatprep.subr.mxu0 0.0
  %401 = vmatpush1.msra.mxu0 0.0
  %402 = vmatprep.subr.mxu0 0.0
  %403 = vmatpush1.msra.mxu0 0.0
  %404 = vmatprep.mubr.f32.mxu0 %v196
  %405 = vmatmul.mubr.f32.gmra.mrb[0].mxu0 %v17
  %v406 = vpop.f32.mrb[0].mxu0
  %v407 = vadd.f32 0.0, %v406
  %v408 = vpop.f32.mrb[0].mxu0
  %v409 = vadd.f32 0.0, %v408
  %410 = vdwg.mxu0
  %411 = vmatprep.subr.mxu0 0.0
  %412 = vmatpush1.msra.mxu0 %v25
  %413 = vmatprep.subr.mxu0 0.0
  %414 = vmatpush1.msra.mxu0 %v32
  %415 = vmatprep.subr.mxu0 0.0
  %416 = vmatpush1.msra.mxu0 %v39
  %417 = vmatprep.subr.mxu0 0.0
  %418 = vmatpush1.msra.mxu0 %v46
  %419 = vmatprep.subr.mxu0 0.0
  %420 = vmatpush1.msra.mxu0 %v53
  %421 = vmatprep.subr.mxu0 0.0
  %422 = vmatpush1.msra.mxu0 %v60
  %423 = vmatprep.subr.mxu0 0.0
  %424 = vmatpush1.msra.mxu0 %v67
  %425 = vmatprep.subr.mxu0 0.0
  %426 = vmatpush1.msra.mxu0 %v74
  %427 = vmatprep.subr.mxu0 0.0
  %428 = vmatpush1.msra.mxu0 %v81
  %429 = vmatprep.subr.mxu0 0.0
  %430 = vmatpush1.msra.mxu0 %v88
  %431 = vmatprep.subr.mxu0 0.0
  %432 = vmatpush1.msra.mxu0 %v95
  %433 = vmatprep.subr.mxu0 0.0
  %434 = vmatpush1.msra.mxu0 %v102
  %435 = vmatprep.subr.mxu0 0.0
  %436 = vmatpush1.msra.mxu0 %v109
  %437 = vmatprep.subr.mxu0 0.0
  %438 = vmatpush1.msra.mxu0 %v116
  %439 = vmatprep.subr.mxu0 0.0
  %440 = vmatpush1.msra.mxu0 %v123
  %441 = vmatprep.subr.mxu0 0.0
  %442 = vmatpush1.msra.mxu0 %v130
  %443 = vmatprep.subr.mxu0 0.0
  %444 = vmatpush1.msra.mxu0 %v137
  %445 = vmatprep.subr.mxu0 0.0
  %446 = vmatpush1.msra.mxu0 %v144
  %447 = vmatprep.subr.mxu0 0.0
  %448 = vmatpush1.msra.mxu0 %v151
  %449 = vmatprep.subr.mxu0 0.0
  %450 = vmatpush1.msra.mxu0 %v158
  %451 = vmatprep.subr.mxu0 0.0
  %452 = vmatpush1.msra.mxu0 %v165
  %453 = vmatprep.subr.mxu0 0.0
  %454 = vmatpush1.msra.mxu0 %v172
  %455 = vmatprep.subr.mxu0 0.0
  %456 = vmatpush1.msra.mxu0 %v179
  %457 = vmatprep.subr.mxu0 0.0
  %458 = vmatpush1.msra.mxu0 %v186
  %459 = vmatprep.subr.mxu0 0.0
  %460 = vmatpush1.msra.mxu0 %v193
  %461 = vmatprep.subr.mxu0 0.0
  %462 = vmatpush1.msra.mxu0 0.0
  %463 = vmatprep.subr.mxu0 0.0
  %464 = vmatpush1.msra.mxu0 0.0
  %465 = vmatprep.subr.mxu0 0.0
  %466 = vmatpush1.msra.mxu0 0.0
  %467 = vmatprep.subr.mxu0 0.0
  %468 = vmatpush1.msra.mxu0 0.0
  %469 = vmatprep.subr.mxu0 0.0
  %470 = vmatpush1.msra.mxu0 0.0
  %471 = vmatprep.subr.mxu0 0.0
  %472 = vmatpush1.msra.mxu0 0.0
  %473 = vmatprep.subr.mxu0 0.0
  %474 = vmatpush1.msra.mxu0 0.0
  %475 = vmatprep.mubr.f32.mxu0 %v196
  %476 = vmatmul.mubr.f32.gmra.mrb[0].mxu0 %v17
  %v477 = vpop.f32.mrb[0].mxu0
  %v478 = vadd.f32 0.0, %v477
  %v479 = vpop.f32.mrb[0].mxu0
  %480 = vdwg.mxu0
  %v481 = vadd.f32 %v265, %v267
  %v482 = vadd.f32 %v481, %v336
  %v483 = vadd.f32 %v482, %v338
  %v484 = vadd.f32 %v483, %v407
  %v485 = vadd.f32 %v484, %v409
  %v486 = vadd.f32 %v485, %v478
  %487 = vadd.xlane.f32.xlu0 %v486
  %v488 = vpop.xlane.xlu0 %487
  %v489 = vmul.f32 %v265, %v265
  %v490 = vmul.f32 %v267, %v267
  %v491 = vmul.f32 %v336, %v336
  %v492 = vmul.f32 %v338, %v338
  %v493 = vmul.f32 %v407, %v407
  %v494 = vmul.f32 %v409, %v409
  %v495 = vmul.f32 %v478, %v478
  %v496 = vadd.f32 %v489, %v490
  %v497 = vadd.f32 %v496, %v491
  %v498 = vadd.f32 %v497, %v492
  %v499 = vadd.f32 %v498, %v493
  %v500 = vadd.f32 %v499, %v494
  %v501 = vadd.f32 %v500, %v495
  %502 = vadd.xlane.f32.xlu0 %v501
  %v503 = vpop.xlane.xlu0 %502
  %v504 = vmul.f32 %v488, 0.0011337869
  %v505 = vmul.f32 %v503, 0.0011337869
  %v506 = vmul.f32 %v504, %v504
  %v507 = vsub.f32 %v505, %v506
  %v508 = vmax.f32 %v507, 0.0
  %v509 = vsub.f32 %v265, %v504
  %v510 = vsub.f32 %v267, %v504
  %v511 = vsub.f32 %v336, %v504
  %v512 = vsub.f32 %v338, %v504
  %v513 = vsub.f32 %v407, %v504
  %v514 = vsub.f32 %v409, %v504
  %v515 = vsub.f32 %v478, %v504
  %v516 = vadd.f32 %v508, 1e-05
  %v517 = vrsqrt.pop %v516
  %v518 = vmul.f32 %v509, %v517
  %v519 = vmul.f32 %v510, %v517
  %v520 = vmul.f32 %v511, %v517
  %v521 = vmul.f32 %v512, %v517
  %v522 = vmul.f32 %v513, %v517
  %v523 = vmul.f32 %v514, %v517
  %v524 = vmul.f32 %v515, %v517
  %v525 = vld [vmem:[%s2] sm:$0xff]
  %527 = vset.pattern.permute.xlu0 0
  %528 = vperm.xlu0 %527, %v525
  %v529 = vpop.permute.xlu0 %528
  %v531 = vmul.f32 %v518, %v529
  %v532 = vmul.f32 %v519, %v529
  %v533 = vmul.f32 %v520, %v529
  %v534 = vmul.f32 %v521, %v529
  %v535 = vmul.f32 %v522, %v529
  %v536 = vmul.f32 %v523, %v529
  %v537 = vmul.f32 %v524, %v529
  %v538 = vld [vmem:[%s3] sm:$0xff]
  %540 = vset.pattern.permute.xlu0 0
  %541 = vperm.xlu0 %540, %v538
  %v542 = vpop.permute.xlu0 %541
  %v544 = vadd.f32 %v531, %v542
  %v545 = vadd.f32 %v532, %v542
  %v546 = vadd.f32 %v533, %v542
  %v547 = vadd.f32 %v534, %v542
  %v548 = vadd.f32 %v535, %v542
  %v549 = vadd.f32 %v536, %v542
  %v550 = vadd.f32 %v537, %v542
  %vm551 = vcmp.ge.f32.partialorder %v544, 0.0
  %vm552 = vcmp.ge.f32.partialorder %v545, 0.0
  %vm553 = vcmp.ge.f32.partialorder %v546, 0.0
  %vm554 = vcmp.ge.f32.partialorder %v547, 0.0
  %vm555 = vcmp.ge.f32.partialorder %v548, 0.0
  %vm556 = vcmp.ge.f32.partialorder %v549, 0.0
  %vm557 = vcmp.ge.f32.partialorder %v550, 0.0
  %v558 = vmul.f32 %v544, 0.01
  %v559 = vmul.f32 %v545, 0.01
  %v560 = vmul.f32 %v546, 0.01
  %v561 = vmul.f32 %v547, 0.01
  %v562 = vmul.f32 %v548, 0.01
  %v563 = vmul.f32 %v549, 0.01
  %v564 = vmul.f32 %v550, 0.01
  %v565 = vsel %vm551, %v544, %v558
  %v566 = vsel %vm552, %v545, %v559
  %v567 = vsel %vm553, %v546, %v560
  %v568 = vsel %vm554, %v547, %v561
  %v569 = vsel %vm555, %v548, %v562
  %v570 = vsel %vm556, %v549, %v563
  %v571 = vsel %vm557, %v550, %v564
  %572 = vst [vmem:[%s4] sm:$0xff] %v565
  %573 = vst [vmem:[%s4 + $0x8] sm:$0xff] %v566
  %574 = vst [vmem:[%s4 + $0x10] sm:$0xff] %v567
  %575 = vst [vmem:[%s4 + $0x18] sm:$0xff] %v568
  %576 = vst [vmem:[%s4 + $0x20] sm:$0xff] %v569
  %577 = vst [vmem:[%s4 + $0x28] sm:$0xff] %v570
  %578 = vst [vmem:[%s4 + $0x30] sm:$0xff] %v571
  // Predicated region
  $region18: #{conv45_decoder_forward.6} parent=0 // pred_check
    _
  $region19: #{conv45_decoder_forward.6} parent=0 // pred_check_branch
    %580 = sbr.rel (0) target = $region21
  $region20: #{conv45_decoder_forward.6} parent=0 // pred_region
    _
  $region21: #{conv45_decoder_forward.6} parent=0 // pred_fallthru
    _
  // Predicated region
  $region22: #{conv45_decoder_forward.6} parent=0 // pred_check
    _
  $region23: #{conv45_decoder_forward.6} parent=0 // pred_check_branch
    %582 = sbr.rel (0) target = $region25
  $region24: #{conv45_decoder_forward.6} parent=0 // pred_region
    _
  $region25: #{conv45_decoder_forward.6} parent=0 // pred_fallthru
    _

// kernel: conv45_decoder_forward.7
$region0: #{conv45_decoder_forward.7}
  #allocation0 [shape = 'u32[]', space=smem, size = 0x4, offset = 0x4, fixed_abs, tag = 'smem constant byte address 0x4 - core index']
  #allocation1 [shape = 'u32[144,128]{1,0:T(1,128)}', space=vmem, size = 0x12000, scoped, tag = 'internal scratch']
  %s0 = inlined_call_operand.vmem [shape: f32[8,200], index: 0, kind: input, shape index: {}]
  %s1 = inlined_call_operand.vmem [shape: f32[200,4096], index: 1, kind: input, shape index: {}]
  %s2 = inlined_call_operand.vmem [shape: f32[8,4096], index: 2, kind: output, shape index: {}]
  %s3 = sld [smem:[#allocation0]]
  $region18: #{conv45_decoder_forward.7} parent=0
    _
  %s5 = ssub.s32 1, %s3
  %s6 = scalar_select 0, %s5, %s3
  // Predicated region
  $region2: #{conv45_decoder_forward.7} parent=0 // pred_check
    _
  $region3: #{conv45_decoder_forward.7} parent=0 // pred_check_branch
    %8 = sbr.rel (0) target = $region5
  $region4: #{conv45_decoder_forward.7} parent=0 // pred_region
    _
  $region5: #{conv45_decoder_forward.7} parent=0 // pred_fallthru
    _
  // Predicated region
  $region6: #{conv45_decoder_forward.7} parent=0 // pred_check
    _
  $region7: #{conv45_decoder_forward.7} parent=0 // pred_check_branch
    %10 = sbr.rel (0) target = $region9
  $region8: #{conv45_decoder_forward.7} parent=0 // pred_region
    _
  $region9: #{conv45_decoder_forward.7} parent=0 // pred_fallthru
    _
  %v11 = vld [vmem:[%s0] sm:$0xff]
  %v12 = vld [vmem:[%s0 + $0x8] sm:$0xff]
  %v13 = vld [vmem:[%s1] sm:$0xff]
  %v14 = vld [vmem:[%s1 + $0x8] sm:$0xff]
  %v15 = vld [vmem:[%s1 + $0x10] sm:$0xff]
  %v16 = vld [vmem:[%s1 + $0x18] sm:$0xff]
  %v17 = vld [vmem:[%s1 + $0x20] sm:$0xff]
  %v18 = vld [vmem:[%s1 + $0x28] sm:$0xff]
  %v19 = vld [vmem:[%s1 + $0x30] sm:$0xff]
  %v20 = vld [vmem:[%s1 + $0x38] sm:$0xff]
  %v21 = vld [vmem:[%s1 + $0x40] sm:$0xff]
  %v22 = vld [vmem:[%s1 + $0x48] sm:$0xff]
  %v23 = vld [vmem:[%s1 + $0x50] sm:$0xff]
  %v24 = vld [vmem:[%s1 + $0x58] sm:$0xff]
  %v25 = vld [vmem:[%s1 + $0x60] sm:$0xff]
  %v26 = vld [vmem:[%s1 + $0x68] sm:$0xff]
  %v27 = vld [vmem:[%s1 + $0x70] sm:$0xff]
  %v28 = vld [vmem:[%s1 + $0x78] sm:$0xff]
  %v29 = vld [vmem:[%s1 + $0x80] sm:$0xff]
  %v30 = vld [vmem:[%s1 + $0x88] sm:$0xff]
  %v31 = vld [vmem:[%s1 + $0x90] sm:$0xff]
  %v32 = vld [vmem:[%s1 + $0x98] sm:$0xff]
  %v33 = vld [vmem:[%s1 + $0xa0] sm:$0xff]
  %v34 = vld [vmem:[%s1 + $0xa8] sm:$0xff]
  %v35 = vld [vmem:[%s1 + $0xb0] sm:$0xff]
  %v36 = vld [vmem:[%s1 + $0xb8] sm:$0xff]
  %v37 = vld [vmem:[%s1 + $0xc0] sm:$0xff]
  %v38 = vld [vmem:[%s1 + $0xc8] sm:$0xff]
  %v39 = vld [vmem:[%s1 + $0xd0] sm:$0xff]
  %v40 = vld [vmem:[%s1 + $0xd8] sm:$0xff]
  %v41 = vld [vmem:[%s1 + $0xe0] sm:$0xff]
  %v42 = vld [vmem:[%s1 + $0xe8] sm:$0xff]
  %v43 = vld [vmem:[%s1 + $0xf0] sm:$0xff]
  %v44 = vld [vmem:[%s1 + $0xf8] sm:$0xff]
  %v45 = vld [vmem:[%s1 + $0x100] sm:$0xff]
  %v46 = vld [vmem:[%s1 + $0x108] sm:$0xff]
  %v47 = vld [vmem:[%s1 + $0x110] sm:$0xff]
  %v48 = vld [vmem:[%s1 + $0x118] sm:$0xff]
  %v49 = vld [vmem:[%s1 + $0x120] sm:$0xff]
  %v50 = vld [vmem:[%s1 + $0x128] sm:$0xff]
  %v51 = vld [vmem:[%s1 + $0x130] sm:$0xff]
  %v52 = vld [vmem:[%s1 + $0x138] sm:$0xff]
  %v53 = vld [vmem:[%s1 + $0x140] sm:$0xff]
  %v54 = vld [vmem:[%s1 + $0x148] sm:$0xff]
  %v55 = vld [vmem:[%s1 + $0x150] sm:$0xff]
  %v56 = vld [vmem:[%s1 + $0x158] sm:$0xff]
  %v57 = vld [vmem:[%s1 + $0x160] sm:$0xff]
  %v58 = vld [vmem:[%s1 + $0x168] sm:$0xff]
  %v59 = vld [vmem:[%s1 + $0x170] sm:$0xff]
  %v60 = vld [vmem:[%s1 + $0x178] sm:$0xff]
  %v61 = vld [vmem:[%s1 + $0x180] sm:$0xff]
  %v62 = vld [vmem:[%s1 + $0x188] sm:$0xff]
  %v63 = vld [vmem:[%s1 + $0x190] sm:$0xff]
  %v64 = vld [vmem:[%s1 + $0x198] sm:$0xff]
  %v65 = vld [vmem:[%s1 + $0x1a0] sm:$0xff]
  %v66 = vld [vmem:[%s1 + $0x1a8] sm:$0xff]
  %v67 = vld [vmem:[%s1 + $0x1b0] sm:$0xff]
  %v68 = vld [vmem:[%s1 + $0x1b8] sm:$0xff]
  %v69 = vld [vmem:[%s1 + $0x1c0] sm:$0xff]
  %v70 = vld [vmem:[%s1 + $0x1c8] sm:$0xff]
  %v71 = vld [vmem:[%s1 + $0x1d0] sm:$0xff]
  %v72 = vld [vmem:[%s1 + $0x1d8] sm:$0xff]
  %v73 = vld [vmem:[%s1 + $0x1e0] sm:$0xff]
  %v74 = vld [vmem:[%s1 + $0x1e8] sm:$0xff]
  %v75 = vld [vmem:[%s1 + $0x1f0] sm:$0xff]
  %v76 = vld [vmem:[%s1 + $0x1f8] sm:$0xff]
  %v77 = vld [vmem:[%s1 + $0x200] sm:$0xff]
  %v78 = vld [vmem:[%s1 + $0x208] sm:$0xff]
  %v79 = vld [vmem:[%s1 + $0x210] sm:$0xff]
  %v80 = vld [vmem:[%s1 + $0x218] sm:$0xff]
  %v81 = vld [vmem:[%s1 + $0x220] sm:$0xff]
  %v82 = vld [vmem:[%s1 + $0x228] sm:$0xff]
  %v83 = vld [vmem:[%s1 + $0x230] sm:$0xff]
  %v84 = vld [vmem:[%s1 + $0x238] sm:$0xff]
  %v85 = vld [vmem:[%s1 + $0x240] sm:$0xff]
  %v86 = vld [vmem:[%s1 + $0x248] sm:$0xff]
  %v87 = vld [vmem:[%s1 + $0x250] sm:$0xff]
  %v88 = vld [vmem:[%s1 + $0x258] sm:$0xff]
  %v89 = vld [vmem:[%s1 + $0x260] sm:$0xff]
  %v90 = vld [vmem:[%s1 + $0x268] sm:$0xff]
  %v91 = vld [vmem:[%s1 + $0x270] sm:$0xff]
  %v92 = vld [vmem:[%s1 + $0x278] sm:$0xff]
  %v93 = vld [vmem:[%s1 + $0x280] sm:$0xff]
  %v94 = vld [vmem:[%s1 + $0x288] sm:$0xff]
  %v95 = vld [vmem:[%s1 + $0x290] sm:$0xff]
  %v96 = vld [vmem:[%s1 + $0x298] sm:$0xff]
  %v97 = vld [vmem:[%s1 + $0x2a0] sm:$0xff]
  %v98 = vld [vmem:[%s1 + $0x2a8] sm:$0xff]
  %v99 = vld [vmem:[%s1 + $0x2b0] sm:$0xff]
  %v100 = vld [vmem:[%s1 + $0x2b8] sm:$0xff]
  %v101 = vld [vmem:[%s1 + $0x2c0] sm:$0xff]
  %v102 = vld [vmem:[%s1 + $0x2c8] sm:$0xff]
  %v103 = vld [vmem:[%s1 + $0x2d0] sm:$0xff]
  %v104 = vld [vmem:[%s1 + $0x2d8] sm:$0xff]
  %v105 = vld [vmem:[%s1 + $0x2e0] sm:$0xff]
  %v106 = vld [vmem:[%s1 + $0x2e8] sm:$0xff]
  %v107 = vld [vmem:[%s1 + $0x2f0] sm:$0xff]
  %v108 = vld [vmem:[%s1 + $0x2f8] sm:$0xff]
  %v109 = vld [vmem:[%s1 + $0x300] sm:$0xff]
  %v110 = vld [vmem:[%s1 + $0x308] sm:$0xff]
  %v111 = vld [vmem:[%s1 + $0x310] sm:$0xff]
  %v112 = vld [vmem:[%s1 + $0x318] sm:$0xff]
  %v113 = vld [vmem:[%s1 + $0x320] sm:$0xff]
  %v114 = vld [vmem:[%s1 + $0x328] sm:$0xff]
  %v115 = vld [vmem:[%s1 + $0x330] sm:$0xff]
  %v116 = vld [vmem:[%s1 + $0x338] sm:$0xff]
  %v117 = vld [vmem:[%s1 + $0x340] sm:$0xff]
  %v118 = vld [vmem:[%s1 + $0x348] sm:$0xff]
  %v119 = vld [vmem:[%s1 + $0x350] sm:$0xff]
  %v120 = vld [vmem:[%s1 + $0x358] sm:$0xff]
  %v121 = vld [vmem:[%s1 + $0x360] sm:$0xff]
  %v122 = vld [vmem:[%s1 + $0x368] sm:$0xff]
  %v123 = vld [vmem:[%s1 + $0x370] sm:$0xff]
  %v124 = vld [vmem:[%s1 + $0x378] sm:$0xff]
  %v125 = vld [vmem:[%s1 + $0x380] sm:$0xff]
  %v126 = vld [vmem:[%s1 + $0x388] sm:$0xff]
  %v127 = vld [vmem:[%s1 + $0x390] sm:$0xff]
  %v128 = vld [vmem:[%s1 + $0x398] sm:$0xff]
  %v129 = vld [vmem:[%s1 + $0x3a0] sm:$0xff]
  %v130 = vld [vmem:[%s1 + $0x3a8] sm:$0xff]
  %v131 = vld [vmem:[%s1 + $0x3b0] sm:$0xff]
  %v132 = vld [vmem:[%s1 + $0x3b8] sm:$0xff]
  %v133 = vld [vmem:[%s1 + $0x3c0] sm:$0xff]
  %v134 = vld [vmem:[%s1 + $0x3c8] sm:$0xff]
  %v135 = vld [vmem:[%s1 + $0x3d0] sm:$0xff]
  %v136 = vld [vmem:[%s1 + $0x3d8] sm:$0xff]
  %v137 = vld [vmem:[%s1 + $0x3e0] sm:$0xff]
  %v138 = vld [vmem:[%s1 + $0x3e8] sm:$0xff]
  %v139 = vld [vmem:[%s1 + $0x3f0] sm:$0xff]
  %v140 = vld [vmem:[%s1 + $0x3f8] sm:$0xff]
  %v141 = vld [vmem:[%s1 + $0x400] sm:$0xff]
  %v142 = vld [vmem:[%s1 + $0x408] sm:$0xff]
  %v143 = vld [vmem:[%s1 + $0x410] sm:$0xff]
  %v144 = vld [vmem:[%s1 + $0x418] sm:$0xff]
  %v145 = vld [vmem:[%s1 + $0x420] sm:$0xff]
  %v146 = vld [vmem:[%s1 + $0x428] sm:$0xff]
  %v147 = vld [vmem:[%s1 + $0x430] sm:$0xff]
  %v148 = vld [vmem:[%s1 + $0x438] sm:$0xff]
  %v149 = vld [vmem:[%s1 + $0x440] sm:$0xff]
  %v150 = vld [vmem:[%s1 + $0x448] sm:$0xff]
  %v151 = vld [vmem:[%s1 + $0x450] sm:$0xff]
  %v152 = vld [vmem:[%s1 + $0x458] sm:$0xff]
  %v153 = vld [vmem:[%s1 + $0x460] sm:$0xff]
  %v154 = vld [vmem:[%s1 + $0x468] sm:$0xff]
  %v155 = vld [vmem:[%s1 + $0x470] sm:$0xff]
  %v156 = vld [vmem:[%s1 + $0x478] sm:$0xff]
  %v157 = vld [vmem:[%s1 + $0x480] sm:$0xff]
  %v158 = vld [vmem:[%s1 + $0x488] sm:$0xff]
  %v159 = vld [vmem:[%s1 + $0x490] sm:$0xff]
  %v160 = vld [vmem:[%s1 + $0x498] sm:$0xff]
  %v161 = vld [vmem:[%s1 + $0x4a0] sm:$0xff]
  %v162 = vld [vmem:[%s1 + $0x4a8] sm:$0xff]
  %v163 = vld [vmem:[%s1 + $0x4b0] sm:$0xff]
  %v164 = vld [vmem:[%s1 + $0x4b8] sm:$0xff]
  %v165 = vld [vmem:[%s1 + $0x4c0] sm:$0xff]
  %v166 = vld [vmem:[%s1 + $0x4c8] sm:$0xff]
  %v167 = vld [vmem:[%s1 + $0x4d0] sm:$0xff]
  %v168 = vld [vmem:[%s1 + $0x4d8] sm:$0xff]
  %v169 = vld [vmem:[%s1 + $0x4e0] sm:$0xff]
  %v170 = vld [vmem:[%s1 + $0x4e8] sm:$0xff]
  %v171 = vld [vmem:[%s1 + $0x4f0] sm:$0xff]
  %v172 = vld [vmem:[%s1 + $0x4f8] sm:$0xff]
  %v173 = vld [vmem:[%s1 + $0x500] sm:$0xff]
  %v174 = vld [vmem:[%s1 + $0x508] sm:$0xff]
  %v175 = vld [vmem:[%s1 + $0x510] sm:$0xff]
  %v176 = vld [vmem:[%s1 + $0x518] sm:$0xff]
  %v177 = vld [vmem:[%s1 + $0x520] sm:$0xff]
  %v178 = vld [vmem:[%s1 + $0x528] sm:$0xff]
  %v179 = vld [vmem:[%s1 + $0x530] sm:$0xff]
  %v180 = vld [vmem:[%s1 + $0x538] sm:$0xff]
  %v181 = vld [vmem:[%s1 + $0x540] sm:$0xff]
  %v182 = vld [vmem:[%s1 + $0x548] sm:$0xff]
  %v183 = vld [vmem:[%s1 + $0x550] sm:$0xff]
  %v184 = vld [vmem:[%s1 + $0x558] sm:$0xff]
  %v185 = vld [vmem:[%s1 + $0x560] sm:$0xff]
  %v186 = vld [vmem:[%s1 + $0x568] sm:$0xff]
  %v187 = vld [vmem:[%s1 + $0x570] sm:$0xff]
  %v188 = vld [vmem:[%s1 + $0x578] sm:$0xff]
  %v189 = vld [vmem:[%s1 + $0x580] sm:$0xff]
  %v190 = vld [vmem:[%s1 + $0x588] sm:$0xff]
  %v191 = vld [vmem:[%s1 + $0x590] sm:$0xff]
  %v192 = vld [vmem:[%s1 + $0x598] sm:$0xff]
  %v193 = vld [vmem:[%s1 + $0x5a0] sm:$0xff]
  %v194 = vld [vmem:[%s1 + $0x5a8] sm:$0xff]
  %v195 = vld [vmem:[%s1 + $0x5b0] sm:$0xff]
  %v196 = vld [vmem:[%s1 + $0x5b8] sm:$0xff]
  %v197 = vld [vmem:[%s1 + $0x5c0] sm:$0xff]
  %v198 = vld [vmem:[%s1 + $0x5c8] sm:$0xff]
  %v199 = vld [vmem:[%s1 + $0x5d0] sm:$0xff]
  %v200 = vld [vmem:[%s1 + $0x5d8] sm:$0xff]
  %v201 = vld [vmem:[%s1 + $0x5e0] sm:$0xff]
  %v202 = vld [vmem:[%s1 + $0x5e8] sm:$0xff]
  %v203 = vld [vmem:[%s1 + $0x5f0] sm:$0xff]
  %v204 = vld [vmem:[%s1 + $0x5f8] sm:$0xff]
  %v205 = vld [vmem:[%s1 + $0x600] sm:$0xff]
  %v206 = vld [vmem:[%s1 + $0x608] sm:$0xff]
  %v207 = vld [vmem:[%s1 + $0x610] sm:$0xff]
  %v208 = vld [vmem:[%s1 + $0x618] sm:$0xff]
  %v209 = vld [vmem:[%s1 + $0x620] sm:$0xff]
  %v210 = vld [vmem:[%s1 + $0x628] sm:$0xff]
  %v211 = vld [vmem:[%s1 + $0x630] sm:$0xff]
  %v212 = vld [vmem:[%s1 + $0x638] sm:$0xff]
  %v213 = vld [vmem:[%s1 + $0x640] sm:$0xff]
  %v214 = vld [vmem:[%s1 + $0x648] sm:$0xff]
  %v215 = vld [vmem:[%s1 + $0x650] sm:$0xff]
  %v216 = vld [vmem:[%s1 + $0x658] sm:$0xff]
  %v217 = vld [vmem:[%s1 + $0x660] sm:$0xff]
  %v218 = vld [vmem:[%s1 + $0x668] sm:$0xff]
  %v219 = vld [vmem:[%s1 + $0x670] sm:$0xff]
  %v220 = vld [vmem:[%s1 + $0x678] sm:$0xff]
  %v221 = vld [vmem:[%s1 + $0x680] sm:$0xff]
  %v222 = vld [vmem:[%s1 + $0x688] sm:$0xff]
  %v223 = vld [vmem:[%s1 + $0x690] sm:$0xff]
  %v224 = vld [vmem:[%s1 + $0x698] sm:$0xff]
  %v225 = vld [vmem:[%s1 + $0x6a0] sm:$0xff]
  %v226 = vld [vmem:[%s1 + $0x6a8] sm:$0xff]
  %v227 = vld [vmem:[%s1 + $0x6b0] sm:$0xff]
  %v228 = vld [vmem:[%s1 + $0x6b8] sm:$0xff]
  %v229 = vld [vmem:[%s1 + $0x6c0] sm:$0xff]
  %v230 = vld [vmem:[%s1 + $0x6c8] sm:$0xff]
  %v231 = vld [vmem:[%s1 + $0x6d0] sm:$0xff]
  %v232 = vld [vmem:[%s1 + $0x6d8] sm:$0xff]
  %v233 = vld [vmem:[%s1 + $0x6e0] sm:$0xff]
  %v234 = vld [vmem:[%s1 + $0x6e8] sm:$0xff]
  %v235 = vld [vmem:[%s1 + $0x6f0] sm:$0xff]
  %v236 = vld [vmem:[%s1 + $0x6f8] sm:$0xff]
  %v237 = vld [vmem:[%s1 + $0x700] sm:$0xff]
  %v238 = vld [vmem:[%s1 + $0x708] sm:$0xff]
  %v239 = vld [vmem:[%s1 + $0x710] sm:$0xff]
  %v240 = vld [vmem:[%s1 + $0x718] sm:$0xff]
  %v241 = vld [vmem:[%s1 + $0x720] sm:$0xff]
  %v242 = vld [vmem:[%s1 + $0x728] sm:$0xff]
  %v243 = vld [vmem:[%s1 + $0x730] sm:$0xff]
  %v244 = vld [vmem:[%s1 + $0x738] sm:$0xff]
  %v245 = vld [vmem:[%s1 + $0x740] sm:$0xff]
  %v246 = vld [vmem:[%s1 + $0x748] sm:$0xff]
  %v247 = vld [vmem:[%s1 + $0x750] sm:$0xff]
  %v248 = vld [vmem:[%s1 + $0x758] sm:$0xff]
  %v249 = vld [vmem:[%s1 + $0x760] sm:$0xff]
  %v250 = vld [vmem:[%s1 + $0x768] sm:$0xff]
  %v251 = vld [vmem:[%s1 + $0x770] sm:$0xff]
  %v252 = vld [vmem:[%s1 + $0x778] sm:$0xff]
  %v253 = vld [vmem:[%s1 + $0x780] sm:$0xff]
  %v254 = vld [vmem:[%s1 + $0x788] sm:$0xff]
  %v255 = vld [vmem:[%s1 + $0x790] sm:$0xff]
  %v256 = vld [vmem:[%s1 + $0x798] sm:$0xff]
  %v257 = vld [vmem:[%s1 + $0x7a0] sm:$0xff]
  %v258 = vld [vmem:[%s1 + $0x7a8] sm:$0xff]
  %v259 = vld [vmem:[%s1 + $0x7b0] sm:$0xff]
  %v260 = vld [vmem:[%s1 + $0x7b8] sm:$0xff]
  %v261 = vld [vmem:[%s1 + $0x7c0] sm:$0xff]
  %v262 = vld [vmem:[%s1 + $0x7c8] sm:$0xff]
  %v263 = vld [vmem:[%s1 + $0x7d0] sm:$0xff]
  %v264 = vld [vmem:[%s1 + $0x7d8] sm:$0xff]
  %v265 = vld [vmem:[%s1 + $0x7e0] sm:$0xff]
  %v266 = vld [vmem:[%s1 + $0x7e8] sm:$0xff]
  %v267 = vld [vmem:[%s1 + $0x7f0] sm:$0xff]
  %v268 = vld [vmem:[%s1 + $0x7f8] sm:$0xff]
  %v269 = vld [vmem:[%s1 + $0x800] sm:$0xff]
  %v270 = vld [vmem:[%s1 + $0x808] sm:$0xff]
  %v271 = vld [vmem:[%s1 + $0x810] sm:$0xff]
  %v272 = vld [vmem:[%s1 + $0x818] sm:$0xff]
  %v273 = vld [vmem:[%s1 + $0x820] sm:$0xff]
  %v274 = vld [vmem:[%s1 + $0x828] sm:$0xff]
  %v275 = vld [vmem:[%s1 + $0x830] sm:$0xff]
  %v276 = vld [vmem:[%s1 + $0x838] sm:$0xff]
  %v277 = vld [vmem:[%s1 + $0x840] sm:$0xff]
  %v278 = vld [vmem:[%s1 + $0x848] sm:$0xff]
  %v279 = vld [vmem:[%s1 + $0x850] sm:$0xff]
  %v280 = vld [vmem:[%s1 + $0x858] sm:$0xff]
  %v281 = vld [vmem:[%s1 + $0x860] sm:$0xff]
  %v282 = vld [vmem:[%s1 + $0x868] sm:$0xff]
  %v283 = vld [vmem:[%s1 + $0x870] sm:$0xff]
  %v284 = vld [vmem:[%s1 + $0x878] sm:$0xff]
  %v285 = vld [vmem:[%s1 + $0x880] sm:$0xff]
  %v286 = vld [vmem:[%s1 + $0x888] sm:$0xff]
  %v287 = vld [vmem:[%s1 + $0x890] sm:$0xff]
  %v288 = vld [vmem:[%s1 + $0x898] sm:$0xff]
  %v289 = vld [vmem:[%s1 + $0x8a0] sm:$0xff]
  %v290 = vld [vmem:[%s1 + $0x8a8] sm:$0xff]
  %v291 = vld [vmem:[%s1 + $0x8b0] sm:$0xff]
  %v292 = vld [vmem:[%s1 + $0x8b8] sm:$0xff]
  %v293 = vld [vmem:[%s1 + $0x8c0] sm:$0xff]
  %v294 = vld [vmem:[%s1 + $0x8c8] sm:$0xff]
  %v295 = vld [vmem:[%s1 + $0x8d0] sm:$0xff]
  %v296 = vld [vmem:[%s1 + $0x8d8] sm:$0xff]
  %v297 = vld [vmem:[%s1 + $0x8e0] sm:$0xff]
  %v298 = vld [vmem:[%s1 + $0x8e8] sm:$0xff]
  %v299 = vld [vmem:[%s1 + $0x8f0] sm:$0xff]
  %v300 = vld [vmem:[%s1 + $0x8f8] sm:$0xff]
  %v301 = vld [vmem:[%s1 + $0x900] sm:$0xff]
  %v302 = vld [vmem:[%s1 + $0x908] sm:$0xff]
  %v303 = vld [vmem:[%s1 + $0x910] sm:$0xff]
  %v304 = vld [vmem:[%s1 + $0x918] sm:$0xff]
  %v305 = vld [vmem:[%s1 + $0x920] sm:$0xff]
  %v306 = vld [vmem:[%s1 + $0x928] sm:$0xff]
  %v307 = vld [vmem:[%s1 + $0x930] sm:$0xff]
  %v308 = vld [vmem:[%s1 + $0x938] sm:$0xff]
  %v309 = vld [vmem:[%s1 + $0x940] sm:$0xff]
  %v310 = vld [vmem:[%s1 + $0x948] sm:$0xff]
  %v311 = vld [vmem:[%s1 + $0x950] sm:$0xff]
  %v312 = vld [vmem:[%s1 + $0x958] sm:$0xff]
  %v313 = vld [vmem:[%s1 + $0x960] sm:$0xff]
  %v314 = vld [vmem:[%s1 + $0x968] sm:$0xff]
  %v315 = vld [vmem:[%s1 + $0x970] sm:$0xff]
  %v316 = vld [vmem:[%s1 + $0x978] sm:$0xff]
  %v317 = vld [vmem:[%s1 + $0x980] sm:$0xff]
  %v318 = vld [vmem:[%s1 + $0x988] sm:$0xff]
  %v319 = vld [vmem:[%s1 + $0x990] sm:$0xff]
  %v320 = vld [vmem:[%s1 + $0x998] sm:$0xff]
  %v321 = vld [vmem:[%s1 + $0x9a0] sm:$0xff]
  %v322 = vld [vmem:[%s1 + $0x9a8] sm:$0xff]
  %v323 = vld [vmem:[%s1 + $0x9b0] sm:$0xff]
  %v324 = vld [vmem:[%s1 + $0x9b8] sm:$0xff]
  %v325 = vld [vmem:[%s1 + $0x9c0] sm:$0xff]
  %v326 = vld [vmem:[%s1 + $0x9c8] sm:$0xff]
  %v327 = vld [vmem:[%s1 + $0x9d0] sm:$0xff]
  %v328 = vld [vmem:[%s1 + $0x9d8] sm:$0xff]
  %v329 = vld [vmem:[%s1 + $0x9e0] sm:$0xff]
  %v330 = vld [vmem:[%s1 + $0x9e8] sm:$0xff]
  %v331 = vld [vmem:[%s1 + $0x9f0] sm:$0xff]
  %v332 = vld [vmem:[%s1 + $0x9f8] sm:$0xff]
  %v333 = vld [vmem:[%s1 + $0xa00] sm:$0xff]
  %v334 = vld [vmem:[%s1 + $0xa08] sm:$0xff]
  %v335 = vld [vmem:[%s1 + $0xa10] sm:$0xff]
  %v336 = vld [vmem:[%s1 + $0xa18] sm:$0xff]
  %v337 = vld [vmem:[%s1 + $0xa20] sm:$0xff]
  %v338 = vld [vmem:[%s1 + $0xa28] sm:$0xff]
  %v339 = vld [vmem:[%s1 + $0xa30] sm:$0xff]
  %v340 = vld [vmem:[%s1 + $0xa38] sm:$0xff]
  %v341 = vld [vmem:[%s1 + $0xa40] sm:$0xff]
  %v342 = vld [vmem:[%s1 + $0xa48] sm:$0xff]
  %v343 = vld [vmem:[%s1 + $0xa50] sm:$0xff]
  %v344 = vld [vmem:[%s1 + $0xa58] sm:$0xff]
  %v345 = vld [vmem:[%s1 + $0xa60] sm:$0xff]
  %v346 = vld [vmem:[%s1 + $0xa68] sm:$0xff]
  %v347 = vld [vmem:[%s1 + $0xa70] sm:$0xff]
  %v348 = vld [vmem:[%s1 + $0xa78] sm:$0xff]
  %v349 = vld [vmem:[%s1 + $0xa80] sm:$0xff]
  %v350 = vld [vmem:[%s1 + $0xa88] sm:$0xff]
  %v351 = vld [vmem:[%s1 + $0xa90] sm:$0xff]
  %v352 = vld [vmem:[%s1 + $0xa98] sm:$0xff]
  %v353 = vld [vmem:[%s1 + $0xaa0] sm:$0xff]
  %v354 = vld [vmem:[%s1 + $0xaa8] sm:$0xff]
  %v355 = vld [vmem:[%s1 + $0xab0] sm:$0xff]
  %v356 = vld [vmem:[%s1 + $0xab8] sm:$0xff]
  %v357 = vld [vmem:[%s1 + $0xac0] sm:$0xff]
  %v358 = vld [vmem:[%s1 + $0xac8] sm:$0xff]
  %v359 = vld [vmem:[%s1 + $0xad0] sm:$0xff]
  %v360 = vld [vmem:[%s1 + $0xad8] sm:$0xff]
  %v361 = vld [vmem:[%s1 + $0xae0] sm:$0xff]
  %v362 = vld [vmem:[%s1 + $0xae8] sm:$0xff]
  %v363 = vld [vmem:[%s1 + $0xaf0] sm:$0xff]
  %v364 = vld [vmem:[%s1 + $0xaf8] sm:$0xff]
  %v365 = vld [vmem:[%s1 + $0xb00] sm:$0xff]
  %v366 = vld [vmem:[%s1 + $0xb08] sm:$0xff]
  %v367 = vld [vmem:[%s1 + $0xb10] sm:$0xff]
  %v368 = vld [vmem:[%s1 + $0xb18] sm:$0xff]
  %v369 = vld [vmem:[%s1 + $0xb20] sm:$0xff]
  %v370 = vld [vmem:[%s1 + $0xb28] sm:$0xff]
  %v371 = vld [vmem:[%s1 + $0xb30] sm:$0xff]
  %v372 = vld [vmem:[%s1 + $0xb38] sm:$0xff]
  %v373 = vld [vmem:[%s1 + $0xb40] sm:$0xff]
  %v374 = vld [vmem:[%s1 + $0xb48] sm:$0xff]
  %v375 = vld [vmem:[%s1 + $0xb50] sm:$0xff]
  %v376 = vld [vmem:[%s1 + $0xb58] sm:$0xff]
  %v377 = vld [vmem:[%s1 + $0xb60] sm:$0xff]
  %v378 = vld [vmem:[%s1 + $0xb68] sm:$0xff]
  %v379 = vld [vmem:[%s1 + $0xb70] sm:$0xff]
  %v380 = vld [vmem:[%s1 + $0xb78] sm:$0xff]
  %v381 = vld [vmem:[%s1 + $0xb80] sm:$0xff]
  %v382 = vld [vmem:[%s1 + $0xb88] sm:$0xff]
  %v383 = vld [vmem:[%s1 + $0xb90] sm:$0xff]
  %v384 = vld [vmem:[%s1 + $0xb98] sm:$0xff]
  %v385 = vld [vmem:[%s1 + $0xba0] sm:$0xff]
  %v386 = vld [vmem:[%s1 + $0xba8] sm:$0xff]
  %v387 = vld [vmem:[%s1 + $0xbb0] sm:$0xff]
  %v388 = vld [vmem:[%s1 + $0xbb8] sm:$0xff]
  %v389 = vld [vmem:[%s1 + $0xbc0] sm:$0xff]
  %v390 = vld [vmem:[%s1 + $0xbc8] sm:$0xff]
  %v391 = vld [vmem:[%s1 + $0xbd0] sm:$0xff]
  %v392 = vld [vmem:[%s1 + $0xbd8] sm:$0xff]
  %v393 = vld [vmem:[%s1 + $0xbe0] sm:$0xff]
  %v394 = vld [vmem:[%s1 + $0xbe8] sm:$0xff]
  %v395 = vld [vmem:[%s1 + $0xbf0] sm:$0xff]
  %v396 = vld [vmem:[%s1 + $0xbf8] sm:$0xff]
  %v397 = vld [vmem:[%s1 + $0xc00] sm:$0xff]
  %v398 = vld [vmem:[%s1 + $0xc08] sm:$0xff]
  %v399 = vld [vmem:[%s1 + $0xc10] sm:$0xff]
  %v400 = vld [vmem:[%s1 + $0xc18] sm:$0xff]
  %v401 = vld [vmem:[%s1 + $0xc20] sm:$0xff]
  %v402 = vld [vmem:[%s1 + $0xc28] sm:$0xff]
  %v403 = vld [vmem:[%s1 + $0xc30] sm:$0xff]
  %v404 = vld [vmem:[%s1 + $0xc38] sm:$0xff]
  %v405 = vld [vmem:[%s1 + $0xc40] sm:$0xff]
  %v406 = vld [vmem:[%s1 + $0xc48] sm:$0xff]
  %v407 = vld [vmem:[%s1 + $0xc50] sm:$0xff]
  %v408 = vld [vmem:[%s1 + $0xc58] sm:$0xff]
  %v409 = vld [vmem:[%s1 + $0xc60] sm:$0xff]
  %v410 = vld [vmem:[%s1 + $0xc68] sm:$0xff]
  %v411 = vld [vmem:[%s1 + $0xc70] sm:$0xff]
  %v412 = vld [vmem:[%s1 + $0xc78] sm:$0xff]
  %v413 = vld [vmem:[%s1 + $0xc80] sm:$0xff]
  %v414 = vld [vmem:[%s1 + $0xc88] sm:$0xff]
  %v415 = vld [vmem:[%s1 + $0xc90] sm:$0xff]
  %v416 = vld [vmem:[%s1 + $0xc98] sm:$0xff]
  %v417 = vld [vmem:[%s1 + $0xca0] sm:$0xff]
  %v418 = vld [vmem:[%s1 + $0xca8] sm:$0xff]
  %v419 = vld [vmem:[%s1 + $0xcb0] sm:$0xff]
  %v420 = vld [vmem:[%s1 + $0xcb8] sm:$0xff]
  %v421 = vld [vmem:[%s1 + $0xcc0] sm:$0xff]
  %v422 = vld [vmem:[%s1 + $0xcc8] sm:$0xff]
  %v423 = vld [vmem:[%s1 + $0xcd0] sm:$0xff]
  %v424 = vld [vmem:[%s1 + $0xcd8] sm:$0xff]
  %v425 = vld [vmem:[%s1 + $0xce0] sm:$0xff]
  %v426 = vld [vmem:[%s1 + $0xce8] sm:$0xff]
  %v427 = vld [vmem:[%s1 + $0xcf0] sm:$0xff]
  %v428 = vld [vmem:[%s1 + $0xcf8] sm:$0xff]
  %v429 = vld [vmem:[%s1 + $0xd00] sm:$0xff]
  %v430 = vld [vmem:[%s1 + $0xd08] sm:$0xff]
  %v431 = vld [vmem:[%s1 + $0xd10] sm:$0xff]
  %v432 = vld [vmem:[%s1 + $0xd18] sm:$0xff]
  %v433 = vld [vmem:[%s1 + $0xd20] sm:$0xff]
  %v434 = vld [vmem:[%s1 + $0xd28] sm:$0xff]
  %v435 = vld [vmem:[%s1 + $0xd30] sm:$0xff]
  %v436 = vld [vmem:[%s1 + $0xd38] sm:$0xff]
  %v437 = vld [vmem:[%s1 + $0xd40] sm:$0xff]
  %v438 = vld [vmem:[%s1 + $0xd48] sm:$0xff]
  %v439 = vld [vmem:[%s1 + $0xd50] sm:$0xff]
  %v440 = vld [vmem:[%s1 + $0xd58] sm:$0xff]
  %v441 = vld [vmem:[%s1 + $0xd60] sm:$0xff]
  %v442 = vld [vmem:[%s1 + $0xd68] sm:$0xff]
  %v443 = vld [vmem:[%s1 + $0xd70] sm:$0xff]
  %v444 = vld [vmem:[%s1 + $0xd78] sm:$0xff]
  %v445 = vld [vmem:[%s1 + $0xd80] sm:$0xff]
  %v446 = vld [vmem:[%s1 + $0xd88] sm:$0xff]
  %v447 = vld [vmem:[%s1 + $0xd90] sm:$0xff]
  %v448 = vld [vmem:[%s1 + $0xd98] sm:$0xff]
  %v449 = vld [vmem:[%s1 + $0xda0] sm:$0xff]
  %v450 = vld [vmem:[%s1 + $0xda8] sm:$0xff]
  %v451 = vld [vmem:[%s1 + $0xdb0] sm:$0xff]
  %v452 = vld [vmem:[%s1 + $0xdb8] sm:$0xff]
  %v453 = vld [vmem:[%s1 + $0xdc0] sm:$0xff]
  %v454 = vld [vmem:[%s1 + $0xdc8] sm:$0xff]
  %v455 = vld [vmem:[%s1 + $0xdd0] sm:$0xff]
  %v456 = vld [vmem:[%s1 + $0xdd8] sm:$0xff]
  %v457 = vld [vmem:[%s1 + $0xde0] sm:$0xff]
  %v458 = vld [vmem:[%s1 + $0xde8] sm:$0xff]
  %v459 = vld [vmem:[%s1 + $0xdf0] sm:$0xff]
  %v460 = vld [vmem:[%s1 + $0xdf8] sm:$0xff]
  %v461 = vld [vmem:[%s1 + $0xe00] sm:$0xff]
  %v462 = vld [vmem:[%s1 + $0xe08] sm:$0xff]
  %v463 = vld [vmem:[%s1 + $0xe10] sm:$0xff]
  %v464 = vld [vmem:[%s1 + $0xe18] sm:$0xff]
  %v465 = vld [vmem:[%s1 + $0xe20] sm:$0xff]
  %v466 = vld [vmem:[%s1 + $0xe28] sm:$0xff]
  %v467 = vld [vmem:[%s1 + $0xe30] sm:$0xff]
  %v468 = vld [vmem:[%s1 + $0xe38] sm:$0xff]
  %v469 = vld [vmem:[%s1 + $0xe40] sm:$0xff]
  %v470 = vld [vmem:[%s1 + $0xe48] sm:$0xff]
  %v471 = vld [vmem:[%s1 + $0xe50] sm:$0xff]
  %v472 = vld [vmem:[%s1 + $0xe58] sm:$0xff]
  %v473 = vld [vmem:[%s1 + $0xe60] sm:$0xff]
  %v474 = vld [vmem:[%s1 + $0xe68] sm:$0xff]
  %v475 = vld [vmem:[%s1 + $0xe70] sm:$0xff]
  %v476 = vld [vmem:[%s1 + $0xe78] sm:$0xff]
  %v477 = vld [vmem:[%s1 + $0xe80] sm:$0xff]
  %v478 = vld [vmem:[%s1 + $0xe88] sm:$0xff]
  %v479 = vld [vmem:[%s1 + $0xe90] sm:$0xff]
  %v480 = vld [vmem:[%s1 + $0xe98] sm:$0xff]
  %v481 = vld [vmem:[%s1 + $0xea0] sm:$0xff]
  %v482 = vld [vmem:[%s1 + $0xea8] sm:$0xff]
  %v483 = vld [vmem:[%s1 + $0xeb0] sm:$0xff]
  %v484 = vld [vmem:[%s1 + $0xeb8] sm:$0xff]
  %v485 = vld [vmem:[%s1 + $0xec0] sm:$0xff]
  %v486 = vld [vmem:[%s1 + $0xec8] sm:$0xff]
  %v487 = vld [vmem:[%s1 + $0xed0] sm:$0xff]
  %v488 = vld [vmem:[%s1 + $0xed8] sm:$0xff]
  %v489 = vld [vmem:[%s1 + $0xee0] sm:$0xff]
  %v490 = vld [vmem:[%s1 + $0xee8] sm:$0xff]
  %v491 = vld [vmem:[%s1 + $0xef0] sm:$0xff]
  %v492 = vld [vmem:[%s1 + $0xef8] sm:$0xff]
  %v493 = vld [vmem:[%s1 + $0xf00] sm:$0xff]
  %v494 = vld [vmem:[%s1 + $0xf08] sm:$0xff]
  %v495 = vld [vmem:[%s1 + $0xf10] sm:$0xff]
  %v496 = vld [vmem:[%s1 + $0xf18] sm:$0xff]
  %v497 = vld [vmem:[%s1 + $0xf20] sm:$0xff]
  %v498 = vld [vmem:[%s1 + $0xf28] sm:$0xff]
  %v499 = vld [vmem:[%s1 + $0xf30] sm:$0xff]
  %v500 = vld [vmem:[%s1 + $0xf38] sm:$0xff]
  %v501 = vld [vmem:[%s1 + $0xf40] sm:$0xff]
  %v502 = vld [vmem:[%s1 + $0xf48] sm:$0xff]
  %v503 = vld [vmem:[%s1 + $0xf50] sm:$0xff]
  %v504 = vld [vmem:[%s1 + $0xf58] sm:$0xff]
  %v505 = vld [vmem:[%s1 + $0xf60] sm:$0xff]
  %v506 = vld [vmem:[%s1 + $0xf68] sm:$0xff]
  %v507 = vld [vmem:[%s1 + $0xf70] sm:$0xff]
  %v508 = vld [vmem:[%s1 + $0xf78] sm:$0xff]
  %v509 = vld [vmem:[%s1 + $0xf80] sm:$0xff]
  %v510 = vld [vmem:[%s1 + $0xf88] sm:$0xff]
  %v511 = vld [vmem:[%s1 + $0xf90] sm:$0xff]
  %v512 = vld [vmem:[%s1 + $0xf98] sm:$0xff]
  %v513 = vld [vmem:[%s1 + $0xfa0] sm:$0xff]
  %v514 = vld [vmem:[%s1 + $0xfa8] sm:$0xff]
  %v515 = vld [vmem:[%s1 + $0xfb0] sm:$0xff]
  %v516 = vld [vmem:[%s1 + $0xfb8] sm:$0xff]
  %v517 = vld [vmem:[%s1 + $0xfc0] sm:$0xff]
  %v518 = vld [vmem:[%s1 + $0xfc8] sm:$0xff]
  %v519 = vld [vmem:[%s1 + $0xfd0] sm:$0xff]
  %v520 = vld [vmem:[%s1 + $0xfd8] sm:$0xff]
  %v521 = vld [vmem:[%s1 + $0xfe0] sm:$0xff]
  %v522 = vld [vmem:[%s1 + $0xfe8] sm:$0xff]
  %v523 = vld [vmem:[%s1 + $0xff0] sm:$0xff]
  %v524 = vld [vmem:[%s1 + $0xff8] sm:$0xff]
  %v525 = vld [vmem:[%s1 + $0x1000] sm:$0xff]
  %v526 = vld [vmem:[%s1 + $0x1008] sm:$0xff]
  %v527 = vld [vmem:[%s1 + $0x1010] sm:$0xff]
  %v528 = vld [vmem:[%s1 + $0x1018] sm:$0xff]
  %v529 = vld [vmem:[%s1 + $0x1020] sm:$0xff]
  %v530 = vld [vmem:[%s1 + $0x1028] sm:$0xff]
  %v531 = vld [vmem:[%s1 + $0x1030] sm:$0xff]
  %v532 = vld [vmem:[%s1 + $0x1038] sm:$0xff]
  %v533 = vld [vmem:[%s1 + $0x1040] sm:$0xff]
  %v534 = vld [vmem:[%s1 + $0x1048] sm:$0xff]
  %v535 = vld [vmem:[%s1 + $0x1050] sm:$0xff]
  %v536 = vld [vmem:[%s1 + $0x1058] sm:$0xff]
  %v537 = vld [vmem:[%s1 + $0x1060] sm:$0xff]
  %v538 = vld [vmem:[%s1 + $0x1068] sm:$0xff]
  %v539 = vld [vmem:[%s1 + $0x1070] sm:$0xff]
  %v540 = vld [vmem:[%s1 + $0x1078] sm:$0xff]
  %v541 = vld [vmem:[%s1 + $0x1080] sm:$0xff]
  %v542 = vld [vmem:[%s1 + $0x1088] sm:$0xff]
  %v543 = vld [vmem:[%s1 + $0x1090] sm:$0xff]
  %v544 = vld [vmem:[%s1 + $0x1098] sm:$0xff]
  %v545 = vld [vmem:[%s1 + $0x10a0] sm:$0xff]
  %v546 = vld [vmem:[%s1 + $0x10a8] sm:$0xff]
  %v547 = vld [vmem:[%s1 + $0x10b0] sm:$0xff]
  %v548 = vld [vmem:[%s1 + $0x10b8] sm:$0xff]
  %v549 = vld [vmem:[%s1 + $0x10c0] sm:$0xff]
  %v550 = vld [vmem:[%s1 + $0x10c8] sm:$0xff]
  %v551 = vld [vmem:[%s1 + $0x10d0] sm:$0xff]
  %v552 = vld [vmem:[%s1 + $0x10d8] sm:$0xff]
  %v553 = vld [vmem:[%s1 + $0x10e0] sm:$0xff]
  %v554 = vld [vmem:[%s1 + $0x10e8] sm:$0xff]
  %v555 = vld [vmem:[%s1 + $0x10f0] sm:$0xff]
  %v556 = vld [vmem:[%s1 + $0x10f8] sm:$0xff]
  %v557 = vld [vmem:[%s1 + $0x1100] sm:$0xff]
  %v558 = vld [vmem:[%s1 + $0x1108] sm:$0xff]
  %v559 = vld [vmem:[%s1 + $0x1110] sm:$0xff]
  %v560 = vld [vmem:[%s1 + $0x1118] sm:$0xff]
  %v561 = vld [vmem:[%s1 + $0x1120] sm:$0xff]
  %v562 = vld [vmem:[%s1 + $0x1128] sm:$0xff]
  %v563 = vld [vmem:[%s1 + $0x1130] sm:$0xff]
  %v564 = vld [vmem:[%s1 + $0x1138] sm:$0xff]
  %v565 = vld [vmem:[%s1 + $0x1140] sm:$0xff]
  %v566 = vld [vmem:[%s1 + $0x1148] sm:$0xff]
  %v567 = vld [vmem:[%s1 + $0x1150] sm:$0xff]
  %v568 = vld [vmem:[%s1 + $0x1158] sm:$0xff]
  %v569 = vld [vmem:[%s1 + $0x1160] sm:$0xff]
  %v570 = vld [vmem:[%s1 + $0x1168] sm:$0xff]
  %v571 = vld [vmem:[%s1 + $0x1170] sm:$0xff]
  %v572 = vld [vmem:[%s1 + $0x1178] sm:$0xff]
  %v573 = vld [vmem:[%s1 + $0x1180] sm:$0xff]
  %v574 = vld [vmem:[%s1 + $0x1188] sm:$0xff]
  %v575 = vld [vmem:[%s1 + $0x1190] sm:$0xff]
  %v576 = vld [vmem:[%s1 + $0x1198] sm:$0xff]
  %v577 = vld [vmem:[%s1 + $0x11a0] sm:$0xff]
  %v578 = vld [vmem:[%s1 + $0x11a8] sm:$0xff]
  %v579 = vld [vmem:[%s1 + $0x11b0] sm:$0xff]
  %v580 = vld [vmem:[%s1 + $0x11b8] sm:$0xff]
  %v581 = vld [vmem:[%s1 + $0x11c0] sm:$0xff]
  %v582 = vld [vmem:[%s1 + $0x11c8] sm:$0xff]
  %v583 = vld [vmem:[%s1 + $0x11d0] sm:$0xff]
  %v584 = vld [vmem:[%s1 + $0x11d8] sm:$0xff]
  %v585 = vld [vmem:[%s1 + $0x11e0] sm:$0xff]
  %v586 = vld [vmem:[%s1 + $0x11e8] sm:$0xff]
  %v587 = vld [vmem:[%s1 + $0x11f0] sm:$0xff]
  %v588 = vld [vmem:[%s1 + $0x11f8] sm:$0xff]
  %v589 = vld [vmem:[%s1 + $0x1200] sm:$0xff]
  %v590 = vld [vmem:[%s1 + $0x1208] sm:$0xff]
  %v591 = vld [vmem:[%s1 + $0x1210] sm:$0xff]
  %v592 = vld [vmem:[%s1 + $0x1218] sm:$0xff]
  %v593 = vld [vmem:[%s1 + $0x1220] sm:$0xff]
  %v594 = vld [vmem:[%s1 + $0x1228] sm:$0xff]
  %v595 = vld [vmem:[%s1 + $0x1230] sm:$0xff]
  %v596 = vld [vmem:[%s1 + $0x1238] sm:$0xff]
  %v597 = vld [vmem:[%s1 + $0x1240] sm:$0xff]
  %v598 = vld [vmem:[%s1 + $0x1248] sm:$0xff]
  %v599 = vld [vmem:[%s1 + $0x1250] sm:$0xff]
  %v600 = vld [vmem:[%s1 + $0x1258] sm:$0xff]
  %v601 = vld [vmem:[%s1 + $0x1260] sm:$0xff]
  %v602 = vld [vmem:[%s1 + $0x1268] sm:$0xff]
  %v603 = vld [vmem:[%s1 + $0x1270] sm:$0xff]
  %v604 = vld [vmem:[%s1 + $0x1278] sm:$0xff]
  %v605 = vld [vmem:[%s1 + $0x1280] sm:$0xff]
  %v606 = vld [vmem:[%s1 + $0x1288] sm:$0xff]
  %v607 = vld [vmem:[%s1 + $0x1290] sm:$0xff]
  %v608 = vld [vmem:[%s1 + $0x1298] sm:$0xff]
  %v609 = vld [vmem:[%s1 + $0x12a0] sm:$0xff]
  %v610 = vld [vmem:[%s1 + $0x12a8] sm:$0xff]
  %v611 = vld [vmem:[%s1 + $0x12b0] sm:$0xff]
  %v612 = vld [vmem:[%s1 + $0x12b8] sm:$0xff]
  %v613 = vld [vmem:[%s1 + $0x12c0] sm:$0xff]
  %v614 = vld [vmem:[%s1 + $0x12c8] sm:$0xff]
  %v615 = vld [vmem:[%s1 + $0x12d0] sm:$0xff]
  %v616 = vld [vmem:[%s1 + $0x12d8] sm:$0xff]
  %v617 = vld [vmem:[%s1 + $0x12e0] sm:$0xff]
  %v618 = vld [vmem:[%s1 + $0x12e8] sm:$0xff]
  %v619 = vld [vmem:[%s1 + $0x12f0] sm:$0xff]
  %v620 = vld [vmem:[%s1 + $0x12f8] sm:$0xff]
  %v621 = vld [vmem:[%s1 + $0x1300] sm:$0xff]
  %v622 = vld [vmem:[%s1 + $0x1308] sm:$0xff]
  %v623 = vld [vmem:[%s1 + $0x1310] sm:$0xff]
  %v624 = vld [vmem:[%s1 + $0x1318] sm:$0xff]
  %v625 = vld [vmem:[%s1 + $0x1320] sm:$0xff]
  %v626 = vld [vmem:[%s1 + $0x1328] sm:$0xff]
  %v627 = vld [vmem:[%s1 + $0x1330] sm:$0xff]
  %v628 = vld [vmem:[%s1 + $0x1338] sm:$0xff]
  %v629 = vld [vmem:[%s1 + $0x1340] sm:$0xff]
  %v630 = vld [vmem:[%s1 + $0x1348] sm:$0xff]
  %v631 = vld [vmem:[%s1 + $0x1350] sm:$0xff]
  %v632 = vld [vmem:[%s1 + $0x1358] sm:$0xff]
  %v633 = vld [vmem:[%s1 + $0x1360] sm:$0xff]
  %v634 = vld [vmem:[%s1 + $0x1368] sm:$0xff]
  %v635 = vld [vmem:[%s1 + $0x1370] sm:$0xff]
  %v636 = vld [vmem:[%s1 + $0x1378] sm:$0xff]
  %v637 = vld [vmem:[%s1 + $0x1380] sm:$0xff]
  %v638 = vld [vmem:[%s1 + $0x1388] sm:$0xff]
  %v639 = vld [vmem:[%s1 + $0x1390] sm:$0xff]
  %v640 = vld [vmem:[%s1 + $0x1398] sm:$0xff]
  %v641 = vld [vmem:[%s1 + $0x13a0] sm:$0xff]
  %v642 = vld [vmem:[%s1 + $0x13a8] sm:$0xff]
  %v643 = vld [vmem:[%s1 + $0x13b0] sm:$0xff]
  %v644 = vld [vmem:[%s1 + $0x13b8] sm:$0xff]
  %v645 = vld [vmem:[%s1 + $0x13c0] sm:$0xff]
  %v646 = vld [vmem:[%s1 + $0x13c8] sm:$0xff]
  %v647 = vld [vmem:[%s1 + $0x13d0] sm:$0xff]
  %v648 = vld [vmem:[%s1 + $0x13d8] sm:$0xff]
  %v649 = vld [vmem:[%s1 + $0x13e0] sm:$0xff]
  %v650 = vld [vmem:[%s1 + $0x13e8] sm:$0xff]
  %v651 = vld [vmem:[%s1 + $0x13f0] sm:$0xff]
  %v652 = vld [vmem:[%s1 + $0x13f8] sm:$0xff]
  %v653 = vld [vmem:[%s1 + $0x1400] sm:$0xff]
  %v654 = vld [vmem:[%s1 + $0x1408] sm:$0xff]
  %v655 = vld [vmem:[%s1 + $0x1410] sm:$0xff]
  %v656 = vld [vmem:[%s1 + $0x1418] sm:$0xff]
  %v657 = vld [vmem:[%s1 + $0x1420] sm:$0xff]
  %v658 = vld [vmem:[%s1 + $0x1428] sm:$0xff]
  %v659 = vld [vmem:[%s1 + $0x1430] sm:$0xff]
  %v660 = vld [vmem:[%s1 + $0x1438] sm:$0xff]
  %v661 = vld [vmem:[%s1 + $0x1440] sm:$0xff]
  %v662 = vld [vmem:[%s1 + $0x1448] sm:$0xff]
  %v663 = vld [vmem:[%s1 + $0x1450] sm:$0xff]
  %v664 = vld [vmem:[%s1 + $0x1458] sm:$0xff]
  %v665 = vld [vmem:[%s1 + $0x1460] sm:$0xff]
  %v666 = vld [vmem:[%s1 + $0x1468] sm:$0xff]
  %v667 = vld [vmem:[%s1 + $0x1470] sm:$0xff]
  %v668 = vld [vmem:[%s1 + $0x1478] sm:$0xff]
  %v669 = vld [vmem:[%s1 + $0x1480] sm:$0xff]
  %v670 = vld [vmem:[%s1 + $0x1488] sm:$0xff]
  %v671 = vld [vmem:[%s1 + $0x1490] sm:$0xff]
  %v672 = vld [vmem:[%s1 + $0x1498] sm:$0xff]
  %v673 = vld [vmem:[%s1 + $0x14a0] sm:$0xff]
  %v674 = vld [vmem:[%s1 + $0x14a8] sm:$0xff]
  %v675 = vld [vmem:[%s1 + $0x14b0] sm:$0xff]
  %v676 = vld [vmem:[%s1 + $0x14b8] sm:$0xff]
  %v677 = vld [vmem:[%s1 + $0x14c0] sm:$0xff]
  %v678 = vld [vmem:[%s1 + $0x14c8] sm:$0xff]
  %v679 = vld [vmem:[%s1 + $0x14d0] sm:$0xff]
  %v680 = vld [vmem:[%s1 + $0x14d8] sm:$0xff]
  %v681 = vld [vmem:[%s1 + $0x14e0] sm:$0xff]
  %v682 = vld [vmem:[%s1 + $0x14e8] sm:$0xff]
  %v683 = vld [vmem:[%s1 + $0x14f0] sm:$0xff]
  %v684 = vld [vmem:[%s1 + $0x14f8] sm:$0xff]
  %v685 = vld [vmem:[%s1 + $0x1500] sm:$0xff]
  %v686 = vld [vmem:[%s1 + $0x1508] sm:$0xff]
  %v687 = vld [vmem:[%s1 + $0x1510] sm:$0xff]
  %v688 = vld [vmem:[%s1 + $0x1518] sm:$0xff]
  %v689 = vld [vmem:[%s1 + $0x1520] sm:$0xff]
  %v690 = vld [vmem:[%s1 + $0x1528] sm:$0xff]
  %v691 = vld [vmem:[%s1 + $0x1530] sm:$0xff]
  %v692 = vld [vmem:[%s1 + $0x1538] sm:$0xff]
  %v693 = vld [vmem:[%s1 + $0x1540] sm:$0xff]
  %v694 = vld [vmem:[%s1 + $0x1548] sm:$0xff]
  %v695 = vld [vmem:[%s1 + $0x1550] sm:$0xff]
  %v696 = vld [vmem:[%s1 + $0x1558] sm:$0xff]
  %v697 = vld [vmem:[%s1 + $0x1560] sm:$0xff]
  %v698 = vld [vmem:[%s1 + $0x1568] sm:$0xff]
  %v699 = vld [vmem:[%s1 + $0x1570] sm:$0xff]
  %v700 = vld [vmem:[%s1 + $0x1578] sm:$0xff]
  %v701 = vld [vmem:[%s1 + $0x1580] sm:$0xff]
  %v702 = vld [vmem:[%s1 + $0x1588] sm:$0xff]
  %v703 = vld [vmem:[%s1 + $0x1590] sm:$0xff]
  %v704 = vld [vmem:[%s1 + $0x1598] sm:$0xff]
  %v705 = vld [vmem:[%s1 + $0x15a0] sm:$0xff]
  %v706 = vld [vmem:[%s1 + $0x15a8] sm:$0xff]
  %v707 = vld [vmem:[%s1 + $0x15b0] sm:$0xff]
  %v708 = vld [vmem:[%s1 + $0x15b8] sm:$0xff]
  %v709 = vld [vmem:[%s1 + $0x15c0] sm:$0xff]
  %v710 = vld [vmem:[%s1 + $0x15c8] sm:$0xff]
  %v711 = vld [vmem:[%s1 + $0x15d0] sm:$0xff]
  %v712 = vld [vmem:[%s1 + $0x15d8] sm:$0xff]
  %v713 = vld [vmem:[%s1 + $0x15e0] sm:$0xff]
  %v714 = vld [vmem:[%s1 + $0x15e8] sm:$0xff]
  %v715 = vld [vmem:[%s1 + $0x15f0] sm:$0xff]
  %v716 = vld [vmem:[%s1 + $0x15f8] sm:$0xff]
  %v717 = vld [vmem:[%s1 + $0x1600] sm:$0xff]
  %v718 = vld [vmem:[%s1 + $0x1608] sm:$0xff]
  %v719 = vld [vmem:[%s1 + $0x1610] sm:$0xff]
  %v720 = vld [vmem:[%s1 + $0x1618] sm:$0xff]
  %v721 = vld [vmem:[%s1 + $0x1620] sm:$0xff]
  %v722 = vld [vmem:[%s1 + $0x1628] sm:$0xff]
  %v723 = vld [vmem:[%s1 + $0x1630] sm:$0xff]
  %v724 = vld [vmem:[%s1 + $0x1638] sm:$0xff]
  %v725 = vld [vmem:[%s1 + $0x1640] sm:$0xff]
  %v726 = vld [vmem:[%s1 + $0x1648] sm:$0xff]
  %v727 = vld [vmem:[%s1 + $0x1650] sm:$0xff]
  %v728 = vld [vmem:[%s1 + $0x1658] sm:$0xff]
  %v729 = vld [vmem:[%s1 + $0x1660] sm:$0xff]
  %v730 = vld [vmem:[%s1 + $0x1668] sm:$0xff]
  %v731 = vld [vmem:[%s1 + $0x1670] sm:$0xff]
  %v732 = vld [vmem:[%s1 + $0x1678] sm:$0xff]
  %v733 = vld [vmem:[%s1 + $0x1680] sm:$0xff]
  %v734 = vld [vmem:[%s1 + $0x1688] sm:$0xff]
  %v735 = vld [vmem:[%s1 + $0x1690] sm:$0xff]
  %v736 = vld [vmem:[%s1 + $0x1698] sm:$0xff]
  %v737 = vld [vmem:[%s1 + $0x16a0] sm:$0xff]
  %v738 = vld [vmem:[%s1 + $0x16a8] sm:$0xff]
  %v739 = vld [vmem:[%s1 + $0x16b0] sm:$0xff]
  %v740 = vld [vmem:[%s1 + $0x16b8] sm:$0xff]
  %v741 = vld [vmem:[%s1 + $0x16c0] sm:$0xff]
  %v742 = vld [vmem:[%s1 + $0x16c8] sm:$0xff]
  %v743 = vld [vmem:[%s1 + $0x16d0] sm:$0xff]
  %v744 = vld [vmem:[%s1 + $0x16d8] sm:$0xff]
  %v745 = vld [vmem:[%s1 + $0x16e0] sm:$0xff]
  %v746 = vld [vmem:[%s1 + $0x16e8] sm:$0xff]
  %v747 = vld [vmem:[%s1 + $0x16f0] sm:$0xff]
  %v748 = vld [vmem:[%s1 + $0x16f8] sm:$0xff]
  %v749 = vld [vmem:[%s1 + $0x1700] sm:$0xff]
  %v750 = vld [vmem:[%s1 + $0x1708] sm:$0xff]
  %v751 = vld [vmem:[%s1 + $0x1710] sm:$0xff]
  %v752 = vld [vmem:[%s1 + $0x1718] sm:$0xff]
  %v753 = vld [vmem:[%s1 + $0x1720] sm:$0xff]
  %v754 = vld [vmem:[%s1 + $0x1728] sm:$0xff]
  %v755 = vld [vmem:[%s1 + $0x1730] sm:$0xff]
  %v756 = vld [vmem:[%s1 + $0x1738] sm:$0xff]
  %v757 = vld [vmem:[%s1 + $0x1740] sm:$0xff]
  %v758 = vld [vmem:[%s1 + $0x1748] sm:$0xff]
  %v759 = vld [vmem:[%s1 + $0x1750] sm:$0xff]
  %v760 = vld [vmem:[%s1 + $0x1758] sm:$0xff]
  %v761 = vld [vmem:[%s1 + $0x1760] sm:$0xff]
  %v762 = vld [vmem:[%s1 + $0x1768] sm:$0xff]
  %v763 = vld [vmem:[%s1 + $0x1770] sm:$0xff]
  %v764 = vld [vmem:[%s1 + $0x1778] sm:$0xff]
  %v765 = vld [vmem:[%s1 + $0x1780] sm:$0xff]
  %v766 = vld [vmem:[%s1 + $0x1788] sm:$0xff]
  %v767 = vld [vmem:[%s1 + $0x1790] sm:$0xff]
  %v768 = vld [vmem:[%s1 + $0x1798] sm:$0xff]
  %v769 = vld [vmem:[%s1 + $0x17a0] sm:$0xff]
  %v770 = vld [vmem:[%s1 + $0x17a8] sm:$0xff]
  %v771 = vld [vmem:[%s1 + $0x17b0] sm:$0xff]
  %v772 = vld [vmem:[%s1 + $0x17b8] sm:$0xff]
  %v773 = vld [vmem:[%s1 + $0x17c0] sm:$0xff]
  %v774 = vld [vmem:[%s1 + $0x17c8] sm:$0xff]
  %v775 = vld [vmem:[%s1 + $0x17d0] sm:$0xff]
  %v776 = vld [vmem:[%s1 + $0x17d8] sm:$0xff]
  %v777 = vld [vmem:[%s1 + $0x17e0] sm:$0xff]
  %v778 = vld [vmem:[%s1 + $0x17e8] sm:$0xff]
  %v779 = vld [vmem:[%s1 + $0x17f0] sm:$0xff]
  %v780 = vld [vmem:[%s1 + $0x17f8] sm:$0xff]
  %v781 = vld [vmem:[%s1 + $0x1800] sm:$0xff]
  %v782 = vld [vmem:[%s1 + $0x1808] sm:$0xff]
  %v783 = vld [vmem:[%s1 + $0x1810] sm:$0xff]
  %v784 = vld [vmem:[%s1 + $0x1818] sm:$0xff]
  %v785 = vld [vmem:[%s1 + $0x1820] sm:$0xff]
  %v786 = vld [vmem:[%s1 + $0x1828] sm:$0xff]
  %v787 = vld [vmem:[%s1 + $0x1830] sm:$0xff]
  %v788 = vld [vmem:[%s1 + $0x1838] sm:$0xff]
  %v789 = vld [vmem:[%s1 + $0x1840] sm:$0xff]
  %v790 = vld [vmem:[%s1 + $0x1848] sm:$0xff]
  %v791 = vld [vmem:[%s1 + $0x1850] sm:$0xff]
  %v792 = vld [vmem:[%s1 + $0x1858] sm:$0xff]
  %v793 = vld [vmem:[%s1 + $0x1860] sm:$0xff]
  %v794 = vld [vmem:[%s1 + $0x1868] sm:$0xff]
  %v795 = vld [vmem:[%s1 + $0x1870] sm:$0xff]
  %v796 = vld [vmem:[%s1 + $0x1878] sm:$0xff]
  %v797 = vld [vmem:[%s1 + $0x1880] sm:$0xff]
  %v798 = vld [vmem:[%s1 + $0x1888] sm:$0xff]
  %v799 = vld [vmem:[%s1 + $0x1890] sm:$0xff]
  %v800 = vld [vmem:[%s1 + $0x1898] sm:$0xff]
  %v801 = vld [vmem:[%s1 + $0x18a0] sm:$0xff]
  %v802 = vld [vmem:[%s1 + $0x18a8] sm:$0xff]
  %v803 = vld [vmem:[%s1 + $0x18b0] sm:$0xff]
  %v804 = vld [vmem:[%s1 + $0x18b8] sm:$0xff]
  %v805 = vld [vmem:[%s1 + $0x18c0] sm:$0xff]
  %v806 = vld [vmem:[%s1 + $0x18c8] sm:$0xff]
  %v807 = vld [vmem:[%s1 + $0x18d0] sm:$0xff]
  %v808 = vld [vmem:[%s1 + $0x18d8] sm:$0xff]
  %v809 = vld [vmem:[%s1 + $0x18e0] sm:$0xff]
  %v810 = vld [vmem:[%s1 + $0x18e8] sm:$0xff]
  %v811 = vld [vmem:[%s1 + $0x18f0] sm:$0xff]
  %v812 = vld [vmem:[%s1 + $0x18f8] sm:$0xff]
  %vm813 = vcmask 588800
  %v815 = vsel %vm813, %v12, 0
  %817 = vmatprep.subr.mxu0 %v14
  %818 = vmatpush1.msra.mxu0 %v13
  %819 = vmatprep.subr.mxu0 %v46
  %820 = vmatpush1.msra.mxu0 %v45
  %821 = vmatprep.subr.mxu0 %v78
  %822 = vmatpush1.msra.mxu0 %v77
  %823 = vmatprep.subr.mxu0 %v110
  %824 = vmatpush1.msra.mxu0 %v109
  %825 = vmatprep.subr.mxu0 %v142
  %826 = vmatpush1.msra.mxu0 %v141
  %827 = vmatprep.subr.mxu0 %v174
  %828 = vmatpush1.msra.mxu0 %v173
  %829 = vmatprep.subr.mxu0 %v206
  %830 = vmatpush1.msra.mxu0 %v205
  %831 = vmatprep.subr.mxu0 %v238
  %832 = vmatpush1.msra.mxu0 %v237
  %833 = vmatprep.subr.mxu0 %v270
  %834 = vmatpush1.msra.mxu0 %v269
  %835 = vmatprep.subr.mxu0 %v302
  %836 = vmatpush1.msra.mxu0 %v301
  %837 = vmatprep.subr.mxu0 %v334
  %838 = vmatpush1.msra.mxu0 %v333
  %839 = vmatprep.subr.mxu0 %v366
  %840 = vmatpush1.msra.mxu0 %v365
  %841 = vmatprep.subr.mxu0 %v398
  %842 = vmatpush1.msra.mxu0 %v397
  %843 = vmatprep.subr.mxu0 %v430
  %844 = vmatpush1.msra.mxu0 %v429
  %845 = vmatprep.subr.mxu0 %v462
  %846 = vmatpush1.msra.mxu0 %v461
  %847 = vmatprep.subr.mxu0 %v494
  %848 = vmatpush1.msra.mxu0 %v493
  %849 = vmatprep.subr.mxu0 %v526
  %850 = vmatpush1.msra.mxu0 %v525
  %851 = vmatprep.subr.mxu0 %v558
  %852 = vmatpush1.msra.mxu0 %v557
  %853 = vmatprep.subr.mxu0 %v590
  %854 = vmatpush1.msra.mxu0 %v589
  %855 = vmatprep.subr.mxu0 %v622
  %856 = vmatpush1.msra.mxu0 %v621
  %857 = vmatprep.subr.mxu0 %v654
  %858 = vmatpush1.msra.mxu0 %v653
  %859 = vmatprep.subr.mxu0 %v686
  %860 = vmatpush1.msra.mxu0 %v685
  %861 = vmatprep.subr.mxu0 %v718
  %862 = vmatpush1.msra.mxu0 %v717
  %863 = vmatprep.subr.mxu0 %v750
  %864 = vmatpush1.msra.mxu0 %v749
  %865 = vmatprep.subr.mxu0 %v782
  %866 = vmatpush1.msra.mxu0 %v781
  %867 = vmatprep.subr.mxu0 0.0
  %868 = vmatpush1.msra.mxu0 0.0
  %869 = vmatprep.subr.mxu0 0.0
  %870 = vmatpush1.msra.mxu0 0.0
  %871 = vmatprep.subr.mxu0 0.0
  %872 = vmatpush1.msra.mxu0 0.0
  %873 = vmatprep.subr.mxu0 0.0
  %874 = vmatpush1.msra.mxu0 0.0
  %875 = vmatprep.subr.mxu0 0.0
  %876 = vmatpush1.msra.mxu0 0.0
  %877 = vmatprep.subr.mxu0 0.0
  %878 = vmatpush1.msra.mxu0 0.0
  %879 = vmatprep.subr.mxu0 0.0
  %880 = vmatpush1.msra.mxu0 0.0
  %881 = vmatprep.mubr.f32.mxu0 %v815
  %882 = vmatmul.mubr.f32.gmra.mrb[0].mxu0 %v11
  %v883 = vpop.f32.mrb[0].mxu0
  %v884 = vadd.f32 0.0, %v883
  %v885 = vpop.f32.mrb[0].mxu0
  %v886 = vadd.f32 0.0, %v885
  %887 = vdwg.mxu0
  %888 = vmatprep.subr.mxu0 %v16
  %889 = vmatpush1.msra.mxu0 %v15
  %890 = vmatprep.subr.mxu0 %v48
  %891 = vmatpush1.msra.mxu0 %v47
  %892 = vmatprep.subr.mxu0 %v80
  %893 = vmatpush1.msra.mxu0 %v79
  %894 = vmatprep.subr.mxu0 %v112
  %895 = vmatpush1.msra.mxu0 %v111
  %896 = vmatprep.subr.mxu0 %v144
  %897 = vmatpush1.msra.mxu0 %v143
  %898 = vmatprep.subr.mxu0 %v176
  %899 = vmatpush1.msra.mxu0 %v175
  %900 = vmatprep.subr.mxu0 %v208
  %901 = vmatpush1.msra.mxu0 %v207
  %902 = vmatprep.subr.mxu0 %v240
  %903 = vmatpush1.msra.mxu0 %v239
  %904 = vmatprep.subr.mxu0 %v272
  %905 = vmatpush1.msra.mxu0 %v271
  %906 = vmatprep.subr.mxu0 %v304
  %907 = vmatpush1.msra.mxu0 %v303
  %908 = vmatprep.subr.mxu0 %v336
  %909 = vmatpush1.msra.mxu0 %v335
  %910 = vmatprep.subr.mxu0 %v368
  %911 = vmatpush1.msra.mxu0 %v367
  %912 = vmatprep.subr.mxu0 %v400
  %913 = vmatpush1.msra.mxu0 %v399
  %914 = vmatprep.subr.mxu0 %v432
  %915 = vmatpush1.msra.mxu0 %v431
  %916 = vmatprep.subr.mxu0 %v464
  %917 = vmatpush1.msra.mxu0 %v463
  %918 = vmatprep.subr.mxu0 %v496
  %919 = vmatpush1.msra.mxu0 %v495
  %920 = vmatprep.subr.mxu0 %v528
  %921 = vmatpush1.msra.mxu0 %v527
  %922 = vmatprep.subr.mxu0 %v560
  %923 = vmatpush1.msra.mxu0 %v559
  %924 = vmatprep.subr.mxu0 %v592
  %925 = vmatpush1.msra.mxu0 %v591
  %926 = vmatprep.subr.mxu0 %v624
  %927 = vmatpush1.msra.mxu0 %v623
  %928 = vmatprep.subr.mxu0 %v656
  %929 = vmatpush1.msra.mxu0 %v655
  %930 = vmatprep.subr.mxu0 %v688
  %931 = vmatpush1.msra.mxu0 %v687
  %932 = vmatprep.subr.mxu0 %v720
  %933 = vmatpush1.msra.mxu0 %v719
  %934 = vmatprep.subr.mxu0 %v752
  %935 = vmatpush1.msra.mxu0 %v751
  %936 = vmatprep.subr.mxu0 %v784
  %937 = vmatpush1.msra.mxu0 %v783
  %938 = vmatprep.subr.mxu0 0.0
  %939 = vmatpush1.msra.mxu0 0.0
  %940 = vmatprep.subr.mxu0 0.0
  %941 = vmatpush1.msra.mxu0 0.0
  %942 = vmatprep.subr.mxu0 0.0
  %943 = vmatpush1.msra.mxu0 0.0
  %944 = vmatprep.subr.mxu0 0.0
  %945 = vmatpush1.msra.mxu0 0.0
  %946 = vmatprep.subr.mxu0 0.0
  %947 = vmatpush1.msra.mxu0 0.0
  %948 = vmatprep.subr.mxu0 0.0
  %949 = vmatpush1.msra.mxu0 0.0
  %950 = vmatprep.subr.mxu0 0.0
  %951 = vmatpush1.msra.mxu0 0.0
  %952 = vmatprep.mubr.f32.mxu0 %v815
  %953 = vmatmul.mubr.f32.gmra.mrb[0].mxu0 %v11
  %v954 = vpop.f32.mrb[0].mxu0
  %v955 = vadd.f32 0.0, %v954
  %v956 = vpop.f32.mrb[0].mxu0
  %v957 = vadd.f32 0.0, %v956
  %958 = vdwg.mxu0
  %959 = vmatprep.subr.mxu0 %v18
  %960 = vmatpush1.msra.mxu0 %v17
  %961 = vmatprep.subr.mxu0 %v50
  %962 = vmatpush1.msra.mxu0 %v49
  %963 = vmatprep.subr.mxu0 %v82
  %964 = vmatpush1.msra.mxu0 %v81
  %965 = vmatprep.subr.mxu0 %v114
  %966 = vmatpush1.msra.mxu0 %v113
  %967 = vmatprep.subr.mxu0 %v146
  %968 = vmatpush1.msra.mxu0 %v145
  %969 = vmatprep.subr.mxu0 %v178
  %970 = vmatpush1.msra.mxu0 %v177
  %971 = vmatprep.subr.mxu0 %v210
  %972 = vmatpush1.msra.mxu0 %v209
  %973 = vmatprep.subr.mxu0 %v242
  %974 = vmatpush1.msra.mxu0 %v241
  %975 = vmatprep.subr.mxu0 %v274
  %976 = vmatpush1.msra.mxu0 %v273
  %977 = vmatprep.subr.mxu0 %v306
  %978 = vmatpush1.msra.mxu0 %v305
  %979 = vmatprep.subr.mxu0 %v338
  %980 = vmatpush1.msra.mxu0 %v337
  %981 = vmatprep.subr.mxu0 %v370
  %982 = vmatpush1.msra.mxu0 %v369
  %983 = vmatprep.subr.mxu0 %v402
  %984 = vmatpush1.msra.mxu0 %v401
  %985 = vmatprep.subr.mxu0 %v434
  %986 = vmatpush1.msra.mxu0 %v433
  %987 = vmatprep.subr.mxu0 %v466
  %988 = vmatpush1.msra.mxu0 %v465
  %989 = vmatprep.subr.mxu0 %v498
  %990 = vmatpush1.msra.mxu0 %v497
  %991 = vmatprep.subr.mxu0 %v530
  %992 = vmatpush1.msra.mxu0 %v529
  %993 = vmatprep.subr.mxu0 %v562
  %994 = vmatpush1.msra.mxu0 %v561
  %995 = vmatprep.subr.mxu0 %v594
  %996 = vmatpush1.msra.mxu0 %v593
  %997 = vmatprep.subr.mxu0 %v626
  %998 = vmatpush1.msra.mxu0 %v625
  %999 = vmatprep.subr.mxu0 %v658
  %1000 = vmatpush1.msra.mxu0 %v657
  %1001 = vmatprep.subr.mxu0 %v690
  %1002 = vmatpush1.msra.mxu0 %v689
  %1003 = vmatprep.subr.mxu0 %v722
  %1004 = vmatpush1.msra.mxu0 %v721
  %1005 = vmatprep.subr.mxu0 %v754
  %1006 = vmatpush1.msra.mxu0 %v753
  %1007 = vmatprep.subr.mxu0 %v786
  %1008 = vmatpush1.msra.mxu0 %v785
  %1009 = vmatprep.subr.mxu0 0.0
  %1010 = vmatpush1.msra.mxu0 0.0
  %1011 = vmatprep.subr.mxu0 0.0
  %1012 = vmatpush1.msra.mxu0 0.0
  %1013 = vmatprep.subr.mxu0 0.0
  %1014 = vmatpush1.msra.mxu0 0.0
  %1015 = vmatprep.subr.mxu0 0.0
  %1016 = vmatpush1.msra.mxu0 0.0
  %1017 = vmatprep.subr.mxu0 0.0
  %1018 = vmatpush1.msra.mxu0 0.0
  %1019 = vmatprep.subr.mxu0 0.0
  %1020 = vmatpush1.msra.mxu0 0.0
  %1021 = vmatprep.subr.mxu0 0.0
  %1022 = vmatpush1.msra.mxu0 0.0
  %1023 = vmatprep.mubr.f32.mxu0 %v815
  %1024 = vmatmul.mubr.f32.gmra.mrb[0].mxu0 %v11
  %v1025 = vpop.f32.mrb[0].mxu0
  %v1026 = vadd.f32 0.0, %v1025
  %v1027 = vpop.f32.mrb[0].mxu0
  %v1028 = vadd.f32 0.0, %v1027
  %1029 = vdwg.mxu0
  %1030 = vmatprep.subr.mxu0 %v20
  %1031 = vmatpush1.msra.mxu0 %v19
  %1032 = vmatprep.subr.mxu0 %v52
  %1033 = vmatpush1.msra.mxu0 %v51
  %1034 = vmatprep.subr.mxu0 %v84
  %1035 = vmatpush1.msra.mxu0 %v83
  %1036 = vmatprep.subr.mxu0 %v116
  %1037 = vmatpush1.msra.mxu0 %v115
  %1038 = vmatprep.subr.mxu0 %v148
  %1039 = vmatpush1.msra.mxu0 %v147
  %1040 = vmatprep.subr.mxu0 %v180
  %1041 = vmatpush1.msra.mxu0 %v179
  %1042 = vmatprep.subr.mxu0 %v212
  %1043 = vmatpush1.msra.mxu0 %v211
  %1044 = vmatprep.subr.mxu0 %v244
  %1045 = vmatpush1.msra.mxu0 %v243
  %1046 = vmatprep.subr.mxu0 %v276
  %1047 = vmatpush1.msra.mxu0 %v275
  %1048 = vmatprep.subr.mxu0 %v308
  %1049 = vmatpush1.msra.mxu0 %v307
  %1050 = vmatprep.subr.mxu0 %v340
  %1051 = vmatpush1.msra.mxu0 %v339
  %1052 = vmatprep.subr.mxu0 %v372
  %1053 = vmatpush1.msra.mxu0 %v371
  %1054 = vmatprep.subr.mxu0 %v404
  %1055 = vmatpush1.msra.mxu0 %v403
  %1056 = vmatprep.subr.mxu0 %v436
  %1057 = vmatpush1.msra.mxu0 %v435
  %1058 = vmatprep.subr.mxu0 %v468
  %1059 = vmatpush1.msra.mxu0 %v467
  %1060 = vmatprep.subr.mxu0 %v500
  %1061 = vmatpush1.msra.mxu0 %v499
  %1062 = vmatprep.subr.mxu0 %v532
  %1063 = vmatpush1.msra.mxu0 %v531
  %1064 = vmatprep.subr.mxu0 %v564
  %1065 = vmatpush1.msra.mxu0 %v563
  %1066 = vmatprep.subr.mxu0 %v596
  %1067 = vmatpush1.msra.mxu0 %v595
  %1068 = vmatprep.subr.mxu0 %v628
  %1069 = vmatpush1.msra.mxu0 %v627
  %1070 = vmatprep.subr.mxu0 %v660
  %1071 = vmatpush1.msra.mxu0 %v659
  %1072 = vmatprep.subr.mxu0 %v692
  %1073 = vmatpush1.msra.mxu0 %v691
  %1074 = vmatprep.subr.mxu0 %v724
  %1075 = vmatpush1.msra.mxu0 %v723
  %1076 = vmatprep.subr.mxu0 %v756
  %1077 = vmatpush1.msra.mxu0 %v755
  %1078 = vmatprep.subr.mxu0 %v788
  %1079 = vmatpush1.msra.mxu0 %v787
  %1080 = vmatprep.subr.mxu0 0.0
  %1081 = vmatpush1.msra.mxu0 0.0
  %1082 = vmatprep.subr.mxu0 0.0
  %1083 = vmatpush1.msra.mxu0 0.0
  %1084 = vmatprep.subr.mxu0 0.0
  %1085 = vmatpush1.msra.mxu0 0.0
  %1086 = vmatprep.subr.mxu0 0.0
  %1087 = vmatpush1.msra.mxu0 0.0
  %1088 = vmatprep.subr.mxu0 0.0
  %1089 = vmatpush1.msra.mxu0 0.0
  %1090 = vmatprep.subr.mxu0 0.0
  %1091 = vmatpush1.msra.mxu0 0.0
  %1092 = vmatprep.subr.mxu0 0.0
  %1093 = vmatpush1.msra.mxu0 0.0
  %1094 = vmatprep.mubr.f32.mxu0 %v815
  %1095 = vmatmul.mubr.f32.gmra.mrb[0].mxu0 %v11
  %v1096 = vpop.f32.mrb[0].mxu0
  %v1097 = vadd.f32 0.0, %v1096
  %v1098 = vpop.f32.mrb[0].mxu0
  %v1099 = vadd.f32 0.0, %v1098
  %1100 = vdwg.mxu0
  %1101 = vmatprep.subr.mxu0 %v22
  %1102 = vmatpush1.msra.mxu0 %v21
  %1103 = vmatprep.subr.mxu0 %v54
  %1104 = vmatpush1.msra.mxu0 %v53
  %1105 = vmatprep.subr.mxu0 %v86
  %1106 = vmatpush1.msra.mxu0 %v85
  %1107 = vmatprep.subr.mxu0 %v118
  %1108 = vmatpush1.msra.mxu0 %v117
  %1109 = vmatprep.subr.mxu0 %v150
  %1110 = vmatpush1.msra.mxu0 %v149
  %1111 = vmatprep.subr.mxu0 %v182
  %1112 = vmatpush1.msra.mxu0 %v181
  %1113 = vmatprep.subr.mxu0 %v214
  %1114 = vmatpush1.msra.mxu0 %v213
  %1115 = vmatprep.subr.mxu0 %v246
  %1116 = vmatpush1.msra.mxu0 %v245
  %1117 = vmatprep.subr.mxu0 %v278
  %1118 = vmatpush1.msra.mxu0 %v277
  %1119 = vmatprep.subr.mxu0 %v310
  %1120 = vmatpush1.msra.mxu0 %v309
  %1121 = vmatprep.subr.mxu0 %v342
  %1122 = vmatpush1.msra.mxu0 %v341
  %1123 = vmatprep.subr.mxu0 %v374
  %1124 = vmatpush1.msra.mxu0 %v373
  %1125 = vmatprep.subr.mxu0 %v406
  %1126 = vmatpush1.msra.mxu0 %v405
  %1127 = vmatprep.subr.mxu0 %v438
  %1128 = vmatpush1.msra.mxu0 %v437
  %1129 = vmatprep.subr.mxu0 %v470
  %1130 = vmatpush1.msra.mxu0 %v469
  %1131 = vmatprep.subr.mxu0 %v502
  %1132 = vmatpush1.msra.mxu0 %v501
  %1133 = vmatprep.subr.mxu0 %v534
  %1134 = vmatpush1.msra.mxu0 %v533
  %1135 = vmatprep.subr.mxu0 %v566
  %1136 = vmatpush1.msra.mxu0 %v565
  %1137 = vmatprep.subr.mxu0 %v598
  %1138 = vmatpush1.msra.mxu0 %v597
  %1139 = vmatprep.subr.mxu0 %v630
  %1140 = vmatpush1.msra.mxu0 %v629
  %1141 = vmatprep.subr.mxu0 %v662
  %1142 = vmatpush1.msra.mxu0 %v661
  %1143 = vmatprep.subr.mxu0 %v694
  %1144 = vmatpush1.msra.mxu0 %v693
  %1145 = vmatprep.subr.mxu0 %v726
  %1146 = vmatpush1.msra.mxu0 %v725
  %1147 = vmatprep.subr.mxu0 %v758
  %1148 = vmatpush1.msra.mxu0 %v757
  %1149 = vmatprep.subr.mxu0 %v790
  %1150 = vmatpush1.msra.mxu0 %v789
  %1151 = vmatprep.subr.mxu0 0.0
  %1152 = vmatpush1.msra.mxu0 0.0
  %1153 = vmatprep.subr.mxu0 0.0
  %1154 = vmatpush1.msra.mxu0 0.0
  %1155 = vmatprep.subr.mxu0 0.0
  %1156 = vmatpush1.msra.mxu0 0.0
  %1157 = vmatprep.subr.mxu0 0.0
  %1158 = vmatpush1.msra.mxu0 0.0
  %1159 = vmatprep.subr.mxu0 0.0
  %1160 = vmatpush1.msra.mxu0 0.0
  %1161 = vmatprep.subr.mxu0 0.0
  %1162 = vmatpush1.msra.mxu0 0.0
  %1163 = vmatprep.subr.mxu0 0.0
  %1164 = vmatpush1.msra.mxu0 0.0
  %1165 = vmatprep.mubr.f32.mxu0 %v815
  %1166 = vmatmul.mubr.f32.gmra.mrb[0].mxu0 %v11
  %v1167 = vpop.f32.mrb[0].mxu0
  %v1168 = vadd.f32 0.0, %v1167
  %v1169 = vpop.f32.mrb[0].mxu0
  %v1170 = vadd.f32 0.0, %v1169
  %1171 = vdwg.mxu0
  %1172 = vmatprep.subr.mxu0 %v24
  %1173 = vmatpush1.msra.mxu0 %v23
  %1174 = vmatprep.subr.mxu0 %v56
  %1175 = vmatpush1.msra.mxu0 %v55
  %1176 = vmatprep.subr.mxu0 %v88
  %1177 = vmatpush1.msra.mxu0 %v87
  %1178 = vmatprep.subr.mxu0 %v120
  %1179 = vmatpush1.msra.mxu0 %v119
  %1180 = vmatprep.subr.mxu0 %v152
  %1181 = vmatpush1.msra.mxu0 %v151
  %1182 = vmatprep.subr.mxu0 %v184
  %1183 = vmatpush1.msra.mxu0 %v183
  %1184 = vmatprep.subr.mxu0 %v216
  %1185 = vmatpush1.msra.mxu0 %v215
  %1186 = vmatprep.subr.mxu0 %v248
  %1187 = vmatpush1.msra.mxu0 %v247
  %1188 = vmatprep.subr.mxu0 %v280
  %1189 = vmatpush1.msra.mxu0 %v279
  %1190 = vmatprep.subr.mxu0 %v312
  %1191 = vmatpush1.msra.mxu0 %v311
  %1192 = vmatprep.subr.mxu0 %v344
  %1193 = vmatpush1.msra.mxu0 %v343
  %1194 = vmatprep.subr.mxu0 %v376
  %1195 = vmatpush1.msra.mxu0 %v375
  %1196 = vmatprep.subr.mxu0 %v408
  %1197 = vmatpush1.msra.mxu0 %v407
  %1198 = vmatprep.subr.mxu0 %v440
  %1199 = vmatpush1.msra.mxu0 %v439
  %1200 = vmatprep.subr.mxu0 %v472
  %1201 = vmatpush1.msra.mxu0 %v471
  %1202 = vmatprep.subr.mxu0 %v504
  %1203 = vmatpush1.msra.mxu0 %v503
  %1204 = vmatprep.subr.mxu0 %v536
  %1205 = vmatpush1.msra.mxu0 %v535
  %1206 = vmatprep.subr.mxu0 %v568
  %1207 = vmatpush1.msra.mxu0 %v567
  %1208 = vmatprep.subr.mxu0 %v600
  %1209 = vmatpush1.msra.mxu0 %v599
  %1210 = vmatprep.subr.mxu0 %v632
  %1211 = vmatpush1.msra.mxu0 %v631
  %1212 = vmatprep.subr.mxu0 %v664
  %1213 = vmatpush1.msra.mxu0 %v663
  %1214 = vmatprep.subr.mxu0 %v696
  %1215 = vmatpush1.msra.mxu0 %v695
  %1216 = vmatprep.subr.mxu0 %v728
  %1217 = vmatpush1.msra.mxu0 %v727
  %1218 = vmatprep.subr.mxu0 %v760
  %1219 = vmatpush1.msra.mxu0 %v759
  %1220 = vmatprep.subr.mxu0 %v792
  %1221 = vmatpush1.msra.mxu0 %v791
  %1222 = vmatprep.subr.mxu0 0.0
  %1223 = vmatpush1.msra.mxu0 0.0
  %1224 = vmatprep.subr.mxu0 0.0
  %1225 = vmatpush1.msra.mxu0 0.0
  %1226 = vmatprep.subr.mxu0 0.0
  %1227 = vmatpush1.msra.mxu0 0.0
  %1228 = vmatprep.subr.mxu0 0.0
  %1229 = vmatpush1.msra.mxu0 0.0
  %1230 = vmatprep.subr.mxu0 0.0
  %1231 = vmatpush1.msra.mxu0 0.0
  %1232 = vmatprep.subr.mxu0 0.0
  %1233 = vmatpush1.msra.mxu0 0.0
  %1234 = vmatprep.subr.mxu0 0.0
  %1235 = vmatpush1.msra.mxu0 0.0
  %1236 = vmatprep.mubr.f32.mxu0 %v815
  %1237 = vmatmul.mubr.f32.gmra.mrb[0].mxu0 %v11
  %v1238 = vpop.f32.mrb[0].mxu0
  %v1239 = vadd.f32 0.0, %v1238
  %v1240 = vpop.f32.mrb[0].mxu0
  %v1241 = vadd.f32 0.0, %v1240
  %1242 = vdwg.mxu0
  %1243 = vmatprep.subr.mxu0 %v26
  %1244 = vmatpush1.msra.mxu0 %v25
  %1245 = vmatprep.subr.mxu0 %v58
  %1246 = vmatpush1.msra.mxu0 %v57
  %1247 = vmatprep.subr.mxu0 %v90
  %1248 = vmatpush1.msra.mxu0 %v89
  %1249 = vmatprep.subr.mxu0 %v122
  %1250 = vmatpush1.msra.mxu0 %v121
  %1251 = vmatprep.subr.mxu0 %v154
  %1252 = vmatpush1.msra.mxu0 %v153
  %1253 = vmatprep.subr.mxu0 %v186
  %1254 = vmatpush1.msra.mxu0 %v185
  %1255 = vmatprep.subr.mxu0 %v218
  %1256 = vmatpush1.msra.mxu0 %v217
  %1257 = vmatprep.subr.mxu0 %v250
  %1258 = vmatpush1.msra.mxu0 %v249
  %1259 = vmatprep.subr.mxu0 %v282
  %1260 = vmatpush1.msra.mxu0 %v281
  %1261 = vmatprep.subr.mxu0 %v314
  %1262 = vmatpush1.msra.mxu0 %v313
  %1263 = vmatprep.subr.mxu0 %v346
  %1264 = vmatpush1.msra.mxu0 %v345
  %1265 = vmatprep.subr.mxu0 %v378
  %1266 = vmatpush1.msra.mxu0 %v377
  %1267 = vmatprep.subr.mxu0 %v410
  %1268 = vmatpush1.msra.mxu0 %v409
  %1269 = vmatprep.subr.mxu0 %v442
  %1270 = vmatpush1.msra.mxu0 %v441
  %1271 = vmatprep.subr.mxu0 %v474
  %1272 = vmatpush1.msra.mxu0 %v473
  %1273 = vmatprep.subr.mxu0 %v506
  %1274 = vmatpush1.msra.mxu0 %v505
  %1275 = vmatprep.subr.mxu0 %v538
  %1276 = vmatpush1.msra.mxu0 %v537
  %1277 = vmatprep.subr.mxu0 %v570
  %1278 = vmatpush1.msra.mxu0 %v569
  %1279 = vmatprep.subr.mxu0 %v602
  %1280 = vmatpush1.msra.mxu0 %v601
  %1281 = vmatprep.subr.mxu0 %v634
  %1282 = vmatpush1.msra.mxu0 %v633
  %1283 = vmatprep.subr.mxu0 %v666
  %1284 = vmatpush1.msra.mxu0 %v665
  %1285 = vmatprep.subr.mxu0 %v698
  %1286 = vmatpush1.msra.mxu0 %v697
  %1287 = vmatprep.subr.mxu0 %v730
  %1288 = vmatpush1.msra.mxu0 %v729
  %1289 = vmatprep.subr.mxu0 %v762
  %1290 = vmatpush1.msra.mxu0 %v761
  %1291 = vmatprep.subr.mxu0 %v794
  %1292 = vmatpush1.msra.mxu0 %v793
  %1293 = vmatprep.subr.mxu0 0.0
  %1294 = vmatpush1.msra.mxu0 0.0
  %1295 = vmatprep.subr.mxu0 0.0
  %1296 = vmatpush1.msra.mxu0 0.0
  %1297 = vmatprep.subr.mxu0 0.0
  %1298 = vmatpush1.msra.mxu0 0.0
  %1299 = vmatprep.subr.mxu0 0.0
  %1300 = vmatpush1.msra.mxu0 0.0
  %1301 = vmatprep.subr.mxu0 0.0
  %1302 = vmatpush1.msra.mxu0 0.0
  %1303 = vmatprep.subr.mxu0 0.0
  %1304 = vmatpush1.msra.mxu0 0.0
  %1305 = vmatprep.subr.mxu0 0.0
  %1306 = vmatpush1.msra.mxu0 0.0
  %1307 = vmatprep.mubr.f32.mxu0 %v815
  %1308 = vmatmul.mubr.f32.gmra.mrb[0].mxu0 %v11
  %v1309 = vpop.f32.mrb[0].mxu0
  %v1310 = vadd.f32 0.0, %v1309
  %v1311 = vpop.f32.mrb[0].mxu0
  %v1312 = vadd.f32 0.0, %v1311
  %1313 = vdwg.mxu0
  %1314 = vmatprep.subr.mxu0 %v28
  %1315 = vmatpush1.msra.mxu0 %v27
  %1316 = vmatprep.subr.mxu0 %v60
  %1317 = vmatpush1.msra.mxu0 %v59
  %1318 = vmatprep.subr.mxu0 %v92
  %1319 = vmatpush1.msra.mxu0 %v91
  %1320 = vmatprep.subr.mxu0 %v124
  %1321 = vmatpush1.msra.mxu0 %v123
  %1322 = vmatprep.subr.mxu0 %v156
  %1323 = vmatpush1.msra.mxu0 %v155
  %1324 = vmatprep.subr.mxu0 %v188
  %1325 = vmatpush1.msra.mxu0 %v187
  %1326 = vmatprep.subr.mxu0 %v220
  %1327 = vmatpush1.msra.mxu0 %v219
  %1328 = vmatprep.subr.mxu0 %v252
  %1329 = vmatpush1.msra.mxu0 %v251
  %1330 = vmatprep.subr.mxu0 %v284
  %1331 = vmatpush1.msra.mxu0 %v283
  %1332 = vmatprep.subr.mxu0 %v316
  %1333 = vmatpush1.msra.mxu0 %v315
  %1334 = vmatprep.subr.mxu0 %v348
  %1335 = vmatpush1.msra.mxu0 %v347
  %1336 = vmatprep.subr.mxu0 %v380
  %1337 = vmatpush1.msra.mxu0 %v379
  %1338 = vmatprep.subr.mxu0 %v412
  %1339 = vmatpush1.msra.mxu0 %v411
  %1340 = vmatprep.subr.mxu0 %v444
  %1341 = vmatpush1.msra.mxu0 %v443
  %1342 = vmatprep.subr.mxu0 %v476
  %1343 = vmatpush1.msra.mxu0 %v475
  %1344 = vmatprep.subr.mxu0 %v508
  %1345 = vmatpush1.msra.mxu0 %v507
  %1346 = vmatprep.subr.mxu0 %v540
  %1347 = vmatpush1.msra.mxu0 %v539
  %1348 = vmatprep.subr.mxu0 %v572
  %1349 = vmatpush1.msra.mxu0 %v571
  %1350 = vmatprep.subr.mxu0 %v604
  %1351 = vmatpush1.msra.mxu0 %v603
  %1352 = vmatprep.subr.mxu0 %v636
  %1353 = vmatpush1.msra.mxu0 %v635
  %1354 = vmatprep.subr.mxu0 %v668
  %1355 = vmatpush1.msra.mxu0 %v667
  %1356 = vmatprep.subr.mxu0 %v700
  %1357 = vmatpush1.msra.mxu0 %v699
  %1358 = vmatprep.subr.mxu0 %v732
  %1359 = vmatpush1.msra.mxu0 %v731
  %1360 = vmatprep.subr.mxu0 %v764
  %1361 = vmatpush1.msra.mxu0 %v763
  %1362 = vmatprep.subr.mxu0 %v796
  %1363 = vmatpush1.msra.mxu0 %v795
  %1364 = vmatprep.subr.mxu0 0.0
  %1365 = vmatpush1.msra.mxu0 0.0
  %1366 = vmatprep.subr.mxu0 0.0
  %1367 = vmatpush1.msra.mxu0 0.0
  %1368 = vmatprep.subr.mxu0 0.0
  %1369 = vmatpush1.msra.mxu0 0.0
  %1370 = vmatprep.subr.mxu0 0.0
  %1371 = vmatpush1.msra.mxu0 0.0
  %1372 = vmatprep.subr.mxu0 0.0
  %1373 = vmatpush1.msra.mxu0 0.0
  %1374 = vmatprep.subr.mxu0 0.0
  %1375 = vmatpush1.msra.mxu0 0.0
  %1376 = vmatprep.subr.mxu0 0.0
  %1377 = vmatpush1.msra.mxu0 0.0
  %1378 = vmatprep.mubr.f32.mxu0 %v815
  %1379 = vmatmul.mubr.f32.gmra.mrb[0].mxu0 %v11
  %v1380 = vpop.f32.mrb[0].mxu0
  %v1381 = vadd.f32 0.0, %v1380
  %v1382 = vpop.f32.mrb[0].mxu0
  %v1383 = vadd.f32 0.0, %v1382
  %1384 = vdwg.mxu0
  %1385 = vmatprep.subr.mxu0 %v30
  %1386 = vmatpush1.msra.mxu0 %v29
  %1387 = vmatprep.subr.mxu0 %v62
  %1388 = vmatpush1.msra.mxu0 %v61
  %1389 = vmatprep.subr.mxu0 %v94
  %1390 = vmatpush1.msra.mxu0 %v93
  %1391 = vmatprep.subr.mxu0 %v126
  %1392 = vmatpush1.msra.mxu0 %v125
  %1393 = vmatprep.subr.mxu0 %v158
  %1394 = vmatpush1.msra.mxu0 %v157
  %1395 = vmatprep.subr.mxu0 %v190
  %1396 = vmatpush1.msra.mxu0 %v189
  %1397 = vmatprep.subr.mxu0 %v222
  %1398 = vmatpush1.msra.mxu0 %v221
  %1399 = vmatprep.subr.mxu0 %v254
  %1400 = vmatpush1.msra.mxu0 %v253
  %1401 = vmatprep.subr.mxu0 %v286
  %1402 = vmatpush1.msra.mxu0 %v285
  %1403 = vmatprep.subr.mxu0 %v318
  %1404 = vmatpush1.msra.mxu0 %v317
  %1405 = vmatprep.subr.mxu0 %v350
  %1406 = vmatpush1.msra.mxu0 %v349
  %1407 = vmatprep.subr.mxu0 %v382
  %1408 = vmatpush1.msra.mxu0 %v381
  %1409 = vmatprep.subr.mxu0 %v414
  %1410 = vmatpush1.msra.mxu0 %v413
  %1411 = vmatprep.subr.mxu0 %v446
  %1412 = vmatpush1.msra.mxu0 %v445
  %1413 = vmatprep.subr.mxu0 %v478
  %1414 = vmatpush1.msra.mxu0 %v477
  %1415 = vmatprep.subr.mxu0 %v510
  %1416 = vmatpush1.msra.mxu0 %v509
  %1417 = vmatprep.subr.mxu0 %v542
  %1418 = vmatpush1.msra.mxu0 %v541
  %1419 = vmatprep.subr.mxu0 %v574
  %1420 = vmatpush1.msra.mxu0 %v573
  %1421 = vmatprep.subr.mxu0 %v606
  %1422 = vmatpush1.msra.mxu0 %v605
  %1423 = vmatprep.subr.mxu0 %v638
  %1424 = vmatpush1.msra.mxu0 %v637
  %1425 = vmatprep.subr.mxu0 %v670
  %1426 = vmatpush1.msra.mxu0 %v669
  %1427 = vmatprep.subr.mxu0 %v702
  %1428 = vmatpush1.msra.mxu0 %v701
  %1429 = vmatprep.subr.mxu0 %v734
  %1430 = vmatpush1.msra.mxu0 %v733
  %1431 = vmatprep.subr.mxu0 %v766
  %1432 = vmatpush1.msra.mxu0 %v765
  %1433 = vmatprep.subr.mxu0 %v798
  %1434 = vmatpush1.msra.mxu0 %v797
  %1435 = vmatprep.subr.mxu0 0.0
  %1436 = vmatpush1.msra.mxu0 0.0
  %1437 = vmatprep.subr.mxu0 0.0
  %1438 = vmatpush1.msra.mxu0 0.0
  %1439 = vmatprep.subr.mxu0 0.0
  %1440 = vmatpush1.msra.mxu0 0.0
  %1441 = vmatprep.subr.mxu0 0.0
  %1442 = vmatpush1.msra.mxu0 0.0
  %1443 = vmatprep.subr.mxu0 0.0
  %1444 = vmatpush1.msra.mxu0 0.0
  %1445 = vmatprep.subr.mxu0 0.0
  %1446 = vmatpush1.msra.mxu0 0.0
  %1447 = vmatprep.subr.mxu0 0.0
  %1448 = vmatpush1.msra.mxu0 0.0
  %1449 = vmatprep.mubr.f32.mxu0 %v815
  %1450 = vmatmul.mubr.f32.gmra.mrb[0].mxu0 %v11
  %v1451 = vpop.f32.mrb[0].mxu0
  %v1452 = vadd.f32 0.0, %v1451
  %v1453 = vpop.f32.mrb[0].mxu0
  %v1454 = vadd.f32 0.0, %v1453
  %1455 = vdwg.mxu0
  %1456 = vmatprep.subr.mxu0 %v32
  %1457 = vmatpush1.msra.mxu0 %v31
  %1458 = vmatprep.subr.mxu0 %v64
  %1459 = vmatpush1.msra.mxu0 %v63
  %1460 = vmatprep.subr.mxu0 %v96
  %1461 = vmatpush1.msra.mxu0 %v95
  %1462 = vmatprep.subr.mxu0 %v128
  %1463 = vmatpush1.msra.mxu0 %v127
  %1464 = vmatprep.subr.mxu0 %v160
  %1465 = vmatpush1.msra.mxu0 %v159
  %1466 = vmatprep.subr.mxu0 %v192
  %1467 = vmatpush1.msra.mxu0 %v191
  %1468 = vmatprep.subr.mxu0 %v224
  %1469 = vmatpush1.msra.mxu0 %v223
  %1470 = vmatprep.subr.mxu0 %v256
  %1471 = vmatpush1.msra.mxu0 %v255
  %1472 = vmatprep.subr.mxu0 %v288
  %1473 = vmatpush1.msra.mxu0 %v287
  %1474 = vmatprep.subr.mxu0 %v320
  %1475 = vmatpush1.msra.mxu0 %v319
  %1476 = vmatprep.subr.mxu0 %v352
  %1477 = vmatpush1.msra.mxu0 %v351
  %1478 = vmatprep.subr.mxu0 %v384
  %1479 = vmatpush1.msra.mxu0 %v383
  %1480 = vmatprep.subr.mxu0 %v416
  %1481 = vmatpush1.msra.mxu0 %v415
  %1482 = vmatprep.subr.mxu0 %v448
  %1483 = vmatpush1.msra.mxu0 %v447
  %1484 = vmatprep.subr.mxu0 %v480
  %1485 = vmatpush1.msra.mxu0 %v479
  %1486 = vmatprep.subr.mxu0 %v512
  %1487 = vmatpush1.msra.mxu0 %v511
  %1488 = vmatprep.subr.mxu0 %v544
  %1489 = vmatpush1.msra.mxu0 %v543
  %1490 = vmatprep.subr.mxu0 %v576
  %1491 = vmatpush1.msra.mxu0 %v575
  %1492 = vmatprep.subr.mxu0 %v608
  %1493 = vmatpush1.msra.mxu0 %v607
  %1494 = vmatprep.subr.mxu0 %v640
  %1495 = vmatpush1.msra.mxu0 %v639
  %1496 = vmatprep.subr.mxu0 %v672
  %1497 = vmatpush1.msra.mxu0 %v671
  %1498 = vmatprep.subr.mxu0 %v704
  %1499 = vmatpush1.msra.mxu0 %v703
  %1500 = vmatprep.subr.mxu0 %v736
  %1501 = vmatpush1.msra.mxu0 %v735
  %1502 = vmatprep.subr.mxu0 %v768
  %1503 = vmatpush1.msra.mxu0 %v767
  %1504 = vmatprep.subr.mxu0 %v800
  %1505 = vmatpush1.msra.mxu0 %v799
  %1506 = vmatprep.subr.mxu0 0.0
  %1507 = vmatpush1.msra.mxu0 0.0
  %1508 = vmatprep.subr.mxu0 0.0
  %1509 = vmatpush1.msra.mxu0 0.0
  %1510 = vmatprep.subr.mxu0 0.0
  %1511 = vmatpush1.msra.mxu0 0.0
  %1512 = vmatprep.subr.mxu0 0.0
  %1513 = vmatpush1.msra.mxu0 0.0
  %1514 = vmatprep.subr.mxu0 0.0
  %1515 = vmatpush1.msra.mxu0 0.0
  %1516 = vmatprep.subr.mxu0 0.0
  %1517 = vmatpush1.msra.mxu0 0.0
  %1518 = vmatprep.subr.mxu0 0.0
  %1519 = vmatpush1.msra.mxu0 0.0
  %1520 = vmatprep.mubr.f32.mxu0 %v815
  %1521 = vmatmul.mubr.f32.gmra.mrb[0].mxu0 %v11
  %v1522 = vpop.f32.mrb[0].mxu0
  %v1523 = vadd.f32 0.0, %v1522
  %v1524 = vpop.f32.mrb[0].mxu0
  %v1525 = vadd.f32 0.0, %v1524
  %1526 = vdwg.mxu0
  %1527 = vmatprep.subr.mxu0 %v34
  %1528 = vmatpush1.msra.mxu0 %v33
  %1529 = vmatprep.subr.mxu0 %v66
  %1530 = vmatpush1.msra.mxu0 %v65
  %1531 = vmatprep.subr.mxu0 %v98
  %1532 = vmatpush1.msra.mxu0 %v97
  %1533 = vmatprep.subr.mxu0 %v130
  %1534 = vmatpush1.msra.mxu0 %v129
  %1535 = vmatprep.subr.mxu0 %v162
  %1536 = vmatpush1.msra.mxu0 %v161
  %1537 = vmatprep.subr.mxu0 %v194
  %1538 = vmatpush1.msra.mxu0 %v193
  %1539 = vmatprep.subr.mxu0 %v226
  %1540 = vmatpush1.msra.mxu0 %v225
  %1541 = vmatprep.subr.mxu0 %v258
  %1542 = vmatpush1.msra.mxu0 %v257
  %1543 = vmatprep.subr.mxu0 %v290
  %1544 = vmatpush1.msra.mxu0 %v289
  %1545 = vmatprep.subr.mxu0 %v322
  %1546 = vmatpush1.msra.mxu0 %v321
  %1547 = vmatprep.subr.mxu0 %v354
  %1548 = vmatpush1.msra.mxu0 %v353
  %1549 = vmatprep.subr.mxu0 %v386
  %1550 = vmatpush1.msra.mxu0 %v385
  %1551 = vmatprep.subr.mxu0 %v418
  %1552 = vmatpush1.msra.mxu0 %v417
  %1553 = vmatprep.subr.mxu0 %v450
  %1554 = vmatpush1.msra.mxu0 %v449
  %1555 = vmatprep.subr.mxu0 %v482
  %1556 = vmatpush1.msra.mxu0 %v481
  %1557 = vmatprep.subr.mxu0 %v514
  %1558 = vmatpush1.msra.mxu0 %v513
  %1559 = vmatprep.subr.mxu0 %v546
  %1560 = vmatpush1.msra.mxu0 %v545
  %1561 = vmatprep.subr.mxu0 %v578
  %1562 = vmatpush1.msra.mxu0 %v577
  %1563 = vmatprep.subr.mxu0 %v610
  %1564 = vmatpush1.msra.mxu0 %v609
  %1565 = vmatprep.subr.mxu0 %v642
  %1566 = vmatpush1.msra.mxu0 %v641
  %1567 = vmatprep.subr.mxu0 %v674
  %1568 = vmatpush1.msra.mxu0 %v673
  %1569 = vmatprep.subr.mxu0 %v706
  %1570 = vmatpush1.msra.mxu0 %v705
  %1571 = vmatprep.subr.mxu0 %v738
  %1572 = vmatpush1.msra.mxu0 %v737
  %1573 = vmatprep.subr.mxu0 %v770
  %1574 = vmatpush1.msra.mxu0 %v769
  %1575 = vmatprep.subr.mxu0 %v802
  %1576 = vmatpush1.msra.mxu0 %v801
  %1577 = vmatprep.subr.mxu0 0.0
  %1578 = vmatpush1.msra.mxu0 0.0
  %1579 = vmatprep.subr.mxu0 0.0
  %1580 = vmatpush1.msra.mxu0 0.0
  %1581 = vmatprep.subr.mxu0 0.0
  %1582 = vmatpush1.msra.mxu0 0.0
  %1583 = vmatprep.subr.mxu0 0.0
  %1584 = vmatpush1.msra.mxu0 0.0
  %1585 = vmatprep.subr.mxu0 0.0
  %1586 = vmatpush1.msra.mxu0 0.0
  %1587 = vmatprep.subr.mxu0 0.0
  %1588 = vmatpush1.msra.mxu0 0.0
  %1589 = vmatprep.subr.mxu0 0.0
  %1590 = vmatpush1.msra.mxu0 0.0
  %1591 = vmatprep.mubr.f32.mxu0 %v815
  %1592 = vmatmul.mubr.f32.gmra.mrb[0].mxu0 %v11
  %v1593 = vpop.f32.mrb[0].mxu0
  %v1594 = vadd.f32 0.0, %v1593
  %v1595 = vpop.f32.mrb[0].mxu0
  %v1596 = vadd.f32 0.0, %v1595
  %1597 = vdwg.mxu0
  %1598 = vmatprep.subr.mxu0 %v36
  %1599 = vmatpush1.msra.mxu0 %v35
  %1600 = vmatprep.subr.mxu0 %v68
  %1601 = vmatpush1.msra.mxu0 %v67
  %1602 = vmatprep.subr.mxu0 %v100
  %1603 = vmatpush1.msra.mxu0 %v99
  %1604 = vmatprep.subr.mxu0 %v132
  %1605 = vmatpush1.msra.mxu0 %v131
  %1606 = vmatprep.subr.mxu0 %v164
  %1607 = vmatpush1.msra.mxu0 %v163
  %1608 = vmatprep.subr.mxu0 %v196
  %1609 = vmatpush1.msra.mxu0 %v195
  %1610 = vmatprep.subr.mxu0 %v228
  %1611 = vmatpush1.msra.mxu0 %v227
  %1612 = vmatprep.subr.mxu0 %v260
  %1613 = vmatpush1.msra.mxu0 %v259
  %1614 = vmatprep.subr.mxu0 %v292
  %1615 = vmatpush1.msra.mxu0 %v291
  %1616 = vmatprep.subr.mxu0 %v324
  %1617 = vmatpush1.msra.mxu0 %v323
  %1618 = vmatprep.subr.mxu0 %v356
  %1619 = vmatpush1.msra.mxu0 %v355
  %1620 = vmatprep.subr.mxu0 %v388
  %1621 = vmatpush1.msra.mxu0 %v387
  %1622 = vmatprep.subr.mxu0 %v420
  %1623 = vmatpush1.msra.mxu0 %v419
  %1624 = vmatprep.subr.mxu0 %v452
  %1625 = vmatpush1.msra.mxu0 %v451
  %1626 = vmatprep.subr.mxu0 %v484
  %1627 = vmatpush1.msra.mxu0 %v483
  %1628 = vmatprep.subr.mxu0 %v516
  %1629 = vmatpush1.msra.mxu0 %v515
  %1630 = vmatprep.subr.mxu0 %v548
  %1631 = vmatpush1.msra.mxu0 %v547
  %1632 = vmatprep.subr.mxu0 %v580
  %1633 = vmatpush1.msra.mxu0 %v579
  %1634 = vmatprep.subr.mxu0 %v612
  %1635 = vmatpush1.msra.mxu0 %v611
  %1636 = vmatprep.subr.mxu0 %v644
  %1637 = vmatpush1.msra.mxu0 %v643
  %1638 = vmatprep.subr.mxu0 %v676
  %1639 = vmatpush1.msra.mxu0 %v675
  %1640 = vmatprep.subr.mxu0 %v708
  %1641 = vmatpush1.msra.mxu0 %v707
  %1642 = vmatprep.subr.mxu0 %v740
  %1643 = vmatpush1.msra.mxu0 %v739
  %1644 = vmatprep.subr.mxu0 %v772
  %1645 = vmatpush1.msra.mxu0 %v771
  %1646 = vmatprep.subr.mxu0 %v804
  %1647 = vmatpush1.msra.mxu0 %v803
  %1648 = vmatprep.subr.mxu0 0.0
  %1649 = vmatpush1.msra.mxu0 0.0
  %1650 = vmatprep.subr.mxu0 0.0
  %1651 = vmatpush1.msra.mxu0 0.0
  %1652 = vmatprep.subr.mxu0 0.0
  %1653 = vmatpush1.msra.mxu0 0.0
  %1654 = vmatprep.subr.mxu0 0.0
  %1655 = vmatpush1.msra.mxu0 0.0
  %1656 = vmatprep.subr.mxu0 0.0
  %1657 = vmatpush1.msra.mxu0 0.0
  %1658 = vmatprep.subr.mxu0 0.0
  %1659 = vmatpush1.msra.mxu0 0.0
  %1660 = vmatprep.subr.mxu0 0.0
  %1661 = vmatpush1.msra.mxu0 0.0
  %1662 = vmatprep.mubr.f32.mxu0 %v815
  %1663 = vmatmul.mubr.f32.gmra.mrb[0].mxu0 %v11
  %v1664 = vpop.f32.mrb[0].mxu0
  %v1665 = vadd.f32 0.0, %v1664
  %v1666 = vpop.f32.mrb[0].mxu0
  %v1667 = vadd.f32 0.0, %v1666
  %1668 = vdwg.mxu0
  %1669 = vmatprep.subr.mxu0 %v38
  %1670 = vmatpush1.msra.mxu0 %v37
  %1671 = vmatprep.subr.mxu0 %v70
  %1672 = vmatpush1.msra.mxu0 %v69
  %1673 = vmatprep.subr.mxu0 %v102
  %1674 = vmatpush1.msra.mxu0 %v101
  %1675 = vmatprep.subr.mxu0 %v134
  %1676 = vmatpush1.msra.mxu0 %v133
  %1677 = vmatprep.subr.mxu0 %v166
  %1678 = vmatpush1.msra.mxu0 %v165
  %1679 = vmatprep.subr.mxu0 %v198
  %1680 = vmatpush1.msra.mxu0 %v197
  %1681 = vmatprep.subr.mxu0 %v230
  %1682 = vmatpush1.msra.mxu0 %v229
  %1683 = vmatprep.subr.mxu0 %v262
  %1684 = vmatpush1.msra.mxu0 %v261
  %1685 = vmatprep.subr.mxu0 %v294
  %1686 = vmatpush1.msra.mxu0 %v293
  %1687 = vmatprep.subr.mxu0 %v326
  %1688 = vmatpush1.msra.mxu0 %v325
  %1689 = vmatprep.subr.mxu0 %v358
  %1690 = vmatpush1.msra.mxu0 %v357
  %1691 = vmatprep.subr.mxu0 %v390
  %1692 = vmatpush1.msra.mxu0 %v389
  %1693 = vmatprep.subr.mxu0 %v422
  %1694 = vmatpush1.msra.mxu0 %v421
  %1695 = vmatprep.subr.mxu0 %v454
  %1696 = vmatpush1.msra.mxu0 %v453
  %1697 = vmatprep.subr.mxu0 %v486
  %1698 = vmatpush1.msra.mxu0 %v485
  %1699 = vmatprep.subr.mxu0 %v518
  %1700 = vmatpush1.msra.mxu0 %v517
  %1701 = vmatprep.subr.mxu0 %v550
  %1702 = vmatpush1.msra.mxu0 %v549
  %1703 = vmatprep.subr.mxu0 %v582
  %1704 = vmatpush1.msra.mxu0 %v581
  %1705 = vmatprep.subr.mxu0 %v614
  %1706 = vmatpush1.msra.mxu0 %v613
  %1707 = vmatprep.subr.mxu0 %v646
  %1708 = vmatpush1.msra.mxu0 %v645
  %1709 = vmatprep.subr.mxu0 %v678
  %1710 = vmatpush1.msra.mxu0 %v677
  %1711 = vmatprep.subr.mxu0 %v710
  %1712 = vmatpush1.msra.mxu0 %v709
  %1713 = vmatprep.subr.mxu0 %v742
  %1714 = vmatpush1.msra.mxu0 %v741
  %1715 = vmatprep.subr.mxu0 %v774
  %1716 = vmatpush1.msra.mxu0 %v773
  %1717 = vmatprep.subr.mxu0 %v806
  %1718 = vmatpush1.msra.mxu0 %v805
  %1719 = vmatprep.subr.mxu0 0.0
  %1720 = vmatpush1.msra.mxu0 0.0
  %1721 = vmatprep.subr.mxu0 0.0
  %1722 = vmatpush1.msra.mxu0 0.0
  %1723 = vmatprep.subr.mxu0 0.0
  %1724 = vmatpush1.msra.mxu0 0.0
  %1725 = vmatprep.subr.mxu0 0.0
  %1726 = vmatpush1.msra.mxu0 0.0
  %1727 = vmatprep.subr.mxu0 0.0
  %1728 = vmatpush1.msra.mxu0 0.0
  %1729 = vmatprep.subr.mxu0 0.0
  %1730 = vmatpush1.msra.mxu0 0.0
  %1731 = vmatprep.subr.mxu0 0.0
  %1732 = vmatpush1.msra.mxu0 0.0
  %1733 = vmatprep.mubr.f32.mxu0 %v815
  %1734 = vmatmul.mubr.f32.gmra.mrb[0].mxu0 %v11
  %v1735 = vpop.f32.mrb[0].mxu0
  %v1736 = vadd.f32 0.0, %v1735
  %v1737 = vpop.f32.mrb[0].mxu0
  %v1738 = vadd.f32 0.0, %v1737
  %1739 = vdwg.mxu0
  %1740 = vmatprep.subr.mxu0 %v40
  %1741 = vmatpush1.msra.mxu0 %v39
  %1742 = vmatprep.subr.mxu0 %v72
  %1743 = vmatpush1.msra.mxu0 %v71
  %1744 = vmatprep.subr.mxu0 %v104
  %1745 = vmatpush1.msra.mxu0 %v103
  %1746 = vmatprep.subr.mxu0 %v136
  %1747 = vmatpush1.msra.mxu0 %v135
  %1748 = vmatprep.subr.mxu0 %v168
  %1749 = vmatpush1.msra.mxu0 %v167
  %1750 = vmatprep.subr.mxu0 %v200
  %1751 = vmatpush1.msra.mxu0 %v199
  %1752 = vmatprep.subr.mxu0 %v232
  %1753 = vmatpush1.msra.mxu0 %v231
  %1754 = vmatprep.subr.mxu0 %v264
  %1755 = vmatpush1.msra.mxu0 %v263
  %1756 = vmatprep.subr.mxu0 %v296
  %1757 = vmatpush1.msra.mxu0 %v295
  %1758 = vmatprep.subr.mxu0 %v328
  %1759 = vmatpush1.msra.mxu0 %v327
  %1760 = vmatprep.subr.mxu0 %v360
  %1761 = vmatpush1.msra.mxu0 %v359
  %1762 = vmatprep.subr.mxu0 %v392
  %1763 = vmatpush1.msra.mxu0 %v391
  %1764 = vmatprep.subr.mxu0 %v424
  %1765 = vmatpush1.msra.mxu0 %v423
  %1766 = vmatprep.subr.mxu0 %v456
  %1767 = vmatpush1.msra.mxu0 %v455
  %1768 = vmatprep.subr.mxu0 %v488
  %1769 = vmatpush1.msra.mxu0 %v487
  %1770 = vmatprep.subr.mxu0 %v520
  %1771 = vmatpush1.msra.mxu0 %v519
  %1772 = vmatprep.subr.mxu0 %v552
  %1773 = vmatpush1.msra.mxu0 %v551
  %1774 = vmatprep.subr.mxu0 %v584
  %1775 = vmatpush1.msra.mxu0 %v583
  %1776 = vmatprep.subr.mxu0 %v616
  %1777 = vmatpush1.msra.mxu0 %v615
  %1778 = vmatprep.subr.mxu0 %v648
  %1779 = vmatpush1.msra.mxu0 %v647
  %1780 = vmatprep.subr.mxu0 %v680
  %1781 = vmatpush1.msra.mxu0 %v679
  %1782 = vmatprep.subr.mxu0 %v712
  %1783 = vmatpush1.msra.mxu0 %v711
  %1784 = vmatprep.subr.mxu0 %v744
  %1785 = vmatpush1.msra.mxu0 %v743
  %1786 = vmatprep.subr.mxu0 %v776
  %1787 = vmatpush1.msra.mxu0 %v775
  %1788 = vmatprep.subr.mxu0 %v808
  %1789 = vmatpush1.msra.mxu0 %v807
  %1790 = vmatprep.subr.mxu0 0.0
  %1791 = vmatpush1.msra.mxu0 0.0
  %1792 = vmatprep.subr.mxu0 0.0
  %1793 = vmatpush1.msra.mxu0 0.0
  %1794 = vmatprep.subr.mxu0 0.0
  %1795 = vmatpush1.msra.mxu0 0.0
  %1796 = vmatprep.subr.mxu0 0.0
  %1797 = vmatpush1.msra.mxu0 0.0
  %1798 = vmatprep.subr.mxu0 0.0
  %1799 = vmatpush1.msra.mxu0 0.0
  %1800 = vmatprep.subr.mxu0 0.0
  %1801 = vmatpush1.msra.mxu0 0.0
  %1802 = vmatprep.subr.mxu0 0.0
  %1803 = vmatpush1.msra.mxu0 0.0
  %1804 = vmatprep.mubr.f32.mxu0 %v815
  %1805 = vmatmul.mubr.f32.gmra.mrb[0].mxu0 %v11
  %v1806 = vpop.f32.mrb[0].mxu0
  %v1807 = vadd.f32 0.0, %v1806
  %v1808 = vpop.f32.mrb[0].mxu0
  %v1809 = vadd.f32 0.0, %v1808
  %1810 = vdwg.mxu0
  %1811 = vmatprep.subr.mxu0 %v42
  %1812 = vmatpush1.msra.mxu0 %v41
  %1813 = vmatprep.subr.mxu0 %v74
  %1814 = vmatpush1.msra.mxu0 %v73
  %1815 = vmatprep.subr.mxu0 %v106
  %1816 = vmatpush1.msra.mxu0 %v105
  %1817 = vmatprep.subr.mxu0 %v138
  %1818 = vmatpush1.msra.mxu0 %v137
  %1819 = vmatprep.subr.mxu0 %v170
  %1820 = vmatpush1.msra.mxu0 %v169
  %1821 = vmatprep.subr.mxu0 %v202
  %1822 = vmatpush1.msra.mxu0 %v201
  %1823 = vmatprep.subr.mxu0 %v234
  %1824 = vmatpush1.msra.mxu0 %v233
  %1825 = vmatprep.subr.mxu0 %v266
  %1826 = vmatpush1.msra.mxu0 %v265
  %1827 = vmatprep.subr.mxu0 %v298
  %1828 = vmatpush1.msra.mxu0 %v297
  %1829 = vmatprep.subr.mxu0 %v330
  %1830 = vmatpush1.msra.mxu0 %v329
  %1831 = vmatprep.subr.mxu0 %v362
  %1832 = vmatpush1.msra.mxu0 %v361
  %1833 = vmatprep.subr.mxu0 %v394
  %1834 = vmatpush1.msra.mxu0 %v393
  %1835 = vmatprep.subr.mxu0 %v426
  %1836 = vmatpush1.msra.mxu0 %v425
  %1837 = vmatprep.subr.mxu0 %v458
  %1838 = vmatpush1.msra.mxu0 %v457
  %1839 = vmatprep.subr.mxu0 %v490
  %1840 = vmatpush1.msra.mxu0 %v489
  %1841 = vmatprep.subr.mxu0 %v522
  %1842 = vmatpush1.msra.mxu0 %v521
  %1843 = vmatprep.subr.mxu0 %v554
  %1844 = vmatpush1.msra.mxu0 %v553
  %1845 = vmatprep.subr.mxu0 %v586
  %1846 = vmatpush1.msra.mxu0 %v585
  %1847 = vmatprep.subr.mxu0 %v618
  %1848 = vmatpush1.msra.mxu0 %v617
  %1849 = vmatprep.subr.mxu0 %v650
  %1850 = vmatpush1.msra.mxu0 %v649
  %1851 = vmatprep.subr.mxu0 %v682
  %1852 = vmatpush1.msra.mxu0 %v681
  %1853 = vmatprep.subr.mxu0 %v714
  %1854 = vmatpush1.msra.mxu0 %v713
  %1855 = vmatprep.subr.mxu0 %v746
  %1856 = vmatpush1.msra.mxu0 %v745
  %1857 = vmatprep.subr.mxu0 %v778
  %1858 = vmatpush1.msra.mxu0 %v777
  %1859 = vmatprep.subr.mxu0 %v810
  %1860 = vmatpush1.msra.mxu0 %v809
  %1861 = vmatprep.subr.mxu0 0.0
  %1862 = vmatpush1.msra.mxu0 0.0
  %1863 = vmatprep.subr.mxu0 0.0
  %1864 = vmatpush1.msra.mxu0 0.0
  %1865 = vmatprep.subr.mxu0 0.0
  %1866 = vmatpush1.msra.mxu0 0.0
  %1867 = vmatprep.subr.mxu0 0.0
  %1868 = vmatpush1.msra.mxu0 0.0
  %1869 = vmatprep.subr.mxu0 0.0
  %1870 = vmatpush1.msra.mxu0 0.0
  %1871 = vmatprep.subr.mxu0 0.0
  %1872 = vmatpush1.msra.mxu0 0.0
  %1873 = vmatprep.subr.mxu0 0.0
  %1874 = vmatpush1.msra.mxu0 0.0
  %1875 = vmatprep.mubr.f32.mxu0 %v815
  %1876 = vmatmul.mubr.f32.gmra.mrb[0].mxu0 %v11
  %v1877 = vpop.f32.mrb[0].mxu0
  %v1878 = vadd.f32 0.0, %v1877
  %v1879 = vpop.f32.mrb[0].mxu0
  %v1880 = vadd.f32 0.0, %v1879
  %1881 = vdwg.mxu0
  %1882 = vmatprep.subr.mxu0 %v44
  %1883 = vmatpush1.msra.mxu0 %v43
  %1884 = vmatprep.subr.mxu0 %v76
  %1885 = vmatpush1.msra.mxu0 %v75
  %1886 = vmatprep.subr.mxu0 %v108
  %1887 = vmatpush1.msra.mxu0 %v107
  %1888 = vmatprep.subr.mxu0 %v140
  %1889 = vmatpush1.msra.mxu0 %v139
  %1890 = vmatprep.subr.mxu0 %v172
  %1891 = vmatpush1.msra.mxu0 %v171
  %1892 = vmatprep.subr.mxu0 %v204
  %1893 = vmatpush1.msra.mxu0 %v203
  %1894 = vmatprep.subr.mxu0 %v236
  %1895 = vmatpush1.msra.mxu0 %v235
  %1896 = vmatprep.subr.mxu0 %v268
  %1897 = vmatpush1.msra.mxu0 %v267
  %1898 = vmatprep.subr.mxu0 %v300
  %1899 = vmatpush1.msra.mxu0 %v299
  %1900 = vmatprep.subr.mxu0 %v332
  %1901 = vmatpush1.msra.mxu0 %v331
  %1902 = vmatprep.subr.mxu0 %v364
  %1903 = vmatpush1.msra.mxu0 %v363
  %1904 = vmatprep.subr.mxu0 %v396
  %1905 = vmatpush1.msra.mxu0 %v395
  %1906 = vmatprep.subr.mxu0 %v428
  %1907 = vmatpush1.msra.mxu0 %v427
  %1908 = vmatprep.subr.mxu0 %v460
  %1909 = vmatpush1.msra.mxu0 %v459
  %1910 = vmatprep.subr.mxu0 %v492
  %1911 = vmatpush1.msra.mxu0 %v491
  %1912 = vmatprep.subr.mxu0 %v524
  %1913 = vmatpush1.msra.mxu0 %v523
  %1914 = vmatprep.subr.mxu0 %v556
  %1915 = vmatpush1.msra.mxu0 %v555
  %1916 = vmatprep.subr.mxu0 %v588
  %1917 = vmatpush1.msra.mxu0 %v587
  %1918 = vmatprep.subr.mxu0 %v620
  %1919 = vmatpush1.msra.mxu0 %v619
  %1920 = vmatprep.subr.mxu0 %v652
  %1921 = vmatpush1.msra.mxu0 %v651
  %1922 = vmatprep.subr.mxu0 %v684
  %1923 = vmatpush1.msra.mxu0 %v683
  %1924 = vmatprep.subr.mxu0 %v716
  %1925 = vmatpush1.msra.mxu0 %v715
  %1926 = vmatprep.subr.mxu0 %v748
  %1927 = vmatpush1.msra.mxu0 %v747
  %1928 = vmatprep.subr.mxu0 %v780
  %1929 = vmatpush1.msra.mxu0 %v779
  %1930 = vmatprep.subr.mxu0 %v812
  %1931 = vmatpush1.msra.mxu0 %v811
  %1932 = vmatprep.subr.mxu0 0.0
  %1933 = vmatpush1.msra.mxu0 0.0
  %1934 = vmatprep.subr.mxu0 0.0
  %1935 = vmatpush1.msra.mxu0 0.0
  %1936 = vmatprep.subr.mxu0 0.0
  %1937 = vmatpush1.msra.mxu0 0.0
  %1938 = vmatprep.subr.mxu0 0.0
  %1939 = vmatpush1.msra.mxu0 0.0
  %1940 = vmatprep.subr.mxu0 0.0
  %1941 = vmatpush1.msra.mxu0 0.0
  %1942 = vmatprep.subr.mxu0 0.0
  %1943 = vmatpush1.msra.mxu0 0.0
  %1944 = vmatprep.subr.mxu0 0.0
  %1945 = vmatpush1.msra.mxu0 0.0
  %1946 = vmatprep.mubr.f32.mxu0 %v815
  %1947 = vmatmul.mubr.f32.gmra.mrb[0].mxu0 %v11
  %v1948 = vpop.f32.mrb[0].mxu0
  %v1949 = vadd.f32 0.0, %v1948
  %v1950 = vpop.f32.mrb[0].mxu0
  %v1951 = vadd.f32 0.0, %v1950
  %1952 = vdwg.mxu0
  %1953 = vst [vmem:[%s2] sm:$0xff] %v884
  %1954 = vst [vmem:[%s2 + $0x8] sm:$0xff] %v886
  %1955 = vst [vmem:[%s2 + $0x10] sm:$0xff] %v955
  %1956 = vst [vmem:[%s2 + $0x18] sm:$0xff] %v957
  %1957 = vst [vmem:[%s2 + $0x20] sm:$0xff] %v1026
  %1958 = vst [vmem:[%s2 + $0x28] sm:$0xff] %v1028
  %1959 = vst [vmem:[%s2 + $0x30] sm:$0xff] %v1097
  %1960 = vst [vmem:[%s2 + $0x38] sm:$0xff] %v1099
  %1961 = vst [vmem:[%s2 + $0x40] sm:$0xff] %v1168
  %1962 = vst [vmem:[%s2 + $0x48] sm:$0xff] %v1170
  %1963 = vst [vmem:[%s2 + $0x50] sm:$0xff] %v1239
  %1964 = vst [vmem:[%s2 + $0x58] sm:$0xff] %v1241
  %1965 = vst [vmem:[%s2 + $0x60] sm:$0xff] %v1310
  %1966 = vst [vmem:[%s2 + $0x68] sm:$0xff] %v1312
  %1967 = vst [vmem:[%s2 + $0x70] sm:$0xff] %v1381
  %1968 = vst [vmem:[%s2 + $0x78] sm:$0xff] %v1383
  %1969 = vst [vmem:[%s2 + $0x80] sm:$0xff] %v1452
  %1970 = vst [vmem:[%s2 + $0x88] sm:$0xff] %v1454
  %1971 = vst [vmem:[%s2 + $0x90] sm:$0xff] %v1523
  %1972 = vst [vmem:[%s2 + $0x98] sm:$0xff] %v1525
  %1973 = vst [vmem:[%s2 + $0xa0] sm:$0xff] %v1594
  %1974 = vst [vmem:[%s2 + $0xa8] sm:$0xff] %v1596
  %1975 = vst [vmem:[%s2 + $0xb0] sm:$0xff] %v1665
  %1976 = vst [vmem:[%s2 + $0xb8] sm:$0xff] %v1667
  %1977 = vst [vmem:[%s2 + $0xc0] sm:$0xff] %v1736
  %1978 = vst [vmem:[%s2 + $0xc8] sm:$0xff] %v1738
  %1979 = vst [vmem:[%s2 + $0xd0] sm:$0xff] %v1807
  %1980 = vst [vmem:[%s2 + $0xd8] sm:$0xff] %v1809
  %1981 = vst [vmem:[%s2 + $0xe0] sm:$0xff] %v1878
  %1982 = vst [vmem:[%s2 + $0xe8] sm:$0xff] %v1880
  %1983 = vst [vmem:[%s2 + $0xf0] sm:$0xff] %v1949
  %1984 = vst [vmem:[%s2 + $0xf8] sm:$0xff] %v1951
  // Predicated region
  $region10: #{conv45_decoder_forward.7} parent=0 // pred_check
    _
  $region11: #{conv45_decoder_forward.7} parent=0 // pred_check_branch
    %1986 = sbr.rel (0) target = $region13
  $region12: #{conv45_decoder_forward.7} parent=0 // pred_region
    _
  $region13: #{conv45_decoder_forward.7} parent=0 // pred_fallthru
    _
  // Predicated region
  $region14: #{conv45_decoder_forward.7} parent=0 // pred_check
    _
  $region15: #{conv45_decoder_forward.7} parent=0 // pred_check_branch
    %1988 = sbr.rel (0) target = $region17
  $region16: #{conv45_decoder_forward.7} parent=0 // pred_region
    _
  $region17: #{conv45_decoder_forward.7} parent=0 // pred_fallthru
    _

</llo_original>
